<compile_context>
chip_gen: v7x
topology: tpu7x:2x2x1
jax: 0.10.0
libtpu: 0.0.40
codegen_flags: <defaults>
</compile_context>

<pallas_src>
import functools

import jax
import jax.numpy as jnp
from jax.experimental import pallas as pl
from jax.experimental.pallas import tpu as pltpu


# ----------------------------------------------------------------------------
# helpers
# ----------------------------------------------------------------------------
def _round_up(x, m):
    return (x + m - 1) // m * m


def _num_tensorcores():
    """Best-effort TensorCore count of the local device (v7x: 2, v5e/v6e: 1).
    Falls back to 1 (single-step grid) if the attribute isn't exposed."""
    try:
        return max(1, int(getattr(jax.devices()[0], "num_cores", 1)))
    except Exception:
        return 1


def _pick_tm(n_rows, n_cores):
    """Row-tile size.

    * One tile covering all rows when it fits (no wasted grid steps on the
      single-TensorCore v5e/v6e and no pipeline fill/drain paid twice).
    * Split across cores only when each core gets >= 512 rows of work.
    * Cap at 2048 rows so the in-kernel f32 intermediates (dominated by the
      (TM, 1024) enhancement activations) stay well inside every
      generation's scoped VMEM, including v7x's 64 MiB.
    * Rounded to a multiple of 16 for bf16 sublane packing.
    """
    TM_CAP = 2048
    MIN_ROWS_PER_SPLIT = 512
    n_tiles = max(1, -(-n_rows // TM_CAP))
    if n_cores > 1 and n_rows >= n_cores * MIN_ROWS_PER_SPLIT:
        n_tiles = max(n_tiles, n_cores)
    return _round_up(-(-n_rows // n_tiles), 16)


# ----------------------------------------------------------------------------
# Pallas kernel: fully fused BLS forward for one row tile
# ----------------------------------------------------------------------------
def _bls_kernel(x_ref, we_ref, be_ref, wh_ref, bh_ref, wlf_ref, wle_ref, bl_ref,
                o_ref):
    # cast activations to bf16 in-kernel (x arrives as f32; D=32 so this is cheap)
    x = x_ref[...].astype(jnp.bfloat16)

    # features = x @ We + be                      (TM, F)  -- f32 accumulation
    feat = jnp.dot(x, we_ref[...],
                   preferred_element_type=jnp.float32) + be_ref[...]

    # enhancements = tanh(features) @ Wh + bh     (TM, E)
    enh = jnp.dot(jnp.tanh(feat).astype(jnp.bfloat16), wh_ref[...],
                  preferred_element_type=jnp.float32) + bh_ref[...]

    # linear over Z = cat(feat, enh): the linear weight is pre-split so the
    # concat never materializes:  Z @ Wl.T = feat @ Wl_f + enh @ Wl_e
    z = (jnp.dot(feat.astype(jnp.bfloat16), wlf_ref[...],
                 preferred_element_type=jnp.float32)
         + jnp.dot(enh.astype(jnp.bfloat16), wle_ref[...],
                   preferred_element_type=jnp.float32)
         + bl_ref[...])

    # bf16 writeback (lane-dense Op=128 slab); upcast + slice happen outside.
    o_ref[...] = jax.nn.sigmoid(z).astype(o_ref.dtype)


# ----------------------------------------------------------------------------
# parameter construction (mirrors the torch __init__) and one-time prep
# ----------------------------------------------------------------------------
def init_params(key, input_dims, output_dims, feature_dims=64, enhancement_dims=1024):
    k1, k2, k3, k4 = jax.random.split(key, 4)
    We = jax.random.uniform(k1, (input_dims, feature_dims), jnp.float32) * 0.1 - 0.05
    be = jnp.ones((1, feature_dims), jnp.float32) * 0.01
    Wh = jax.random.uniform(k2, (feature_dims, enhancement_dims), jnp.float32) * 0.1 - 0.05
    bh = jnp.ones((1, enhancement_dims), jnp.float32) * 0.01
    fan_in = feature_dims + enhancement_dims
    bound = 1.0 / float(fan_in) ** 0.5                      # torch nn.Linear default init
    Wl = jax.random.uniform(k3, (output_dims, fan_in), jnp.float32, -bound, bound)
    bl = jax.random.uniform(k4, (output_dims,), jnp.float32, -bound, bound)
    return dict(We=We, be=be, Wh=Wh, bh=bh, Wl=Wl, bl=bl)


def prepare_params(params):
    """Transpose / split / pad / bf16-convert the weights ONCE (not per call).

    Only the OUTPUT dim is lane-padded to 128 (lane-dense stores); the
    contracting dim D is left untouched (full-extent block)."""
    We, be, Wh, bh, Wl, bl = (params[k] for k in ('We', 'be', 'Wh', 'bh', 'Wl', 'bl'))
    D, F = We.shape
    E = Wh.shape[1]
    O = Wl.shape[0]
    Op = _round_up(O, 128)          # lane-dense output dim

    We_b = We.astype(jnp.bfloat16)                          # (D, F), no padding
    Wh_b = Wh.astype(jnp.bfloat16)                          # (F, E)
    # split the linear weight: Z @ Wl.T == feat @ Wl[:, :F].T + enh @ Wl[:, F:].T
    Wl_f = jnp.zeros((F, Op), jnp.bfloat16).at[:, :O].set(Wl[:, :F].T.astype(jnp.bfloat16))
    Wl_e = jnp.zeros((E, Op), jnp.bfloat16).at[:, :O].set(Wl[:, F:].T.astype(jnp.bfloat16))
    bl_p = jnp.zeros((1, Op), jnp.float32).at[0, :O].set(bl)

    return dict(We=We_b, be=be, Wh=Wh_b, bh=bh, Wlf=Wl_f, Wle=Wl_e, bl=bl_p)


# ----------------------------------------------------------------------------
# forward
# ----------------------------------------------------------------------------
@functools.partial(jax.jit, static_argnames=('output_dims',))
def bls_forward(prepped, x, *, output_dims):
    # torch: input.squeeze(0)
    if x.ndim == 3:
        x = x[0]
    N, D = x.shape
    F = prepped['We'].shape[1]
    E = prepped['Wh'].shape[1]
    Op = prepped['bl'].shape[1]

    TM = _pick_tm(N, _num_tensorcores())
    Mp = _round_up(N, TM)
    if Mp != N:                                   # bounded padding (<16 rows typical)
        x = jnp.pad(x, ((0, Mp - N), (0, 0)))

    # honest VMEM budget: double-buffered x/out tiles, weights (default
    # double-buffered by the pipeline), biases, plus the compiler-managed
    # f32/bf16 intermediates of the fused body, plus slack.
    weight_bytes = (D * F + F * E + F * Op + E * Op) * 2 + (F + E + Op) * 4
    x_tile_bytes = TM * D * 4
    out_tile_bytes = TM * Op * 2
    interm_bytes = TM * (D * 2 + F * 10 + E * 6 + Op * 4)
    vmem_budget = int(min(32 * 1024 * 1024,
                          2 * (x_tile_bytes + out_tile_bytes)
                          + 2 * weight_bytes + interm_bytes + 4 * 1024 * 1024))

    out = pl.pallas_call(
        _bls_kernel,
        out_shape=jax.ShapeDtypeStruct((Mp, Op), jnp.bfloat16),
        grid_spec=pltpu.PrefetchScalarGridSpec(
            num_scalar_prefetch=0,
            grid=(Mp // TM,),
            in_specs=[
                pl.BlockSpec((TM, D), lambda i: (i, 0)),    # x tile (f32, cast in-kernel)
                pl.BlockSpec((D, F), lambda i: (0, 0)),     # We
                pl.BlockSpec((1, F), lambda i: (0, 0)),     # be
                pl.BlockSpec((F, E), lambda i: (0, 0)),     # Wh
                pl.BlockSpec((1, E), lambda i: (0, 0)),     # bh
                pl.BlockSpec((F, Op), lambda i: (0, 0)),    # Wl (features part, transposed)
                pl.BlockSpec((E, Op), lambda i: (0, 0)),    # Wl (enhancement part, transposed)
                pl.BlockSpec((1, Op), lambda i: (0, 0)),    # bl
            ],
            out_specs=pl.BlockSpec((TM, Op), lambda i: (i, 0)),
        ),
        compiler_params=pltpu.CompilerParams(
            dimension_semantics=("parallel",),
            vmem_limit_bytes=vmem_budget,
        ),
    )(x, prepped['We'], prepped['be'], prepped['Wh'], prepped['bh'],
      prepped['Wlf'], prepped['Wle'], prepped['bl'])

    return out[:N, :output_dims].astype(jnp.float32)


# pure-JAX f32 reference (matches the torch forward; `self.bn` typo -> bh)
def bls_reference(params, x):
    x = x[0]
    hp = jax.lax.Precision.HIGHEST
    feat = jnp.matmul(x, params['We'], precision=hp) + params['be']
    enh = jnp.matmul(jnp.tanh(feat), params['Wh'], precision=hp) + params['bh']
    Z = jnp.concatenate([feat, enh], axis=1)
    return jax.nn.sigmoid(jnp.matmul(Z, params['Wl'].T, precision=hp) + params['bl'])


# ----------------------------------------------------------------------------
if __name__ == "__main__":
    # BLS(input_dims=32, output_dims=10) with default feature/enhancement dims.
    INPUT_DIMS = 32
    OUTPUT_DIMS = 10
    N_SAMPLES = 256           # rows after input.squeeze(0)

    key = jax.random.PRNGKey(0)
    kp, kx = jax.random.split(key)
    params = init_params(kp, INPUT_DIMS, OUTPUT_DIMS)
    prepped = prepare_params(params)

    # input shaped (1, N, D) like the torch module expects before squeeze(0)
    x = jax.random.normal(kx, (1, N_SAMPLES, INPUT_DIMS), jnp.float32)

    out = bls_forward(prepped, x, output_dims=OUTPUT_DIMS)
    out = jax.block_until_ready(out)

    assert out.shape == (N_SAMPLES, OUTPUT_DIMS), out.shape
    assert bool(jnp.all(jnp.isfinite(out)))

    # correctness vs. f32 reference (bf16 MXU inputs + bf16 writeback -> loose tol)
    ref = jax.block_until_ready(bls_reference(params, x))
    max_err = float(jnp.max(jnp.abs(out - ref)))
    assert max_err < 2e-2, f"max abs err {max_err}"

    print("KERNEL_OK")
</pallas_src>

<mosaic_0001>
module attributes {stable_mosaic.version = 11 : i64} {
  func.func @_bls_kernel(%arg0: i32, %arg1: memref<256x32xf32, #tpu.memory_space<vmem>>, %arg2: memref<32x64xbf16, #tpu.memory_space<vmem>>, %arg3: memref<1x64xf32, #tpu.memory_space<vmem>>, %arg4: memref<64x1024xbf16, #tpu.memory_space<vmem>>, %arg5: memref<1x1024xf32, #tpu.memory_space<vmem>>, %arg6: memref<64x128xbf16, #tpu.memory_space<vmem>>, %arg7: memref<1024x128xbf16, #tpu.memory_space<vmem>>, %arg8: memref<1x128xf32, #tpu.memory_space<vmem>>, %arg9: memref<256x128xbf16, #tpu.memory_space<vmem>>) attributes {dimension_semantics = [#tpu.dimension_semantics<parallel>], iteration_bounds = array<i64: 1>, scalar_prefetch = 0 : i64, scratch_operands = 0 : i64, tpu.core_type = #tpu.core_type<tc>, window_params = [{transform_indices = @transform_0, window_bounds = array<i64: 256, 32>}, {pipeline_mode = #tpu.pipeline_mode<synchronous>, transform_indices = @transform_1, window_bounds = array<i64: 32, 64>}, {pipeline_mode = #tpu.pipeline_mode<synchronous>, transform_indices = @transform_2, window_bounds = array<i64: 1, 64>}, {pipeline_mode = #tpu.pipeline_mode<synchronous>, transform_indices = @transform_3, window_bounds = array<i64: 64, 1024>}, {pipeline_mode = #tpu.pipeline_mode<synchronous>, transform_indices = @transform_4, window_bounds = array<i64: 1, 1024>}, {pipeline_mode = #tpu.pipeline_mode<synchronous>, transform_indices = @transform_5, window_bounds = array<i64: 64, 128>}, {pipeline_mode = #tpu.pipeline_mode<synchronous>, transform_indices = @transform_6, window_bounds = array<i64: 1024, 128>}, {pipeline_mode = #tpu.pipeline_mode<synchronous>, transform_indices = @transform_7, window_bounds = array<i64: 1, 128>}, {transform_indices = @transform_8, window_bounds = array<i64: 256, 128>}]} {
    %c0 = arith.constant 0 : index
    %c0_0 = arith.constant 0 : index
    %0 = vector.load %arg1[%c0, %c0_0] : memref<256x32xf32, #tpu.memory_space<vmem>>, vector<256x32xf32>
    %1 = arith.truncf %0 : vector<256x32xf32> to vector<256x32xbf16>
    %c0_1 = arith.constant 0 : index
    %c0_2 = arith.constant 0 : index
    %2 = vector.load %arg2[%c0_1, %c0_2] : memref<32x64xbf16, #tpu.memory_space<vmem>>, vector<32x64xbf16>
    %cst = arith.constant dense<0.000000e+00> : vector<256x64xf32>
    %3 = tpu.matmul %1, %2, %cst {dimension_numbers = #tpu.dot_dimension_numbers<[1], [0], [0], [1], [0, 0, 1, 1], [], []>} : vector<256x32xbf16>, vector<32x64xbf16>, vector<256x64xf32> -> vector<256x64xf32>
    %c0_3 = arith.constant 0 : index
    %c0_4 = arith.constant 0 : index
    %4 = vector.load %arg3[%c0_3, %c0_4] : memref<1x64xf32, #tpu.memory_space<vmem>>, vector<1x64xf32>
    %5 = vector.broadcast %4 : vector<1x64xf32> to vector<256x64xf32>
    %6 = arith.addf %3, %5 : vector<256x64xf32>
    %7 = math.tanh %6 : vector<256x64xf32>
    %8 = arith.truncf %7 : vector<256x64xf32> to vector<256x64xbf16>
    %c0_5 = arith.constant 0 : index
    %c0_6 = arith.constant 0 : index
    %9 = vector.load %arg4[%c0_5, %c0_6] : memref<64x1024xbf16, #tpu.memory_space<vmem>>, vector<64x1024xbf16>
    %cst_7 = arith.constant dense<0.000000e+00> : vector<256x1024xf32>
    %10 = tpu.matmul %8, %9, %cst_7 {dimension_numbers = #tpu.dot_dimension_numbers<[1], [0], [0], [1], [0, 0, 1, 1], [], []>} : vector<256x64xbf16>, vector<64x1024xbf16>, vector<256x1024xf32> -> vector<256x1024xf32>
    %c0_8 = arith.constant 0 : index
    %c0_9 = arith.constant 0 : index
    %11 = vector.load %arg5[%c0_8, %c0_9] : memref<1x1024xf32, #tpu.memory_space<vmem>>, vector<1x1024xf32>
    %12 = vector.broadcast %11 : vector<1x1024xf32> to vector<256x1024xf32>
    %13 = arith.addf %10, %12 : vector<256x1024xf32>
    %14 = arith.truncf %6 : vector<256x64xf32> to vector<256x64xbf16>
    %c0_10 = arith.constant 0 : index
    %c0_11 = arith.constant 0 : index
    %15 = vector.load %arg6[%c0_10, %c0_11] : memref<64x128xbf16, #tpu.memory_space<vmem>>, vector<64x128xbf16>
    %cst_12 = arith.constant dense<0.000000e+00> : vector<256x128xf32>
    %16 = tpu.matmul %14, %15, %cst_12 {dimension_numbers = #tpu.dot_dimension_numbers<[1], [0], [0], [1], [0, 0, 1, 1], [], []>} : vector<256x64xbf16>, vector<64x128xbf16>, vector<256x128xf32> -> vector<256x128xf32>
    %17 = arith.truncf %13 : vector<256x1024xf32> to vector<256x1024xbf16>
    %c0_13 = arith.constant 0 : index
    %c0_14 = arith.constant 0 : index
    %18 = vector.load %arg7[%c0_13, %c0_14] : memref<1024x128xbf16, #tpu.memory_space<vmem>>, vector<1024x128xbf16>
    %cst_15 = arith.constant dense<0.000000e+00> : vector<256x128xf32>
    %19 = tpu.matmul %17, %18, %cst_15 {dimension_numbers = #tpu.dot_dimension_numbers<[1], [0], [0], [1], [0, 0, 1, 1], [], []>} : vector<256x1024xbf16>, vector<1024x128xbf16>, vector<256x128xf32> -> vector<256x128xf32>
    %20 = arith.addf %16, %19 : vector<256x128xf32>
    %c0_16 = arith.constant 0 : index
    %c0_17 = arith.constant 0 : index
    %21 = vector.load %arg8[%c0_16, %c0_17] : memref<1x128xf32, #tpu.memory_space<vmem>>, vector<1x128xf32>
    %22 = vector.broadcast %21 : vector<1x128xf32> to vector<256x128xf32>
    %23 = arith.addf %20, %22 : vector<256x128xf32>
    %24 = arith.negf %23 : vector<256x128xf32>
    %25 = math.exp %24 : vector<256x128xf32>
    %cst_18 = arith.constant 1.000000e+00 : f32
    %26 = vector.broadcast %cst_18 : f32 to vector<256x128xf32>
    %27 = arith.addf %26, %25 : vector<256x128xf32>
    %28 = arith.divf %26, %27 : vector<256x128xf32>
    %29 = arith.truncf %28 : vector<256x128xf32> to vector<256x128xbf16>
    %c0_19 = arith.constant 0 : index
    %c0_20 = arith.constant 0 : index
    %30 = vector.load %arg9[%c0_19, %c0_20] : memref<256x128xbf16, #tpu.memory_space<vmem>>, vector<256x128xbf16>
    tpu.vector_store %arg9[%c0_19, %c0_20], %29 {strides = array<i32>} : memref<256x128xbf16, #tpu.memory_space<vmem>>, vector<256x128xbf16>,
    return
  }
  func.func @transform_0(%arg0: i32) -> (i32, i32) {
    %c0_i32 = arith.constant 0 : i32
    %c0_i32_0 = arith.constant 0 : i32
    return %arg0, %c0_i32 : i32, i32
  }
  func.func @transform_1(%arg0: i32) -> (i32, i32) {
    %c0_i32 = arith.constant 0 : i32
    %c0_i32_0 = arith.constant 0 : i32
    %c0_i32_1 = arith.constant 0 : i32
    return %c0_i32, %c0_i32_0 : i32, i32
  }
  func.func @transform_2(%arg0: i32) -> (i32, i32) {
    %c0_i32 = arith.constant 0 : i32
    %c0_i32_0 = arith.constant 0 : i32
    %c0_i32_1 = arith.constant 0 : i32
    return %c0_i32, %c0_i32_0 : i32, i32
  }
  func.func @transform_3(%arg0: i32) -> (i32, i32) {
    %c0_i32 = arith.constant 0 : i32
    %c0_i32_0 = arith.constant 0 : i32
    %c0_i32_1 = arith.constant 0 : i32
    return %c0_i32, %c0_i32_0 : i32, i32
  }
  func.func @transform_4(%arg0: i32) -> (i32, i32) {
    %c0_i32 = arith.constant 0 : i32
    %c0_i32_0 = arith.constant 0 : i32
    %c0_i32_1 = arith.constant 0 : i32
    return %c0_i32, %c0_i32_0 : i32, i32
  }
  func.func @transform_5(%arg0: i32) -> (i32, i32) {
    %c0_i32 = arith.constant 0 : i32
    %c0_i32_0 = arith.constant 0 : i32
    %c0_i32_1 = arith.constant 0 : i32
    return %c0_i32, %c0_i32_0 : i32, i32
  }
  func.func @transform_6(%arg0: i32) -> (i32, i32) {
    %c0_i32 = arith.constant 0 : i32
    %c0_i32_0 = arith.constant 0 : i32
    %c0_i32_1 = arith.constant 0 : i32
    return %c0_i32, %c0_i32_0 : i32, i32
  }
  func.func @transform_7(%arg0: i32) -> (i32, i32) {
    %c0_i32 = arith.constant 0 : i32
    %c0_i32_0 = arith.constant 0 : i32
    %c0_i32_1 = arith.constant 0 : i32
    return %c0_i32, %c0_i32_0 : i32, i32
  }
  func.func @transform_8(%arg0: i32) -> (i32, i32) {
    %c0_i32 = arith.constant 0 : i32
    %c0_i32_0 = arith.constant 0 : i32
    return %arg0, %c0_i32 : i32, i32
  }
}

</mosaic_0001>

<llo_original>
// kernel: bls_forward.1
$region0: #{bls_forward.1}
  #allocation0 [shape = 'u32[]', space=smem, size = 0x4, offset = 0x4, fixed_abs, tag = 'smem constant byte address 0x4 - core index']
  #allocation1 [shape = 'u32[144,128]{1,0:T(1,128)}', space=vmem, size = 0x12000, scoped, tag = 'internal scratch']
  %s0 = inlined_call_operand.vmem [shape: f32[256,32], index: 0, kind: input, shape index: {}]
  %s1 = inlined_call_operand.vmem [shape: bf16[32,64], index: 1, kind: input, shape index: {}]
  %s2 = inlined_call_operand.vmem [shape: f32[1,64], index: 2, kind: input, shape index: {}]
  %s3 = inlined_call_operand.vmem [shape: bf16[64,1024], index: 3, kind: input, shape index: {}]
  %s4 = inlined_call_operand.vmem [shape: f32[1,1024], index: 4, kind: input, shape index: {}]
  %s5 = inlined_call_operand.vmem [shape: bf16[64,128], index: 5, kind: input, shape index: {}]
  %s6 = inlined_call_operand.hbm [shape: bf16[1024,128], index: 6, kind: input, shape index: {}]
  %s7 = inlined_call_operand.vmem [shape: f32[1,128], index: 7, kind: input, shape index: {}]
  %s8 = inlined_call_operand.vmem [shape: bf16[256,128], index: 8, kind: output, shape index: {}]
  %s9 = sld [smem:[#allocation0]]
  $region46: #{bls_forward.1} parent=0
    _
  %s11 = ssub.s32 1, %s9
  %s12 = scalar_select 0, %s11, %s9
  $region1: #{bls_forward.1} parent=0
    #allocation2 [shape = 'u8[262144]{0}', space=vmem, size = 0x40000, scoped, tag = 'input window, operand 6, single buffered']
    #allocation3 [shape = 's32[1]{0}', space=sflag, size = 0x4, scoped, tag = 'scoped memory for bls_forward.1']
    %13 = vsyncpa [#allocation3], 0
    // Predicated region
    $region2: #{bls_forward.1} parent=1 // pred_check
      _
    $region3: #{bls_forward.1} parent=1 // pred_check_branch
      %15 = sbr.rel (0) target = $region5
    $region4: #{bls_forward.1} parent=1 // pred_region
      _
    $region5: #{bls_forward.1} parent=1 // pred_fallthru
      _
    // Predicated region
    $region6: #{bls_forward.1} parent=1 // pred_check
      _
    $region7: #{bls_forward.1} parent=1 // pred_check_branch
      %17 = sbr.rel (0) target = $region9
    $region8: #{bls_forward.1} parent=1 // pred_region
      _
    $region9: #{bls_forward.1} parent=1 // pred_fallthru
      _
    // Predicated region
    $region10: #{bls_forward.1} parent=1 // pred_check
      _
    $region11: #{bls_forward.1} parent=1 // pred_check_branch
      %19 = sbr.rel (0) target = $region13
    $region12: #{bls_forward.1} parent=1 // pred_region
      _
    $region13: #{bls_forward.1} parent=1 // pred_fallthru
      _
    // Predicated region
    $region14: #{bls_forward.1} parent=1 // pred_check
      _
    $region15: #{bls_forward.1} parent=1 // pred_check_branch
      %21 = sbr.rel (0) target = $region17
    $region16: #{bls_forward.1} parent=1 // pred_region
      _
    $region17: #{bls_forward.1} parent=1 // pred_fallthru
      _
    // Predicated region
    $region18: #{bls_forward.1} parent=1 // pred_check
      _
    $region19: #{bls_forward.1} parent=1 // pred_check_branch
      %23 = sbr.rel (0) target = $region21
    $region20: #{bls_forward.1} parent=1 // pred_region
      _
    $region21: #{bls_forward.1} parent=1 // pred_fallthru
      _
    // Predicated region
    $region22: #{bls_forward.1} parent=1 // pred_check
      _
    $region23: #{bls_forward.1} parent=1 // pred_check_branch
      %25 = sbr.rel (0) target = $region25
    $region24: #{bls_forward.1} parent=1 // pred_region
      _
    $region25: #{bls_forward.1} parent=1 // pred_fallthru
      _
    // Predicated region
    $region26: #{bls_forward.1} parent=1 // pred_check
      _
    $region27: #{bls_forward.1} parent=1 // pred_check_branch
      %27 = sbr.rel (0) target = $region29
    $region28: #{bls_forward.1} parent=1 // pred_region
      %s29 = ssub.s32 8192, 8192
      %30 = vsyncadd [#allocation3], %s29
      %s31 = sshll.u32 [#allocation2], 4
      %s32 = int_to_ptr.vmem [resolvable:$true] %s31
      %37 = dma.hbm_to_vmem [thread:$0]  %s6, 8192, %s32, [#allocation3], 64, 64, 4
    $region29: #{bls_forward.1} parent=1 // pred_fallthru
      _
    // Predicated region
    $region30: #{bls_forward.1} parent=1 // pred_check
      _
    $region31: #{bls_forward.1} parent=1 // pred_check_branch
      %39 = sbr.rel (0) target = $region33
    $region32: #{bls_forward.1} parent=1 // pred_region
      _
    $region33: #{bls_forward.1} parent=1 // pred_fallthru
      _
    // Predicated region
    $region34: #{bls_forward.1} parent=1 // pred_check
      _
    $region35: #{bls_forward.1} parent=1 // pred_check_branch
      %41 = sbr.rel (0) target = $region37
    $region36: #{bls_forward.1} parent=1 // pred_region
      %42 = dma.done [#allocation3], 8192
    $region37: #{bls_forward.1} parent=1 // pred_fallthru
      _
    %v44 = vld [vmem:[%s0] sm:$0xff]
    %v45 = vld [vmem:[%s0 + $0x8] sm:$0xff]
    %v46 = vld [vmem:[%s0 + $0x10] sm:$0xff]
    %v47 = vld [vmem:[%s0 + $0x18] sm:$0xff]
    %v48 = vld [vmem:[%s0 + $0x20] sm:$0xff]
    %v49 = vld [vmem:[%s0 + $0x28] sm:$0xff]
    %v50 = vld [vmem:[%s0 + $0x30] sm:$0xff]
    %v51 = vld [vmem:[%s0 + $0x38] sm:$0xff]
    %v52 = vld [vmem:[%s0 + $0x40] sm:$0xff]
    %v53 = vld [vmem:[%s0 + $0x48] sm:$0xff]
    %v54 = vld [vmem:[%s0 + $0x50] sm:$0xff]
    %v55 = vld [vmem:[%s0 + $0x58] sm:$0xff]
    %v56 = vld [vmem:[%s0 + $0x60] sm:$0xff]
    %v57 = vld [vmem:[%s0 + $0x68] sm:$0xff]
    %v58 = vld [vmem:[%s0 + $0x70] sm:$0xff]
    %v59 = vld [vmem:[%s0 + $0x78] sm:$0xff]
    %v60 = vld [vmem:[%s0 + $0x80] sm:$0xff]
    %v61 = vld [vmem:[%s0 + $0x88] sm:$0xff]
    %v62 = vld [vmem:[%s0 + $0x90] sm:$0xff]
    %v63 = vld [vmem:[%s0 + $0x98] sm:$0xff]
    %v64 = vld [vmem:[%s0 + $0xa0] sm:$0xff]
    %v65 = vld [vmem:[%s0 + $0xa8] sm:$0xff]
    %v66 = vld [vmem:[%s0 + $0xb0] sm:$0xff]
    %v67 = vld [vmem:[%s0 + $0xb8] sm:$0xff]
    %v68 = vld [vmem:[%s0 + $0xc0] sm:$0xff]
    %v69 = vld [vmem:[%s0 + $0xc8] sm:$0xff]
    %v70 = vld [vmem:[%s0 + $0xd0] sm:$0xff]
    %v71 = vld [vmem:[%s0 + $0xd8] sm:$0xff]
    %v72 = vld [vmem:[%s0 + $0xe0] sm:$0xff]
    %v73 = vld [vmem:[%s0 + $0xe8] sm:$0xff]
    %v74 = vld [vmem:[%s0 + $0xf0] sm:$0xff]
    %v75 = vld [vmem:[%s0 + $0xf8] sm:$0xff]
    %v76 = vpack.c.bf16 %v45, %v44
    %v77 = vpack.c.bf16 %v47, %v46
    %v78 = vpack.c.bf16 %v49, %v48
    %v79 = vpack.c.bf16 %v51, %v50
    %v80 = vpack.c.bf16 %v53, %v52
    %v81 = vpack.c.bf16 %v55, %v54
    %v82 = vpack.c.bf16 %v57, %v56
    %v83 = vpack.c.bf16 %v59, %v58
    %v84 = vpack.c.bf16 %v61, %v60
    %v85 = vpack.c.bf16 %v63, %v62
    %v86 = vpack.c.bf16 %v65, %v64
    %v87 = vpack.c.bf16 %v67, %v66
    %v88 = vpack.c.bf16 %v69, %v68
    %v89 = vpack.c.bf16 %v71, %v70
    %v90 = vpack.c.bf16 %v73, %v72
    %v91 = vpack.c.bf16 %v75, %v74
    %v92 = vld [vmem:[%s1] sm:$0xf]
    %v93 = vld [vmem:[%s1 + $0x4] sm:$0xf]
    %v94 = vld [vmem:[%s1 + $0x8] sm:$0xf]
    %v95 = vld [vmem:[%s1 + $0xc] sm:$0xf]
    %v96 = vld [vmem:[%s2] sm:$0x1]
    %v98 = vlaneseq
    %v99 = vshrl.u32 %v98, 7
    %v100 = vsub.s32 0, %v99
    %v101 = vrot.slane %v96, %v100
    %v107 = vunpack.c.l.b16 %v92
    %v108 = vunpack.c.l.b16 %v93
    %v109 = vunpack.c.l.b16 %v94
    %v110 = vunpack.c.l.b16 %v95
    %v111 = vpack.c.b16 %v108, %v107
    %v112 = vpack.c.b16 %v110, %v109
    %vm115 = vcmask 261120
    %v117 = vsel %vm115, %v76, 0
    %v120 = vsel %vm115, %v77, 0
    %v123 = vsel %vm115, %v78, 0
    %v126 = vsel %vm115, %v79, 0
    %v129 = vsel %vm115, %v80, 0
    %v132 = vsel %vm115, %v81, 0
    %v135 = vsel %vm115, %v82, 0
    %v138 = vsel %vm115, %v83, 0
    %v141 = vsel %vm115, %v84, 0
    %v144 = vsel %vm115, %v85, 0
    %v147 = vsel %vm115, %v86, 0
    %v150 = vsel %vm115, %v87, 0
    %v153 = vsel %vm115, %v88, 0
    %v156 = vsel %vm115, %v89, 0
    %v159 = vsel %vm115, %v90, 0
    %v162 = vsel %vm115, %v91, 0
    %164 = vmatprep.subr.bf16.mxu0 0
    %165 = vmatpush1.bf16.msra.mxu0 %v111
    %166 = vmatprep.subr.bf16.mxu0 0
    %167 = vmatpush1.bf16.msra.mxu0 %v112
    %168 = vmatprep.subr.bf16.mxu0 0
    %169 = vmatpush1.bf16.msra.mxu0 0
    %170 = vmatprep.subr.bf16.mxu0 0
    %171 = vmatpush1.bf16.msra.mxu0 0
    %172 = vmatprep.subr.bf16.mxu0 0
    %173 = vmatpush1.bf16.msra.mxu0 0
    %174 = vmatprep.subr.bf16.mxu0 0
    %175 = vmatpush1.bf16.msra.mxu0 0
    %176 = vmatprep.subr.bf16.mxu0 0
    %177 = vmatpush1.bf16.msra.mxu0 0
    %178 = vmatprep.subr.bf16.mxu0 0
    %179 = vmatpush1.bf16.msra.mxu0 0
    %180 = vmatprep.subr.bf16.mxu0 0
    %181 = vmatpush1.bf16.msra.mxu0 0
    %182 = vmatprep.subr.bf16.mxu0 0
    %183 = vmatpush1.bf16.msra.mxu0 0
    %184 = vmatprep.subr.bf16.mxu0 0
    %185 = vmatpush1.bf16.msra.mxu0 0
    %186 = vmatprep.subr.bf16.mxu0 0
    %187 = vmatpush1.bf16.msra.mxu0 0
    %188 = vmatprep.subr.bf16.mxu0 0
    %189 = vmatpush1.bf16.msra.mxu0 0
    %190 = vmatprep.subr.bf16.mxu0 0
    %191 = vmatpush1.bf16.msra.mxu0 0
    %192 = vmatprep.subr.bf16.mxu0 0
    %193 = vmatpush1.bf16.msra.mxu0 0
    %194 = vmatprep.subr.bf16.mxu0 0
    %195 = vmatpush1.bf16.msra.mxu0 0
    %196 = vmatprep.mubr.bf16.mxu0 0
    %197 = vmatmul.mubr.bf16.gmra.mrb[0].mxu0 %v117
    %v198 = vpop.f32.mrb[0].mxu0
    %v199 = vadd.f32 %v101, %v198
    %v200 = vpop.f32.mrb[0].mxu0
    %v201 = vpop.f32.mrb[0].mxu0
    %v202 = vadd.f32 %v101, %v201
    %v203 = vpop.f32.mrb[0].mxu0
    %204 = vmatprep.mubr.bf16.mxu0 0
    %205 = vmatmul.mubr.bf16.gmra.mrb[0].mxu0 %v120
    %v206 = vpop.f32.mrb[0].mxu0
    %v207 = vadd.f32 %v101, %v206
    %v208 = vpop.f32.mrb[0].mxu0
    %v209 = vpop.f32.mrb[0].mxu0
    %v210 = vadd.f32 %v101, %v209
    %v211 = vpop.f32.mrb[0].mxu0
    %212 = vmatprep.mubr.bf16.mxu0 0
    %213 = vmatmul.mubr.bf16.gmra.mrb[0].mxu0 %v123
    %v214 = vpop.f32.mrb[0].mxu0
    %v215 = vadd.f32 %v101, %v214
    %v216 = vpop.f32.mrb[0].mxu0
    %v217 = vpop.f32.mrb[0].mxu0
    %v218 = vadd.f32 %v101, %v217
    %v219 = vpop.f32.mrb[0].mxu0
    %220 = vmatprep.mubr.bf16.mxu0 0
    %221 = vmatmul.mubr.bf16.gmra.mrb[0].mxu0 %v126
    %v222 = vpop.f32.mrb[0].mxu0
    %v223 = vadd.f32 %v101, %v222
    %v224 = vpop.f32.mrb[0].mxu0
    %v225 = vpop.f32.mrb[0].mxu0
    %v226 = vadd.f32 %v101, %v225
    %v227 = vpop.f32.mrb[0].mxu0
    %228 = vmatprep.mubr.bf16.mxu0 0
    %229 = vmatmul.mubr.bf16.gmra.mrb[0].mxu0 %v129
    %v230 = vpop.f32.mrb[0].mxu0
    %v231 = vadd.f32 %v101, %v230
    %v232 = vpop.f32.mrb[0].mxu0
    %v233 = vpop.f32.mrb[0].mxu0
    %v234 = vadd.f32 %v101, %v233
    %v235 = vpop.f32.mrb[0].mxu0
    %236 = vmatprep.mubr.bf16.mxu0 0
    %237 = vmatmul.mubr.bf16.gmra.mrb[0].mxu0 %v132
    %v238 = vpop.f32.mrb[0].mxu0
    %v239 = vadd.f32 %v101, %v238
    %v240 = vpop.f32.mrb[0].mxu0
    %v241 = vpop.f32.mrb[0].mxu0
    %v242 = vadd.f32 %v101, %v241
    %v243 = vpop.f32.mrb[0].mxu0
    %244 = vmatprep.mubr.bf16.mxu0 0
    %245 = vmatmul.mubr.bf16.gmra.mrb[0].mxu0 %v135
    %v246 = vpop.f32.mrb[0].mxu0
    %v247 = vadd.f32 %v101, %v246
    %v248 = vpop.f32.mrb[0].mxu0
    %v249 = vpop.f32.mrb[0].mxu0
    %v250 = vadd.f32 %v101, %v249
    %v251 = vpop.f32.mrb[0].mxu0
    %252 = vmatprep.mubr.bf16.mxu0 0
    %253 = vmatmul.mubr.bf16.gmra.mrb[0].mxu0 %v138
    %v254 = vpop.f32.mrb[0].mxu0
    %v255 = vadd.f32 %v101, %v254
    %v256 = vpop.f32.mrb[0].mxu0
    %v257 = vpop.f32.mrb[0].mxu0
    %v258 = vadd.f32 %v101, %v257
    %v259 = vpop.f32.mrb[0].mxu0
    %260 = vmatprep.mubr.bf16.mxu0 0
    %261 = vmatmul.mubr.bf16.gmra.mrb[0].mxu0 %v141
    %v262 = vpop.f32.mrb[0].mxu0
    %v263 = vadd.f32 %v101, %v262
    %v264 = vpop.f32.mrb[0].mxu0
    %v265 = vpop.f32.mrb[0].mxu0
    %v266 = vadd.f32 %v101, %v265
    %v267 = vpop.f32.mrb[0].mxu0
    %268 = vmatprep.mubr.bf16.mxu0 0
    %269 = vmatmul.mubr.bf16.gmra.mrb[0].mxu0 %v144
    %v270 = vpop.f32.mrb[0].mxu0
    %v271 = vadd.f32 %v101, %v270
    %v272 = vpop.f32.mrb[0].mxu0
    %v273 = vpop.f32.mrb[0].mxu0
    %v274 = vadd.f32 %v101, %v273
    %v275 = vpop.f32.mrb[0].mxu0
    %276 = vmatprep.mubr.bf16.mxu0 0
    %277 = vmatmul.mubr.bf16.gmra.mrb[0].mxu0 %v147
    %v278 = vpop.f32.mrb[0].mxu0
    %v279 = vadd.f32 %v101, %v278
    %v280 = vpop.f32.mrb[0].mxu0
    %v281 = vpop.f32.mrb[0].mxu0
    %v282 = vadd.f32 %v101, %v281
    %v283 = vpop.f32.mrb[0].mxu0
    %284 = vmatprep.mubr.bf16.mxu0 0
    %285 = vmatmul.mubr.bf16.gmra.mrb[0].mxu0 %v150
    %v286 = vpop.f32.mrb[0].mxu0
    %v287 = vadd.f32 %v101, %v286
    %v288 = vpop.f32.mrb[0].mxu0
    %v289 = vpop.f32.mrb[0].mxu0
    %v290 = vadd.f32 %v101, %v289
    %v291 = vpop.f32.mrb[0].mxu0
    %292 = vmatprep.mubr.bf16.mxu0 0
    %293 = vmatmul.mubr.bf16.gmra.mrb[0].mxu0 %v153
    %v294 = vpop.f32.mrb[0].mxu0
    %v295 = vadd.f32 %v101, %v294
    %v296 = vpop.f32.mrb[0].mxu0
    %v297 = vpop.f32.mrb[0].mxu0
    %v298 = vadd.f32 %v101, %v297
    %v299 = vpop.f32.mrb[0].mxu0
    %300 = vmatprep.mubr.bf16.mxu0 0
    %301 = vmatmul.mubr.bf16.gmra.mrb[0].mxu0 %v156
    %v302 = vpop.f32.mrb[0].mxu0
    %v303 = vadd.f32 %v101, %v302
    %v304 = vpop.f32.mrb[0].mxu0
    %v305 = vpop.f32.mrb[0].mxu0
    %v306 = vadd.f32 %v101, %v305
    %v307 = vpop.f32.mrb[0].mxu0
    %308 = vmatprep.mubr.bf16.mxu0 0
    %309 = vmatmul.mubr.bf16.gmra.mrb[0].mxu0 %v159
    %v310 = vpop.f32.mrb[0].mxu0
    %v311 = vadd.f32 %v101, %v310
    %v312 = vpop.f32.mrb[0].mxu0
    %v313 = vpop.f32.mrb[0].mxu0
    %v314 = vadd.f32 %v101, %v313
    %v315 = vpop.f32.mrb[0].mxu0
    %316 = vmatprep.mubr.bf16.mxu0 0
    %317 = vmatmul.mubr.bf16.gmra.mrb[0].mxu0 %v162
    %v318 = vpop.f32.mrb[0].mxu0
    %v319 = vadd.f32 %v101, %v318
    %v320 = vpop.f32.mrb[0].mxu0
    %v321 = vpop.f32.mrb[0].mxu0
    %v322 = vadd.f32 %v101, %v321
    %v323 = vpop.f32.mrb[0].mxu0
    %324 = vdwg.mxu0
    %v325 = vtanh.pop %v199
    %v326 = vtanh.pop %v202
    %v327 = vtanh.pop %v207
    %v328 = vtanh.pop %v210
    %v329 = vtanh.pop %v215
    %v330 = vtanh.pop %v218
    %v331 = vtanh.pop %v223
    %v332 = vtanh.pop %v226
    %v333 = vtanh.pop %v231
    %v334 = vtanh.pop %v234
    %v335 = vtanh.pop %v239
    %v336 = vtanh.pop %v242
    %v337 = vtanh.pop %v247
    %v338 = vtanh.pop %v250
    %v339 = vtanh.pop %v255
    %v340 = vtanh.pop %v258
    %v341 = vtanh.pop %v263
    %v342 = vtanh.pop %v266
    %v343 = vtanh.pop %v271
    %v344 = vtanh.pop %v274
    %v345 = vtanh.pop %v279
    %v346 = vtanh.pop %v282
    %v347 = vtanh.pop %v287
    %v348 = vtanh.pop %v290
    %v349 = vtanh.pop %v295
    %v350 = vtanh.pop %v298
    %v351 = vtanh.pop %v303
    %v352 = vtanh.pop %v306
    %v353 = vtanh.pop %v311
    %v354 = vtanh.pop %v314
    %v355 = vtanh.pop %v319
    %v356 = vtanh.pop %v322
    %v357 = vpack.c.bf16 %v326, %v325
    %v358 = vpack.c.bf16 %v328, %v327
    %v359 = vpack.c.bf16 %v330, %v329
    %v360 = vpack.c.bf16 %v332, %v331
    %v361 = vpack.c.bf16 %v334, %v333
    %v362 = vpack.c.bf16 %v336, %v335
    %v363 = vpack.c.bf16 %v338, %v337
    %v364 = vpack.c.bf16 %v340, %v339
    %v365 = vpack.c.bf16 %v342, %v341
    %v366 = vpack.c.bf16 %v344, %v343
    %v367 = vpack.c.bf16 %v346, %v345
    %v368 = vpack.c.bf16 %v348, %v347
    %v369 = vpack.c.bf16 %v350, %v349
    %v370 = vpack.c.bf16 %v352, %v351
    %v371 = vpack.c.bf16 %v354, %v353
    %v372 = vpack.c.bf16 %v356, %v355
    %v373 = vld [vmem:[%s3] sm:$0xff]
    %v374 = vld [vmem:[%s3 + $0x8] sm:$0xff]
    %v375 = vld [vmem:[%s3 + $0x10] sm:$0xff]
    %v376 = vld [vmem:[%s3 + $0x18] sm:$0xff]
    %v377 = vld [vmem:[%s3 + $0x20] sm:$0xff]
    %v378 = vld [vmem:[%s3 + $0x28] sm:$0xff]
    %v379 = vld [vmem:[%s3 + $0x30] sm:$0xff]
    %v380 = vld [vmem:[%s3 + $0x38] sm:$0xff]
    %v381 = vld [vmem:[%s3 + $0x40] sm:$0xff]
    %v382 = vld [vmem:[%s3 + $0x48] sm:$0xff]
    %v383 = vld [vmem:[%s3 + $0x50] sm:$0xff]
    %v384 = vld [vmem:[%s3 + $0x58] sm:$0xff]
    %v385 = vld [vmem:[%s3 + $0x60] sm:$0xff]
    %v386 = vld [vmem:[%s3 + $0x68] sm:$0xff]
    %v387 = vld [vmem:[%s3 + $0x70] sm:$0xff]
    %v388 = vld [vmem:[%s3 + $0x78] sm:$0xff]
    %v389 = vld [vmem:[%s3 + $0x80] sm:$0xff]
    %v390 = vld [vmem:[%s3 + $0x88] sm:$0xff]
    %v391 = vld [vmem:[%s3 + $0x90] sm:$0xff]
    %v392 = vld [vmem:[%s3 + $0x98] sm:$0xff]
    %v393 = vld [vmem:[%s3 + $0xa0] sm:$0xff]
    %v394 = vld [vmem:[%s3 + $0xa8] sm:$0xff]
    %v395 = vld [vmem:[%s3 + $0xb0] sm:$0xff]
    %v396 = vld [vmem:[%s3 + $0xb8] sm:$0xff]
    %v397 = vld [vmem:[%s3 + $0xc0] sm:$0xff]
    %v398 = vld [vmem:[%s3 + $0xc8] sm:$0xff]
    %v399 = vld [vmem:[%s3 + $0xd0] sm:$0xff]
    %v400 = vld [vmem:[%s3 + $0xd8] sm:$0xff]
    %v401 = vld [vmem:[%s3 + $0xe0] sm:$0xff]
    %v402 = vld [vmem:[%s3 + $0xe8] sm:$0xff]
    %v403 = vld [vmem:[%s3 + $0xf0] sm:$0xff]
    %v404 = vld [vmem:[%s3 + $0xf8] sm:$0xff]
    %v405 = vld [vmem:[%s4] sm:$0xff]
    %v407 = vlaneseq
    %v408 = vshrl.u32 %v407, 7
    %v409 = vsub.s32 0, %v408
    %v410 = vrot.slane %v405, %v409
    %v411 = vlaneseq
    %v412 = vshrl.u32 %v411, 7
    %v413 = vsub.s32 1, %v412
    %v414 = vrot.slane %v405, %v413
    %v415 = vlaneseq
    %v416 = vshrl.u32 %v415, 7
    %v417 = vsub.s32 2, %v416
    %v418 = vrot.slane %v405, %v417
    %v419 = vlaneseq
    %v420 = vshrl.u32 %v419, 7
    %v421 = vsub.s32 3, %v420
    %v422 = vrot.slane %v405, %v421
    %v423 = vlaneseq
    %v424 = vshrl.u32 %v423, 7
    %v425 = vsub.s32 4, %v424
    %v426 = vrot.slane %v405, %v425
    %v427 = vlaneseq
    %v428 = vshrl.u32 %v427, 7
    %v429 = vsub.s32 5, %v428
    %v430 = vrot.slane %v405, %v429
    %v431 = vlaneseq
    %v432 = vshrl.u32 %v431, 7
    %v433 = vsub.s32 6, %v432
    %v434 = vrot.slane %v405, %v433
    %v435 = vlaneseq
    %v436 = vshrl.u32 %v435, 7
    %v437 = vsub.s32 7, %v436
    %v438 = vrot.slane %v405, %v437
    %v479 = vunpack.c.l.b16 %v373
    %v480 = vunpack.c.h.b16 %v373
    %v481 = vunpack.c.l.b16 %v374
    %v482 = vunpack.c.h.b16 %v374
    %v483 = vunpack.c.l.b16 %v375
    %v484 = vunpack.c.h.b16 %v375
    %v485 = vunpack.c.l.b16 %v376
    %v486 = vunpack.c.h.b16 %v376
    %v487 = vunpack.c.l.b16 %v377
    %v488 = vunpack.c.h.b16 %v377
    %v489 = vunpack.c.l.b16 %v378
    %v490 = vunpack.c.h.b16 %v378
    %v491 = vunpack.c.l.b16 %v379
    %v492 = vunpack.c.h.b16 %v379
    %v493 = vunpack.c.l.b16 %v380
    %v494 = vunpack.c.h.b16 %v380
    %v495 = vunpack.c.l.b16 %v381
    %v496 = vunpack.c.h.b16 %v381
    %v497 = vunpack.c.l.b16 %v382
    %v498 = vunpack.c.h.b16 %v382
    %v499 = vunpack.c.l.b16 %v383
    %v500 = vunpack.c.h.b16 %v383
    %v501 = vunpack.c.l.b16 %v384
    %v502 = vunpack.c.h.b16 %v384
    %v503 = vunpack.c.l.b16 %v385
    %v504 = vunpack.c.h.b16 %v385
    %v505 = vunpack.c.l.b16 %v386
    %v506 = vunpack.c.h.b16 %v386
    %v507 = vunpack.c.l.b16 %v387
    %v508 = vunpack.c.h.b16 %v387
    %v509 = vunpack.c.l.b16 %v388
    %v510 = vunpack.c.h.b16 %v388
    %v511 = vunpack.c.l.b16 %v389
    %v512 = vunpack.c.h.b16 %v389
    %v513 = vunpack.c.l.b16 %v390
    %v514 = vunpack.c.h.b16 %v390
    %v515 = vunpack.c.l.b16 %v391
    %v516 = vunpack.c.h.b16 %v391
    %v517 = vunpack.c.l.b16 %v392
    %v518 = vunpack.c.h.b16 %v392
    %v519 = vunpack.c.l.b16 %v393
    %v520 = vunpack.c.h.b16 %v393
    %v521 = vunpack.c.l.b16 %v394
    %v522 = vunpack.c.h.b16 %v394
    %v523 = vunpack.c.l.b16 %v395
    %v524 = vunpack.c.h.b16 %v395
    %v525 = vunpack.c.l.b16 %v396
    %v526 = vunpack.c.h.b16 %v396
    %v527 = vunpack.c.l.b16 %v397
    %v528 = vunpack.c.h.b16 %v397
    %v529 = vunpack.c.l.b16 %v398
    %v530 = vunpack.c.h.b16 %v398
    %v531 = vunpack.c.l.b16 %v399
    %v532 = vunpack.c.h.b16 %v399
    %v533 = vunpack.c.l.b16 %v400
    %v534 = vunpack.c.h.b16 %v400
    %v535 = vunpack.c.l.b16 %v401
    %v536 = vunpack.c.h.b16 %v401
    %v537 = vunpack.c.l.b16 %v402
    %v538 = vunpack.c.h.b16 %v402
    %v539 = vunpack.c.l.b16 %v403
    %v540 = vunpack.c.h.b16 %v403
    %v541 = vunpack.c.l.b16 %v404
    %v542 = vunpack.c.h.b16 %v404
    %v543 = vpack.c.b16 %v487, %v479
    %v544 = vpack.c.b16 %v488, %v480
    %v545 = vpack.c.b16 %v489, %v481
    %v546 = vpack.c.b16 %v490, %v482
    %v547 = vpack.c.b16 %v491, %v483
    %v548 = vpack.c.b16 %v492, %v484
    %v549 = vpack.c.b16 %v493, %v485
    %v550 = vpack.c.b16 %v494, %v486
    %v551 = vpack.c.b16 %v503, %v495
    %v552 = vpack.c.b16 %v504, %v496
    %v553 = vpack.c.b16 %v505, %v497
    %v554 = vpack.c.b16 %v506, %v498
    %v555 = vpack.c.b16 %v507, %v499
    %v556 = vpack.c.b16 %v508, %v500
    %v557 = vpack.c.b16 %v509, %v501
    %v558 = vpack.c.b16 %v510, %v502
    %v559 = vpack.c.b16 %v519, %v511
    %v560 = vpack.c.b16 %v520, %v512
    %v561 = vpack.c.b16 %v521, %v513
    %v562 = vpack.c.b16 %v522, %v514
    %v563 = vpack.c.b16 %v523, %v515
    %v564 = vpack.c.b16 %v524, %v516
    %v565 = vpack.c.b16 %v525, %v517
    %v566 = vpack.c.b16 %v526, %v518
    %v567 = vpack.c.b16 %v535, %v527
    %v568 = vpack.c.b16 %v536, %v528
    %v569 = vpack.c.b16 %v537, %v529
    %v570 = vpack.c.b16 %v538, %v530
    %v571 = vpack.c.b16 %v539, %v531
    %v572 = vpack.c.b16 %v540, %v532
    %v573 = vpack.c.b16 %v541, %v533
    %v574 = vpack.c.b16 %v542, %v534
    %vm607 = vcmask 523264
    %v609 = vsel %vm607, %v357, 0
    %v612 = vsel %vm607, %v358, 0
    %v615 = vsel %vm607, %v359, 0
    %v618 = vsel %vm607, %v360, 0
    %v621 = vsel %vm607, %v361, 0
    %v624 = vsel %vm607, %v362, 0
    %v627 = vsel %vm607, %v363, 0
    %v630 = vsel %vm607, %v364, 0
    %v633 = vsel %vm607, %v365, 0
    %v636 = vsel %vm607, %v366, 0
    %v639 = vsel %vm607, %v367, 0
    %v642 = vsel %vm607, %v368, 0
    %v645 = vsel %vm607, %v369, 0
    %v648 = vsel %vm607, %v370, 0
    %v651 = vsel %vm607, %v371, 0
    %v654 = vsel %vm607, %v372, 0
    %656 = vmatprep.subr.bf16.mxu0 %v544
    %657 = vmatpush1.bf16.msra.mxu0 %v543
    %658 = vmatprep.subr.bf16.mxu0 %v552
    %659 = vmatpush1.bf16.msra.mxu0 %v551
    %660 = vmatprep.subr.bf16.mxu0 %v560
    %661 = vmatpush1.bf16.msra.mxu0 %v559
    %662 = vmatprep.subr.bf16.mxu0 %v568
    %663 = vmatpush1.bf16.msra.mxu0 %v567
    %664 = vmatprep.subr.bf16.mxu0 0
    %665 = vmatpush1.bf16.msra.mxu0 0
    %666 = vmatprep.subr.bf16.mxu0 0
    %667 = vmatpush1.bf16.msra.mxu0 0
    %668 = vmatprep.subr.bf16.mxu0 0
    %669 = vmatpush1.bf16.msra.mxu0 0
    %670 = vmatprep.subr.bf16.mxu0 0
    %671 = vmatpush1.bf16.msra.mxu0 0
    %672 = vmatprep.subr.bf16.mxu0 0
    %673 = vmatpush1.bf16.msra.mxu0 0
    %674 = vmatprep.subr.bf16.mxu0 0
    %675 = vmatpush1.bf16.msra.mxu0 0
    %676 = vmatprep.subr.bf16.mxu0 0
    %677 = vmatpush1.bf16.msra.mxu0 0
    %678 = vmatprep.subr.bf16.mxu0 0
    %679 = vmatpush1.bf16.msra.mxu0 0
    %680 = vmatprep.subr.bf16.mxu0 0
    %681 = vmatpush1.bf16.msra.mxu0 0
    %682 = vmatprep.subr.bf16.mxu0 0
    %683 = vmatpush1.bf16.msra.mxu0 0
    %684 = vmatprep.subr.bf16.mxu0 0
    %685 = vmatpush1.bf16.msra.mxu0 0
    %686 = vmatprep.subr.bf16.mxu0 0
    %687 = vmatpush1.bf16.msra.mxu0 0
    %688 = vmatprep.mubr.bf16.mxu0 0
    %689 = vmatmul.mubr.bf16.gmra.mrb[0].mxu0 %v609
    %v690 = vpop.f32.mrb[0].mxu0
    %v691 = vadd.f32 %v410, %v690
    %v692 = vpop.f32.mrb[0].mxu0
    %v693 = vadd.f32 %v414, %v692
    %v694 = vpop.f32.mrb[0].mxu0
    %v695 = vadd.f32 %v410, %v694
    %v696 = vpop.f32.mrb[0].mxu0
    %v697 = vadd.f32 %v414, %v696
    %698 = vmatprep.mubr.bf16.mxu0 0
    %699 = vmatmul.mubr.bf16.gmra.mrb[0].mxu0 %v612
    %v700 = vpop.f32.mrb[0].mxu0
    %v701 = vadd.f32 %v410, %v700
    %v702 = vpop.f32.mrb[0].mxu0
    %v703 = vadd.f32 %v414, %v702
    %v704 = vpop.f32.mrb[0].mxu0
    %v705 = vadd.f32 %v410, %v704
    %v706 = vpop.f32.mrb[0].mxu0
    %v707 = vadd.f32 %v414, %v706
    %708 = vmatprep.mubr.bf16.mxu0 0
    %709 = vmatmul.mubr.bf16.gmra.mrb[0].mxu0 %v615
    %v710 = vpop.f32.mrb[0].mxu0
    %v711 = vadd.f32 %v410, %v710
    %v712 = vpop.f32.mrb[0].mxu0
    %v713 = vadd.f32 %v414, %v712
    %v714 = vpop.f32.mrb[0].mxu0
    %v715 = vadd.f32 %v410, %v714
    %v716 = vpop.f32.mrb[0].mxu0
    %v717 = vadd.f32 %v414, %v716
    %718 = vmatprep.mubr.bf16.mxu0 0
    %719 = vmatmul.mubr.bf16.gmra.mrb[0].mxu0 %v618
    %v720 = vpop.f32.mrb[0].mxu0
    %v721 = vadd.f32 %v410, %v720
    %v722 = vpop.f32.mrb[0].mxu0
    %v723 = vadd.f32 %v414, %v722
    %v724 = vpop.f32.mrb[0].mxu0
    %v725 = vadd.f32 %v410, %v724
    %v726 = vpop.f32.mrb[0].mxu0
    %v727 = vadd.f32 %v414, %v726
    %728 = vmatprep.mubr.bf16.mxu0 0
    %729 = vmatmul.mubr.bf16.gmra.mrb[0].mxu0 %v621
    %v730 = vpop.f32.mrb[0].mxu0
    %v731 = vadd.f32 %v410, %v730
    %v732 = vpop.f32.mrb[0].mxu0
    %v733 = vadd.f32 %v414, %v732
    %v734 = vpop.f32.mrb[0].mxu0
    %v735 = vadd.f32 %v410, %v734
    %v736 = vpop.f32.mrb[0].mxu0
    %v737 = vadd.f32 %v414, %v736
    %738 = vmatprep.mubr.bf16.mxu0 0
    %739 = vmatmul.mubr.bf16.gmra.mrb[0].mxu0 %v624
    %v740 = vpop.f32.mrb[0].mxu0
    %v741 = vadd.f32 %v410, %v740
    %v742 = vpop.f32.mrb[0].mxu0
    %v743 = vadd.f32 %v414, %v742
    %v744 = vpop.f32.mrb[0].mxu0
    %v745 = vadd.f32 %v410, %v744
    %v746 = vpop.f32.mrb[0].mxu0
    %v747 = vadd.f32 %v414, %v746
    %748 = vmatprep.mubr.bf16.mxu0 0
    %749 = vmatmul.mubr.bf16.gmra.mrb[0].mxu0 %v627
    %v750 = vpop.f32.mrb[0].mxu0
    %v751 = vadd.f32 %v410, %v750
    %v752 = vpop.f32.mrb[0].mxu0
    %v753 = vadd.f32 %v414, %v752
    %v754 = vpop.f32.mrb[0].mxu0
    %v755 = vadd.f32 %v410, %v754
    %v756 = vpop.f32.mrb[0].mxu0
    %v757 = vadd.f32 %v414, %v756
    %758 = vmatprep.mubr.bf16.mxu0 0
    %759 = vmatmul.mubr.bf16.gmra.mrb[0].mxu0 %v630
    %v760 = vpop.f32.mrb[0].mxu0
    %v761 = vadd.f32 %v410, %v760
    %v762 = vpop.f32.mrb[0].mxu0
    %v763 = vadd.f32 %v414, %v762
    %v764 = vpop.f32.mrb[0].mxu0
    %v765 = vadd.f32 %v410, %v764
    %v766 = vpop.f32.mrb[0].mxu0
    %v767 = vadd.f32 %v414, %v766
    %768 = vmatprep.mubr.bf16.mxu0 0
    %769 = vmatmul.mubr.bf16.gmra.mrb[0].mxu0 %v633
    %v770 = vpop.f32.mrb[0].mxu0
    %v771 = vadd.f32 %v410, %v770
    %v772 = vpop.f32.mrb[0].mxu0
    %v773 = vadd.f32 %v414, %v772
    %v774 = vpop.f32.mrb[0].mxu0
    %v775 = vadd.f32 %v410, %v774
    %v776 = vpop.f32.mrb[0].mxu0
    %v777 = vadd.f32 %v414, %v776
    %778 = vmatprep.mubr.bf16.mxu0 0
    %779 = vmatmul.mubr.bf16.gmra.mrb[0].mxu0 %v636
    %v780 = vpop.f32.mrb[0].mxu0
    %v781 = vadd.f32 %v410, %v780
    %v782 = vpop.f32.mrb[0].mxu0
    %v783 = vadd.f32 %v414, %v782
    %v784 = vpop.f32.mrb[0].mxu0
    %v785 = vadd.f32 %v410, %v784
    %v786 = vpop.f32.mrb[0].mxu0
    %v787 = vadd.f32 %v414, %v786
    %788 = vmatprep.mubr.bf16.mxu0 0
    %789 = vmatmul.mubr.bf16.gmra.mrb[0].mxu0 %v639
    %v790 = vpop.f32.mrb[0].mxu0
    %v791 = vadd.f32 %v410, %v790
    %v792 = vpop.f32.mrb[0].mxu0
    %v793 = vadd.f32 %v414, %v792
    %v794 = vpop.f32.mrb[0].mxu0
    %v795 = vadd.f32 %v410, %v794
    %v796 = vpop.f32.mrb[0].mxu0
    %v797 = vadd.f32 %v414, %v796
    %798 = vmatprep.mubr.bf16.mxu0 0
    %799 = vmatmul.mubr.bf16.gmra.mrb[0].mxu0 %v642
    %v800 = vpop.f32.mrb[0].mxu0
    %v801 = vadd.f32 %v410, %v800
    %v802 = vpop.f32.mrb[0].mxu0
    %v803 = vadd.f32 %v414, %v802
    %v804 = vpop.f32.mrb[0].mxu0
    %v805 = vadd.f32 %v410, %v804
    %v806 = vpop.f32.mrb[0].mxu0
    %v807 = vadd.f32 %v414, %v806
    %808 = vmatprep.mubr.bf16.mxu0 0
    %809 = vmatmul.mubr.bf16.gmra.mrb[0].mxu0 %v645
    %v810 = vpop.f32.mrb[0].mxu0
    %v811 = vadd.f32 %v410, %v810
    %v812 = vpop.f32.mrb[0].mxu0
    %v813 = vadd.f32 %v414, %v812
    %v814 = vpop.f32.mrb[0].mxu0
    %v815 = vadd.f32 %v410, %v814
    %v816 = vpop.f32.mrb[0].mxu0
    %v817 = vadd.f32 %v414, %v816
    %818 = vmatprep.mubr.bf16.mxu0 0
    %819 = vmatmul.mubr.bf16.gmra.mrb[0].mxu0 %v648
    %v820 = vpop.f32.mrb[0].mxu0
    %v821 = vadd.f32 %v410, %v820
    %v822 = vpop.f32.mrb[0].mxu0
    %v823 = vadd.f32 %v414, %v822
    %v824 = vpop.f32.mrb[0].mxu0
    %v825 = vadd.f32 %v410, %v824
    %v826 = vpop.f32.mrb[0].mxu0
    %v827 = vadd.f32 %v414, %v826
    %828 = vmatprep.mubr.bf16.mxu0 0
    %829 = vmatmul.mubr.bf16.gmra.mrb[0].mxu0 %v651
    %v830 = vpop.f32.mrb[0].mxu0
    %v831 = vadd.f32 %v410, %v830
    %v832 = vpop.f32.mrb[0].mxu0
    %v833 = vadd.f32 %v414, %v832
    %v834 = vpop.f32.mrb[0].mxu0
    %v835 = vadd.f32 %v410, %v834
    %v836 = vpop.f32.mrb[0].mxu0
    %v837 = vadd.f32 %v414, %v836
    %838 = vmatprep.mubr.bf16.mxu0 0
    %839 = vmatmul.mubr.bf16.gmra.mrb[0].mxu0 %v654
    %v840 = vpop.f32.mrb[0].mxu0
    %v841 = vadd.f32 %v410, %v840
    %v842 = vpop.f32.mrb[0].mxu0
    %v843 = vadd.f32 %v414, %v842
    %v844 = vpop.f32.mrb[0].mxu0
    %v845 = vadd.f32 %v410, %v844
    %v846 = vpop.f32.mrb[0].mxu0
    %v847 = vadd.f32 %v414, %v846
    %848 = vdwg.mxu0
    %849 = vmatprep.subr.bf16.mxu0 %v546
    %850 = vmatpush1.bf16.msra.mxu0 %v545
    %851 = vmatprep.subr.bf16.mxu0 %v554
    %852 = vmatpush1.bf16.msra.mxu0 %v553
    %853 = vmatprep.subr.bf16.mxu0 %v562
    %854 = vmatpush1.bf16.msra.mxu0 %v561
    %855 = vmatprep.subr.bf16.mxu0 %v570
    %856 = vmatpush1.bf16.msra.mxu0 %v569
    %857 = vmatprep.subr.bf16.mxu0 0
    %858 = vmatpush1.bf16.msra.mxu0 0
    %859 = vmatprep.subr.bf16.mxu0 0
    %860 = vmatpush1.bf16.msra.mxu0 0
    %861 = vmatprep.subr.bf16.mxu0 0
    %862 = vmatpush1.bf16.msra.mxu0 0
    %863 = vmatprep.subr.bf16.mxu0 0
    %864 = vmatpush1.bf16.msra.mxu0 0
    %865 = vmatprep.subr.bf16.mxu0 0
    %866 = vmatpush1.bf16.msra.mxu0 0
    %867 = vmatprep.subr.bf16.mxu0 0
    %868 = vmatpush1.bf16.msra.mxu0 0
    %869 = vmatprep.subr.bf16.mxu0 0
    %870 = vmatpush1.bf16.msra.mxu0 0
    %871 = vmatprep.subr.bf16.mxu0 0
    %872 = vmatpush1.bf16.msra.mxu0 0
    %873 = vmatprep.subr.bf16.mxu0 0
    %874 = vmatpush1.bf16.msra.mxu0 0
    %875 = vmatprep.subr.bf16.mxu0 0
    %876 = vmatpush1.bf16.msra.mxu0 0
    %877 = vmatprep.subr.bf16.mxu0 0
    %878 = vmatpush1.bf16.msra.mxu0 0
    %879 = vmatprep.subr.bf16.mxu0 0
    %880 = vmatpush1.bf16.msra.mxu0 0
    %881 = vmatprep.mubr.bf16.mxu0 0
    %882 = vmatmul.mubr.bf16.gmra.mrb[0].mxu0 %v609
    %v883 = vpop.f32.mrb[0].mxu0
    %v884 = vadd.f32 %v418, %v883
    %v885 = vpop.f32.mrb[0].mxu0
    %v886 = vadd.f32 %v422, %v885
    %v887 = vpop.f32.mrb[0].mxu0
    %v888 = vadd.f32 %v418, %v887
    %v889 = vpop.f32.mrb[0].mxu0
    %v890 = vadd.f32 %v422, %v889
    %891 = vmatprep.mubr.bf16.mxu0 0
    %892 = vmatmul.mubr.bf16.gmra.mrb[0].mxu0 %v612
    %v893 = vpop.f32.mrb[0].mxu0
    %v894 = vadd.f32 %v418, %v893
    %v895 = vpop.f32.mrb[0].mxu0
    %v896 = vadd.f32 %v422, %v895
    %v897 = vpop.f32.mrb[0].mxu0
    %v898 = vadd.f32 %v418, %v897
    %v899 = vpop.f32.mrb[0].mxu0
    %v900 = vadd.f32 %v422, %v899
    %901 = vmatprep.mubr.bf16.mxu0 0
    %902 = vmatmul.mubr.bf16.gmra.mrb[0].mxu0 %v615
    %v903 = vpop.f32.mrb[0].mxu0
    %v904 = vadd.f32 %v418, %v903
    %v905 = vpop.f32.mrb[0].mxu0
    %v906 = vadd.f32 %v422, %v905
    %v907 = vpop.f32.mrb[0].mxu0
    %v908 = vadd.f32 %v418, %v907
    %v909 = vpop.f32.mrb[0].mxu0
    %v910 = vadd.f32 %v422, %v909
    %911 = vmatprep.mubr.bf16.mxu0 0
    %912 = vmatmul.mubr.bf16.gmra.mrb[0].mxu0 %v618
    %v913 = vpop.f32.mrb[0].mxu0
    %v914 = vadd.f32 %v418, %v913
    %v915 = vpop.f32.mrb[0].mxu0
    %v916 = vadd.f32 %v422, %v915
    %v917 = vpop.f32.mrb[0].mxu0
    %v918 = vadd.f32 %v418, %v917
    %v919 = vpop.f32.mrb[0].mxu0
    %v920 = vadd.f32 %v422, %v919
    %921 = vmatprep.mubr.bf16.mxu0 0
    %922 = vmatmul.mubr.bf16.gmra.mrb[0].mxu0 %v621
    %v923 = vpop.f32.mrb[0].mxu0
    %v924 = vadd.f32 %v418, %v923
    %v925 = vpop.f32.mrb[0].mxu0
    %v926 = vadd.f32 %v422, %v925
    %v927 = vpop.f32.mrb[0].mxu0
    %v928 = vadd.f32 %v418, %v927
    %v929 = vpop.f32.mrb[0].mxu0
    %v930 = vadd.f32 %v422, %v929
    %931 = vmatprep.mubr.bf16.mxu0 0
    %932 = vmatmul.mubr.bf16.gmra.mrb[0].mxu0 %v624
    %v933 = vpop.f32.mrb[0].mxu0
    %v934 = vadd.f32 %v418, %v933
    %v935 = vpop.f32.mrb[0].mxu0
    %v936 = vadd.f32 %v422, %v935
    %v937 = vpop.f32.mrb[0].mxu0
    %v938 = vadd.f32 %v418, %v937
    %v939 = vpop.f32.mrb[0].mxu0
    %v940 = vadd.f32 %v422, %v939
    %941 = vmatprep.mubr.bf16.mxu0 0
    %942 = vmatmul.mubr.bf16.gmra.mrb[0].mxu0 %v627
    %v943 = vpop.f32.mrb[0].mxu0
    %v944 = vadd.f32 %v418, %v943
    %v945 = vpop.f32.mrb[0].mxu0
    %v946 = vadd.f32 %v422, %v945
    %v947 = vpop.f32.mrb[0].mxu0
    %v948 = vadd.f32 %v418, %v947
    %v949 = vpop.f32.mrb[0].mxu0
    %v950 = vadd.f32 %v422, %v949
    %951 = vmatprep.mubr.bf16.mxu0 0
    %952 = vmatmul.mubr.bf16.gmra.mrb[0].mxu0 %v630
    %v953 = vpop.f32.mrb[0].mxu0
    %v954 = vadd.f32 %v418, %v953
    %v955 = vpop.f32.mrb[0].mxu0
    %v956 = vadd.f32 %v422, %v955
    %v957 = vpop.f32.mrb[0].mxu0
    %v958 = vadd.f32 %v418, %v957
    %v959 = vpop.f32.mrb[0].mxu0
    %v960 = vadd.f32 %v422, %v959
    %961 = vmatprep.mubr.bf16.mxu0 0
    %962 = vmatmul.mubr.bf16.gmra.mrb[0].mxu0 %v633
    %v963 = vpop.f32.mrb[0].mxu0
    %v964 = vadd.f32 %v418, %v963
    %v965 = vpop.f32.mrb[0].mxu0
    %v966 = vadd.f32 %v422, %v965
    %v967 = vpop.f32.mrb[0].mxu0
    %v968 = vadd.f32 %v418, %v967
    %v969 = vpop.f32.mrb[0].mxu0
    %v970 = vadd.f32 %v422, %v969
    %971 = vmatprep.mubr.bf16.mxu0 0
    %972 = vmatmul.mubr.bf16.gmra.mrb[0].mxu0 %v636
    %v973 = vpop.f32.mrb[0].mxu0
    %v974 = vadd.f32 %v418, %v973
    %v975 = vpop.f32.mrb[0].mxu0
    %v976 = vadd.f32 %v422, %v975
    %v977 = vpop.f32.mrb[0].mxu0
    %v978 = vadd.f32 %v418, %v977
    %v979 = vpop.f32.mrb[0].mxu0
    %v980 = vadd.f32 %v422, %v979
    %981 = vmatprep.mubr.bf16.mxu0 0
    %982 = vmatmul.mubr.bf16.gmra.mrb[0].mxu0 %v639
    %v983 = vpop.f32.mrb[0].mxu0
    %v984 = vadd.f32 %v418, %v983
    %v985 = vpop.f32.mrb[0].mxu0
    %v986 = vadd.f32 %v422, %v985
    %v987 = vpop.f32.mrb[0].mxu0
    %v988 = vadd.f32 %v418, %v987
    %v989 = vpop.f32.mrb[0].mxu0
    %v990 = vadd.f32 %v422, %v989
    %991 = vmatprep.mubr.bf16.mxu0 0
    %992 = vmatmul.mubr.bf16.gmra.mrb[0].mxu0 %v642
    %v993 = vpop.f32.mrb[0].mxu0
    %v994 = vadd.f32 %v418, %v993
    %v995 = vpop.f32.mrb[0].mxu0
    %v996 = vadd.f32 %v422, %v995
    %v997 = vpop.f32.mrb[0].mxu0
    %v998 = vadd.f32 %v418, %v997
    %v999 = vpop.f32.mrb[0].mxu0
    %v1000 = vadd.f32 %v422, %v999
    %1001 = vmatprep.mubr.bf16.mxu0 0
    %1002 = vmatmul.mubr.bf16.gmra.mrb[0].mxu0 %v645
    %v1003 = vpop.f32.mrb[0].mxu0
    %v1004 = vadd.f32 %v418, %v1003
    %v1005 = vpop.f32.mrb[0].mxu0
    %v1006 = vadd.f32 %v422, %v1005
    %v1007 = vpop.f32.mrb[0].mxu0
    %v1008 = vadd.f32 %v418, %v1007
    %v1009 = vpop.f32.mrb[0].mxu0
    %v1010 = vadd.f32 %v422, %v1009
    %1011 = vmatprep.mubr.bf16.mxu0 0
    %1012 = vmatmul.mubr.bf16.gmra.mrb[0].mxu0 %v648
    %v1013 = vpop.f32.mrb[0].mxu0
    %v1014 = vadd.f32 %v418, %v1013
    %v1015 = vpop.f32.mrb[0].mxu0
    %v1016 = vadd.f32 %v422, %v1015
    %v1017 = vpop.f32.mrb[0].mxu0
    %v1018 = vadd.f32 %v418, %v1017
    %v1019 = vpop.f32.mrb[0].mxu0
    %v1020 = vadd.f32 %v422, %v1019
    %1021 = vmatprep.mubr.bf16.mxu0 0
    %1022 = vmatmul.mubr.bf16.gmra.mrb[0].mxu0 %v651
    %v1023 = vpop.f32.mrb[0].mxu0
    %v1024 = vadd.f32 %v418, %v1023
    %v1025 = vpop.f32.mrb[0].mxu0
    %v1026 = vadd.f32 %v422, %v1025
    %v1027 = vpop.f32.mrb[0].mxu0
    %v1028 = vadd.f32 %v418, %v1027
    %v1029 = vpop.f32.mrb[0].mxu0
    %v1030 = vadd.f32 %v422, %v1029
    %1031 = vmatprep.mubr.bf16.mxu0 0
    %1032 = vmatmul.mubr.bf16.gmra.mrb[0].mxu0 %v654
    %v1033 = vpop.f32.mrb[0].mxu0
    %v1034 = vadd.f32 %v418, %v1033
    %v1035 = vpop.f32.mrb[0].mxu0
    %v1036 = vadd.f32 %v422, %v1035
    %v1037 = vpop.f32.mrb[0].mxu0
    %v1038 = vadd.f32 %v418, %v1037
    %v1039 = vpop.f32.mrb[0].mxu0
    %v1040 = vadd.f32 %v422, %v1039
    %1041 = vdwg.mxu0
    %1042 = vmatprep.subr.bf16.mxu0 %v548
    %1043 = vmatpush1.bf16.msra.mxu0 %v547
    %1044 = vmatprep.subr.bf16.mxu0 %v556
    %1045 = vmatpush1.bf16.msra.mxu0 %v555
    %1046 = vmatprep.subr.bf16.mxu0 %v564
    %1047 = vmatpush1.bf16.msra.mxu0 %v563
    %1048 = vmatprep.subr.bf16.mxu0 %v572
    %1049 = vmatpush1.bf16.msra.mxu0 %v571
    %1050 = vmatprep.subr.bf16.mxu0 0
    %1051 = vmatpush1.bf16.msra.mxu0 0
    %1052 = vmatprep.subr.bf16.mxu0 0
    %1053 = vmatpush1.bf16.msra.mxu0 0
    %1054 = vmatprep.subr.bf16.mxu0 0
    %1055 = vmatpush1.bf16.msra.mxu0 0
    %1056 = vmatprep.subr.bf16.mxu0 0
    %1057 = vmatpush1.bf16.msra.mxu0 0
    %1058 = vmatprep.subr.bf16.mxu0 0
    %1059 = vmatpush1.bf16.msra.mxu0 0
    %1060 = vmatprep.subr.bf16.mxu0 0
    %1061 = vmatpush1.bf16.msra.mxu0 0
    %1062 = vmatprep.subr.bf16.mxu0 0
    %1063 = vmatpush1.bf16.msra.mxu0 0
    %1064 = vmatprep.subr.bf16.mxu0 0
    %1065 = vmatpush1.bf16.msra.mxu0 0
    %1066 = vmatprep.subr.bf16.mxu0 0
    %1067 = vmatpush1.bf16.msra.mxu0 0
    %1068 = vmatprep.subr.bf16.mxu0 0
    %1069 = vmatpush1.bf16.msra.mxu0 0
    %1070 = vmatprep.subr.bf16.mxu0 0
    %1071 = vmatpush1.bf16.msra.mxu0 0
    %1072 = vmatprep.subr.bf16.mxu0 0
    %1073 = vmatpush1.bf16.msra.mxu0 0
    %1074 = vmatprep.mubr.bf16.mxu0 0
    %1075 = vmatmul.mubr.bf16.gmra.mrb[0].mxu0 %v609
    %v1076 = vpop.f32.mrb[0].mxu0
    %v1077 = vadd.f32 %v426, %v1076
    %v1078 = vpop.f32.mrb[0].mxu0
    %v1079 = vadd.f32 %v430, %v1078
    %v1080 = vpop.f32.mrb[0].mxu0
    %v1081 = vadd.f32 %v426, %v1080
    %v1082 = vpop.f32.mrb[0].mxu0
    %v1083 = vadd.f32 %v430, %v1082
    %1084 = vmatprep.mubr.bf16.mxu0 0
    %1085 = vmatmul.mubr.bf16.gmra.mrb[0].mxu0 %v612
    %v1086 = vpop.f32.mrb[0].mxu0
    %v1087 = vadd.f32 %v426, %v1086
    %v1088 = vpop.f32.mrb[0].mxu0
    %v1089 = vadd.f32 %v430, %v1088
    %v1090 = vpop.f32.mrb[0].mxu0
    %v1091 = vadd.f32 %v426, %v1090
    %v1092 = vpop.f32.mrb[0].mxu0
    %v1093 = vadd.f32 %v430, %v1092
    %1094 = vmatprep.mubr.bf16.mxu0 0
    %1095 = vmatmul.mubr.bf16.gmra.mrb[0].mxu0 %v615
    %v1096 = vpop.f32.mrb[0].mxu0
    %v1097 = vadd.f32 %v426, %v1096
    %v1098 = vpop.f32.mrb[0].mxu0
    %v1099 = vadd.f32 %v430, %v1098
    %v1100 = vpop.f32.mrb[0].mxu0
    %v1101 = vadd.f32 %v426, %v1100
    %v1102 = vpop.f32.mrb[0].mxu0
    %v1103 = vadd.f32 %v430, %v1102
    %1104 = vmatprep.mubr.bf16.mxu0 0
    %1105 = vmatmul.mubr.bf16.gmra.mrb[0].mxu0 %v618
    %v1106 = vpop.f32.mrb[0].mxu0
    %v1107 = vadd.f32 %v426, %v1106
    %v1108 = vpop.f32.mrb[0].mxu0
    %v1109 = vadd.f32 %v430, %v1108
    %v1110 = vpop.f32.mrb[0].mxu0
    %v1111 = vadd.f32 %v426, %v1110
    %v1112 = vpop.f32.mrb[0].mxu0
    %v1113 = vadd.f32 %v430, %v1112
    %1114 = vmatprep.mubr.bf16.mxu0 0
    %1115 = vmatmul.mubr.bf16.gmra.mrb[0].mxu0 %v621
    %v1116 = vpop.f32.mrb[0].mxu0
    %v1117 = vadd.f32 %v426, %v1116
    %v1118 = vpop.f32.mrb[0].mxu0
    %v1119 = vadd.f32 %v430, %v1118
    %v1120 = vpop.f32.mrb[0].mxu0
    %v1121 = vadd.f32 %v426, %v1120
    %v1122 = vpop.f32.mrb[0].mxu0
    %v1123 = vadd.f32 %v430, %v1122
    %1124 = vmatprep.mubr.bf16.mxu0 0
    %1125 = vmatmul.mubr.bf16.gmra.mrb[0].mxu0 %v624
    %v1126 = vpop.f32.mrb[0].mxu0
    %v1127 = vadd.f32 %v426, %v1126
    %v1128 = vpop.f32.mrb[0].mxu0
    %v1129 = vadd.f32 %v430, %v1128
    %v1130 = vpop.f32.mrb[0].mxu0
    %v1131 = vadd.f32 %v426, %v1130
    %v1132 = vpop.f32.mrb[0].mxu0
    %v1133 = vadd.f32 %v430, %v1132
    %1134 = vmatprep.mubr.bf16.mxu0 0
    %1135 = vmatmul.mubr.bf16.gmra.mrb[0].mxu0 %v627
    %v1136 = vpop.f32.mrb[0].mxu0
    %v1137 = vadd.f32 %v426, %v1136
    %v1138 = vpop.f32.mrb[0].mxu0
    %v1139 = vadd.f32 %v430, %v1138
    %v1140 = vpop.f32.mrb[0].mxu0
    %v1141 = vadd.f32 %v426, %v1140
    %v1142 = vpop.f32.mrb[0].mxu0
    %v1143 = vadd.f32 %v430, %v1142
    %1144 = vmatprep.mubr.bf16.mxu0 0
    %1145 = vmatmul.mubr.bf16.gmra.mrb[0].mxu0 %v630
    %v1146 = vpop.f32.mrb[0].mxu0
    %v1147 = vadd.f32 %v426, %v1146
    %v1148 = vpop.f32.mrb[0].mxu0
    %v1149 = vadd.f32 %v430, %v1148
    %v1150 = vpop.f32.mrb[0].mxu0
    %v1151 = vadd.f32 %v426, %v1150
    %v1152 = vpop.f32.mrb[0].mxu0
    %v1153 = vadd.f32 %v430, %v1152
    %1154 = vmatprep.mubr.bf16.mxu0 0
    %1155 = vmatmul.mubr.bf16.gmra.mrb[0].mxu0 %v633
    %v1156 = vpop.f32.mrb[0].mxu0
    %v1157 = vadd.f32 %v426, %v1156
    %v1158 = vpop.f32.mrb[0].mxu0
    %v1159 = vadd.f32 %v430, %v1158
    %v1160 = vpop.f32.mrb[0].mxu0
    %v1161 = vadd.f32 %v426, %v1160
    %v1162 = vpop.f32.mrb[0].mxu0
    %v1163 = vadd.f32 %v430, %v1162
    %1164 = vmatprep.mubr.bf16.mxu0 0
    %1165 = vmatmul.mubr.bf16.gmra.mrb[0].mxu0 %v636
    %v1166 = vpop.f32.mrb[0].mxu0
    %v1167 = vadd.f32 %v426, %v1166
    %v1168 = vpop.f32.mrb[0].mxu0
    %v1169 = vadd.f32 %v430, %v1168
    %v1170 = vpop.f32.mrb[0].mxu0
    %v1171 = vadd.f32 %v426, %v1170
    %v1172 = vpop.f32.mrb[0].mxu0
    %v1173 = vadd.f32 %v430, %v1172
    %1174 = vmatprep.mubr.bf16.mxu0 0
    %1175 = vmatmul.mubr.bf16.gmra.mrb[0].mxu0 %v639
    %v1176 = vpop.f32.mrb[0].mxu0
    %v1177 = vadd.f32 %v426, %v1176
    %v1178 = vpop.f32.mrb[0].mxu0
    %v1179 = vadd.f32 %v430, %v1178
    %v1180 = vpop.f32.mrb[0].mxu0
    %v1181 = vadd.f32 %v426, %v1180
    %v1182 = vpop.f32.mrb[0].mxu0
    %v1183 = vadd.f32 %v430, %v1182
    %1184 = vmatprep.mubr.bf16.mxu0 0
    %1185 = vmatmul.mubr.bf16.gmra.mrb[0].mxu0 %v642
    %v1186 = vpop.f32.mrb[0].mxu0
    %v1187 = vadd.f32 %v426, %v1186
    %v1188 = vpop.f32.mrb[0].mxu0
    %v1189 = vadd.f32 %v430, %v1188
    %v1190 = vpop.f32.mrb[0].mxu0
    %v1191 = vadd.f32 %v426, %v1190
    %v1192 = vpop.f32.mrb[0].mxu0
    %v1193 = vadd.f32 %v430, %v1192
    %1194 = vmatprep.mubr.bf16.mxu0 0
    %1195 = vmatmul.mubr.bf16.gmra.mrb[0].mxu0 %v645
    %v1196 = vpop.f32.mrb[0].mxu0
    %v1197 = vadd.f32 %v426, %v1196
    %v1198 = vpop.f32.mrb[0].mxu0
    %v1199 = vadd.f32 %v430, %v1198
    %v1200 = vpop.f32.mrb[0].mxu0
    %v1201 = vadd.f32 %v426, %v1200
    %v1202 = vpop.f32.mrb[0].mxu0
    %v1203 = vadd.f32 %v430, %v1202
    %1204 = vmatprep.mubr.bf16.mxu0 0
    %1205 = vmatmul.mubr.bf16.gmra.mrb[0].mxu0 %v648
    %v1206 = vpop.f32.mrb[0].mxu0
    %v1207 = vadd.f32 %v426, %v1206
    %v1208 = vpop.f32.mrb[0].mxu0
    %v1209 = vadd.f32 %v430, %v1208
    %v1210 = vpop.f32.mrb[0].mxu0
    %v1211 = vadd.f32 %v426, %v1210
    %v1212 = vpop.f32.mrb[0].mxu0
    %v1213 = vadd.f32 %v430, %v1212
    %1214 = vmatprep.mubr.bf16.mxu0 0
    %1215 = vmatmul.mubr.bf16.gmra.mrb[0].mxu0 %v651
    %v1216 = vpop.f32.mrb[0].mxu0
    %v1217 = vadd.f32 %v426, %v1216
    %v1218 = vpop.f32.mrb[0].mxu0
    %v1219 = vadd.f32 %v430, %v1218
    %v1220 = vpop.f32.mrb[0].mxu0
    %v1221 = vadd.f32 %v426, %v1220
    %v1222 = vpop.f32.mrb[0].mxu0
    %v1223 = vadd.f32 %v430, %v1222
    %1224 = vmatprep.mubr.bf16.mxu0 0
    %1225 = vmatmul.mubr.bf16.gmra.mrb[0].mxu0 %v654
    %v1226 = vpop.f32.mrb[0].mxu0
    %v1227 = vadd.f32 %v426, %v1226
    %v1228 = vpop.f32.mrb[0].mxu0
    %v1229 = vadd.f32 %v430, %v1228
    %v1230 = vpop.f32.mrb[0].mxu0
    %v1231 = vadd.f32 %v426, %v1230
    %v1232 = vpop.f32.mrb[0].mxu0
    %v1233 = vadd.f32 %v430, %v1232
    %1234 = vdwg.mxu0
    %1235 = vmatprep.subr.bf16.mxu0 %v550
    %1236 = vmatpush1.bf16.msra.mxu0 %v549
    %1237 = vmatprep.subr.bf16.mxu0 %v558
    %1238 = vmatpush1.bf16.msra.mxu0 %v557
    %1239 = vmatprep.subr.bf16.mxu0 %v566
    %1240 = vmatpush1.bf16.msra.mxu0 %v565
    %1241 = vmatprep.subr.bf16.mxu0 %v574
    %1242 = vmatpush1.bf16.msra.mxu0 %v573
    %1243 = vmatprep.subr.bf16.mxu0 0
    %1244 = vmatpush1.bf16.msra.mxu0 0
    %1245 = vmatprep.subr.bf16.mxu0 0
    %1246 = vmatpush1.bf16.msra.mxu0 0
    %1247 = vmatprep.subr.bf16.mxu0 0
    %1248 = vmatpush1.bf16.msra.mxu0 0
    %1249 = vmatprep.subr.bf16.mxu0 0
    %1250 = vmatpush1.bf16.msra.mxu0 0
    %1251 = vmatprep.subr.bf16.mxu0 0
    %1252 = vmatpush1.bf16.msra.mxu0 0
    %1253 = vmatprep.subr.bf16.mxu0 0
    %1254 = vmatpush1.bf16.msra.mxu0 0
    %1255 = vmatprep.subr.bf16.mxu0 0
    %1256 = vmatpush1.bf16.msra.mxu0 0
    %1257 = vmatprep.subr.bf16.mxu0 0
    %1258 = vmatpush1.bf16.msra.mxu0 0
    %1259 = vmatprep.subr.bf16.mxu0 0
    %1260 = vmatpush1.bf16.msra.mxu0 0
    %1261 = vmatprep.subr.bf16.mxu0 0
    %1262 = vmatpush1.bf16.msra.mxu0 0
    %1263 = vmatprep.subr.bf16.mxu0 0
    %1264 = vmatpush1.bf16.msra.mxu0 0
    %1265 = vmatprep.subr.bf16.mxu0 0
    %1266 = vmatpush1.bf16.msra.mxu0 0
    %1267 = vmatprep.mubr.bf16.mxu0 0
    %1268 = vmatmul.mubr.bf16.gmra.mrb[0].mxu0 %v609
    %v1269 = vpop.f32.mrb[0].mxu0
    %v1270 = vadd.f32 %v434, %v1269
    %v1271 = vpop.f32.mrb[0].mxu0
    %v1272 = vadd.f32 %v438, %v1271
    %v1273 = vpop.f32.mrb[0].mxu0
    %v1274 = vadd.f32 %v434, %v1273
    %v1275 = vpop.f32.mrb[0].mxu0
    %v1276 = vadd.f32 %v438, %v1275
    %1277 = vmatprep.mubr.bf16.mxu0 0
    %1278 = vmatmul.mubr.bf16.gmra.mrb[0].mxu0 %v612
    %v1279 = vpop.f32.mrb[0].mxu0
    %v1280 = vadd.f32 %v434, %v1279
    %v1281 = vpop.f32.mrb[0].mxu0
    %v1282 = vadd.f32 %v438, %v1281
    %v1283 = vpop.f32.mrb[0].mxu0
    %v1284 = vadd.f32 %v434, %v1283
    %v1285 = vpop.f32.mrb[0].mxu0
    %v1286 = vadd.f32 %v438, %v1285
    %1287 = vmatprep.mubr.bf16.mxu0 0
    %1288 = vmatmul.mubr.bf16.gmra.mrb[0].mxu0 %v615
    %v1289 = vpop.f32.mrb[0].mxu0
    %v1290 = vadd.f32 %v434, %v1289
    %v1291 = vpop.f32.mrb[0].mxu0
    %v1292 = vadd.f32 %v438, %v1291
    %v1293 = vpop.f32.mrb[0].mxu0
    %v1294 = vadd.f32 %v434, %v1293
    %v1295 = vpop.f32.mrb[0].mxu0
    %v1296 = vadd.f32 %v438, %v1295
    %1297 = vmatprep.mubr.bf16.mxu0 0
    %1298 = vmatmul.mubr.bf16.gmra.mrb[0].mxu0 %v618
    %v1299 = vpop.f32.mrb[0].mxu0
    %v1300 = vadd.f32 %v434, %v1299
    %v1301 = vpop.f32.mrb[0].mxu0
    %v1302 = vadd.f32 %v438, %v1301
    %v1303 = vpop.f32.mrb[0].mxu0
    %v1304 = vadd.f32 %v434, %v1303
    %v1305 = vpop.f32.mrb[0].mxu0
    %v1306 = vadd.f32 %v438, %v1305
    %1307 = vmatprep.mubr.bf16.mxu0 0
    %1308 = vmatmul.mubr.bf16.gmra.mrb[0].mxu0 %v621
    %v1309 = vpop.f32.mrb[0].mxu0
    %v1310 = vadd.f32 %v434, %v1309
    %v1311 = vpop.f32.mrb[0].mxu0
    %v1312 = vadd.f32 %v438, %v1311
    %v1313 = vpop.f32.mrb[0].mxu0
    %v1314 = vadd.f32 %v434, %v1313
    %v1315 = vpop.f32.mrb[0].mxu0
    %v1316 = vadd.f32 %v438, %v1315
    %1317 = vmatprep.mubr.bf16.mxu0 0
    %1318 = vmatmul.mubr.bf16.gmra.mrb[0].mxu0 %v624
    %v1319 = vpop.f32.mrb[0].mxu0
    %v1320 = vadd.f32 %v434, %v1319
    %v1321 = vpop.f32.mrb[0].mxu0
    %v1322 = vadd.f32 %v438, %v1321
    %v1323 = vpop.f32.mrb[0].mxu0
    %v1324 = vadd.f32 %v434, %v1323
    %v1325 = vpop.f32.mrb[0].mxu0
    %v1326 = vadd.f32 %v438, %v1325
    %1327 = vmatprep.mubr.bf16.mxu0 0
    %1328 = vmatmul.mubr.bf16.gmra.mrb[0].mxu0 %v627
    %v1329 = vpop.f32.mrb[0].mxu0
    %v1330 = vadd.f32 %v434, %v1329
    %v1331 = vpop.f32.mrb[0].mxu0
    %v1332 = vadd.f32 %v438, %v1331
    %v1333 = vpop.f32.mrb[0].mxu0
    %v1334 = vadd.f32 %v434, %v1333
    %v1335 = vpop.f32.mrb[0].mxu0
    %v1336 = vadd.f32 %v438, %v1335
    %1337 = vmatprep.mubr.bf16.mxu0 0
    %1338 = vmatmul.mubr.bf16.gmra.mrb[0].mxu0 %v630
    %v1339 = vpop.f32.mrb[0].mxu0
    %v1340 = vadd.f32 %v434, %v1339
    %v1341 = vpop.f32.mrb[0].mxu0
    %v1342 = vadd.f32 %v438, %v1341
    %v1343 = vpop.f32.mrb[0].mxu0
    %v1344 = vadd.f32 %v434, %v1343
    %v1345 = vpop.f32.mrb[0].mxu0
    %v1346 = vadd.f32 %v438, %v1345
    %1347 = vmatprep.mubr.bf16.mxu0 0
    %1348 = vmatmul.mubr.bf16.gmra.mrb[0].mxu0 %v633
    %v1349 = vpop.f32.mrb[0].mxu0
    %v1350 = vadd.f32 %v434, %v1349
    %v1351 = vpop.f32.mrb[0].mxu0
    %v1352 = vadd.f32 %v438, %v1351
    %v1353 = vpop.f32.mrb[0].mxu0
    %v1354 = vadd.f32 %v434, %v1353
    %v1355 = vpop.f32.mrb[0].mxu0
    %v1356 = vadd.f32 %v438, %v1355
    %1357 = vmatprep.mubr.bf16.mxu0 0
    %1358 = vmatmul.mubr.bf16.gmra.mrb[0].mxu0 %v636
    %v1359 = vpop.f32.mrb[0].mxu0
    %v1360 = vadd.f32 %v434, %v1359
    %v1361 = vpop.f32.mrb[0].mxu0
    %v1362 = vadd.f32 %v438, %v1361
    %v1363 = vpop.f32.mrb[0].mxu0
    %v1364 = vadd.f32 %v434, %v1363
    %v1365 = vpop.f32.mrb[0].mxu0
    %v1366 = vadd.f32 %v438, %v1365
    %1367 = vmatprep.mubr.bf16.mxu0 0
    %1368 = vmatmul.mubr.bf16.gmra.mrb[0].mxu0 %v639
    %v1369 = vpop.f32.mrb[0].mxu0
    %v1370 = vadd.f32 %v434, %v1369
    %v1371 = vpop.f32.mrb[0].mxu0
    %v1372 = vadd.f32 %v438, %v1371
    %v1373 = vpop.f32.mrb[0].mxu0
    %v1374 = vadd.f32 %v434, %v1373
    %v1375 = vpop.f32.mrb[0].mxu0
    %v1376 = vadd.f32 %v438, %v1375
    %1377 = vmatprep.mubr.bf16.mxu0 0
    %1378 = vmatmul.mubr.bf16.gmra.mrb[0].mxu0 %v642
    %v1379 = vpop.f32.mrb[0].mxu0
    %v1380 = vadd.f32 %v434, %v1379
    %v1381 = vpop.f32.mrb[0].mxu0
    %v1382 = vadd.f32 %v438, %v1381
    %v1383 = vpop.f32.mrb[0].mxu0
    %v1384 = vadd.f32 %v434, %v1383
    %v1385 = vpop.f32.mrb[0].mxu0
    %v1386 = vadd.f32 %v438, %v1385
    %1387 = vmatprep.mubr.bf16.mxu0 0
    %1388 = vmatmul.mubr.bf16.gmra.mrb[0].mxu0 %v645
    %v1389 = vpop.f32.mrb[0].mxu0
    %v1390 = vadd.f32 %v434, %v1389
    %v1391 = vpop.f32.mrb[0].mxu0
    %v1392 = vadd.f32 %v438, %v1391
    %v1393 = vpop.f32.mrb[0].mxu0
    %v1394 = vadd.f32 %v434, %v1393
    %v1395 = vpop.f32.mrb[0].mxu0
    %v1396 = vadd.f32 %v438, %v1395
    %1397 = vmatprep.mubr.bf16.mxu0 0
    %1398 = vmatmul.mubr.bf16.gmra.mrb[0].mxu0 %v648
    %v1399 = vpop.f32.mrb[0].mxu0
    %v1400 = vadd.f32 %v434, %v1399
    %v1401 = vpop.f32.mrb[0].mxu0
    %v1402 = vadd.f32 %v438, %v1401
    %v1403 = vpop.f32.mrb[0].mxu0
    %v1404 = vadd.f32 %v434, %v1403
    %v1405 = vpop.f32.mrb[0].mxu0
    %v1406 = vadd.f32 %v438, %v1405
    %1407 = vmatprep.mubr.bf16.mxu0 0
    %1408 = vmatmul.mubr.bf16.gmra.mrb[0].mxu0 %v651
    %v1409 = vpop.f32.mrb[0].mxu0
    %v1410 = vadd.f32 %v434, %v1409
    %v1411 = vpop.f32.mrb[0].mxu0
    %v1412 = vadd.f32 %v438, %v1411
    %v1413 = vpop.f32.mrb[0].mxu0
    %v1414 = vadd.f32 %v434, %v1413
    %v1415 = vpop.f32.mrb[0].mxu0
    %v1416 = vadd.f32 %v438, %v1415
    %1417 = vmatprep.mubr.bf16.mxu0 0
    %1418 = vmatmul.mubr.bf16.gmra.mrb[0].mxu0 %v654
    %v1419 = vpop.f32.mrb[0].mxu0
    %v1420 = vadd.f32 %v434, %v1419
    %v1421 = vpop.f32.mrb[0].mxu0
    %v1422 = vadd.f32 %v438, %v1421
    %v1423 = vpop.f32.mrb[0].mxu0
    %v1424 = vadd.f32 %v434, %v1423
    %v1425 = vpop.f32.mrb[0].mxu0
    %v1426 = vadd.f32 %v438, %v1425
    %1427 = vdwg.mxu0
    %v1428 = vpack.c.bf16 %v202, %v199
    %v1429 = vpack.c.bf16 %v210, %v207
    %v1430 = vpack.c.bf16 %v218, %v215
    %v1431 = vpack.c.bf16 %v226, %v223
    %v1432 = vpack.c.bf16 %v234, %v231
    %v1433 = vpack.c.bf16 %v242, %v239
    %v1434 = vpack.c.bf16 %v250, %v247
    %v1435 = vpack.c.bf16 %v258, %v255
    %v1436 = vpack.c.bf16 %v266, %v263
    %v1437 = vpack.c.bf16 %v274, %v271
    %v1438 = vpack.c.bf16 %v282, %v279
    %v1439 = vpack.c.bf16 %v290, %v287
    %v1440 = vpack.c.bf16 %v298, %v295
    %v1441 = vpack.c.bf16 %v306, %v303
    %v1442 = vpack.c.bf16 %v314, %v311
    %v1443 = vpack.c.bf16 %v322, %v319
    %v1444 = vld [vmem:[%s5] sm:$0xf]
    %v1445 = vld [vmem:[%s5 + $0x4] sm:$0xf]
    %v1446 = vld [vmem:[%s5 + $0x8] sm:$0xf]
    %v1447 = vld [vmem:[%s5 + $0xc] sm:$0xf]
    %v1448 = vld [vmem:[%s5 + $0x10] sm:$0xf]
    %v1449 = vld [vmem:[%s5 + $0x14] sm:$0xf]
    %v1450 = vld [vmem:[%s5 + $0x18] sm:$0xf]
    %v1451 = vld [vmem:[%s5 + $0x1c] sm:$0xf]
    %v1452 = vpack.c.bf16 %v695, %v691
    %v1453 = vpack.c.bf16 %v697, %v693
    %v1454 = vpack.c.bf16 %v888, %v884
    %v1455 = vpack.c.bf16 %v890, %v886
    %v1456 = vpack.c.bf16 %v1081, %v1077
    %v1457 = vpack.c.bf16 %v1083, %v1079
    %v1458 = vpack.c.bf16 %v1274, %v1270
    %v1459 = vpack.c.bf16 %v1276, %v1272
    %v1460 = vpack.c.bf16 %v705, %v701
    %v1461 = vpack.c.bf16 %v707, %v703
    %v1462 = vpack.c.bf16 %v898, %v894
    %v1463 = vpack.c.bf16 %v900, %v896
    %v1464 = vpack.c.bf16 %v1091, %v1087
    %v1465 = vpack.c.bf16 %v1093, %v1089
    %v1466 = vpack.c.bf16 %v1284, %v1280
    %v1467 = vpack.c.bf16 %v1286, %v1282
    %v1468 = vpack.c.bf16 %v715, %v711
    %v1469 = vpack.c.bf16 %v717, %v713
    %v1470 = vpack.c.bf16 %v908, %v904
    %v1471 = vpack.c.bf16 %v910, %v906
    %v1472 = vpack.c.bf16 %v1101, %v1097
    %v1473 = vpack.c.bf16 %v1103, %v1099
    %v1474 = vpack.c.bf16 %v1294, %v1290
    %v1475 = vpack.c.bf16 %v1296, %v1292
    %v1476 = vpack.c.bf16 %v725, %v721
    %v1477 = vpack.c.bf16 %v727, %v723
    %v1478 = vpack.c.bf16 %v918, %v914
    %v1479 = vpack.c.bf16 %v920, %v916
    %v1480 = vpack.c.bf16 %v1111, %v1107
    %v1481 = vpack.c.bf16 %v1113, %v1109
    %v1482 = vpack.c.bf16 %v1304, %v1300
    %v1483 = vpack.c.bf16 %v1306, %v1302
    %v1484 = vpack.c.bf16 %v735, %v731
    %v1485 = vpack.c.bf16 %v737, %v733
    %v1486 = vpack.c.bf16 %v928, %v924
    %v1487 = vpack.c.bf16 %v930, %v926
    %v1488 = vpack.c.bf16 %v1121, %v1117
    %v1489 = vpack.c.bf16 %v1123, %v1119
    %v1490 = vpack.c.bf16 %v1314, %v1310
    %v1491 = vpack.c.bf16 %v1316, %v1312
    %v1492 = vpack.c.bf16 %v745, %v741
    %v1493 = vpack.c.bf16 %v747, %v743
    %v1494 = vpack.c.bf16 %v938, %v934
    %v1495 = vpack.c.bf16 %v940, %v936
    %v1496 = vpack.c.bf16 %v1131, %v1127
    %v1497 = vpack.c.bf16 %v1133, %v1129
    %v1498 = vpack.c.bf16 %v1324, %v1320
    %v1499 = vpack.c.bf16 %v1326, %v1322
    %v1500 = vpack.c.bf16 %v755, %v751
    %v1501 = vpack.c.bf16 %v757, %v753
    %v1502 = vpack.c.bf16 %v948, %v944
    %v1503 = vpack.c.bf16 %v950, %v946
    %v1504 = vpack.c.bf16 %v1141, %v1137
    %v1505 = vpack.c.bf16 %v1143, %v1139
    %v1506 = vpack.c.bf16 %v1334, %v1330
    %v1507 = vpack.c.bf16 %v1336, %v1332
    %v1508 = vpack.c.bf16 %v765, %v761
    %v1509 = vpack.c.bf16 %v767, %v763
    %v1510 = vpack.c.bf16 %v958, %v954
    %v1511 = vpack.c.bf16 %v960, %v956
    %v1512 = vpack.c.bf16 %v1151, %v1147
    %v1513 = vpack.c.bf16 %v1153, %v1149
    %v1514 = vpack.c.bf16 %v1344, %v1340
    %v1515 = vpack.c.bf16 %v1346, %v1342
    %v1516 = vpack.c.bf16 %v775, %v771
    %v1517 = vpack.c.bf16 %v777, %v773
    %v1518 = vpack.c.bf16 %v968, %v964
    %v1519 = vpack.c.bf16 %v970, %v966
    %v1520 = vpack.c.bf16 %v1161, %v1157
    %v1521 = vpack.c.bf16 %v1163, %v1159
    %v1522 = vpack.c.bf16 %v1354, %v1350
    %v1523 = vpack.c.bf16 %v1356, %v1352
    %v1524 = vpack.c.bf16 %v785, %v781
    %v1525 = vpack.c.bf16 %v787, %v783
    %v1526 = vpack.c.bf16 %v978, %v974
    %v1527 = vpack.c.bf16 %v980, %v976
    %v1528 = vpack.c.bf16 %v1171, %v1167
    %v1529 = vpack.c.bf16 %v1173, %v1169
    %v1530 = vpack.c.bf16 %v1364, %v1360
    %v1531 = vpack.c.bf16 %v1366, %v1362
    %v1532 = vpack.c.bf16 %v795, %v791
    %v1533 = vpack.c.bf16 %v797, %v793
    %v1534 = vpack.c.bf16 %v988, %v984
    %v1535 = vpack.c.bf16 %v990, %v986
    %v1536 = vpack.c.bf16 %v1181, %v1177
    %v1537 = vpack.c.bf16 %v1183, %v1179
    %v1538 = vpack.c.bf16 %v1374, %v1370
    %v1539 = vpack.c.bf16 %v1376, %v1372
    %v1540 = vpack.c.bf16 %v805, %v801
    %v1541 = vpack.c.bf16 %v807, %v803
    %v1542 = vpack.c.bf16 %v998, %v994
    %v1543 = vpack.c.bf16 %v1000, %v996
    %v1544 = vpack.c.bf16 %v1191, %v1187
    %v1545 = vpack.c.bf16 %v1193, %v1189
    %v1546 = vpack.c.bf16 %v1384, %v1380
    %v1547 = vpack.c.bf16 %v1386, %v1382
    %v1548 = vpack.c.bf16 %v815, %v811
    %v1549 = vpack.c.bf16 %v817, %v813
    %v1550 = vpack.c.bf16 %v1008, %v1004
    %v1551 = vpack.c.bf16 %v1010, %v1006
    %v1552 = vpack.c.bf16 %v1201, %v1197
    %v1553 = vpack.c.bf16 %v1203, %v1199
    %v1554 = vpack.c.bf16 %v1394, %v1390
    %v1555 = vpack.c.bf16 %v1396, %v1392
    %v1556 = vpack.c.bf16 %v825, %v821
    %v1557 = vpack.c.bf16 %v827, %v823
    %v1558 = vpack.c.bf16 %v1018, %v1014
    %v1559 = vpack.c.bf16 %v1020, %v1016
    %v1560 = vpack.c.bf16 %v1211, %v1207
    %v1561 = vpack.c.bf16 %v1213, %v1209
    %v1562 = vpack.c.bf16 %v1404, %v1400
    %v1563 = vpack.c.bf16 %v1406, %v1402
    %v1564 = vpack.c.bf16 %v835, %v831
    %v1565 = vpack.c.bf16 %v837, %v833
    %v1566 = vpack.c.bf16 %v1028, %v1024
    %v1567 = vpack.c.bf16 %v1030, %v1026
    %v1568 = vpack.c.bf16 %v1221, %v1217
    %v1569 = vpack.c.bf16 %v1223, %v1219
    %v1570 = vpack.c.bf16 %v1414, %v1410
    %v1571 = vpack.c.bf16 %v1416, %v1412
    %v1572 = vpack.c.bf16 %v845, %v841
    %v1573 = vpack.c.bf16 %v847, %v843
    %v1574 = vpack.c.bf16 %v1038, %v1034
    %v1575 = vpack.c.bf16 %v1040, %v1036
    %v1576 = vpack.c.bf16 %v1231, %v1227
    %v1577 = vpack.c.bf16 %v1233, %v1229
    %v1578 = vpack.c.bf16 %v1424, %v1420
    %v1579 = vpack.c.bf16 %v1426, %v1422
    %v1580 = vld [vmem:[#allocation2] sm:$0xf]
    %v1581 = vld [vmem:[#allocation2 + $0x4] sm:$0xf]
    %v1582 = vld [vmem:[#allocation2 + $0x8] sm:$0xf]
    %v1583 = vld [vmem:[#allocation2 + $0xc] sm:$0xf]
    %v1584 = vld [vmem:[#allocation2 + $0x10] sm:$0xf]
    %v1585 = vld [vmem:[#allocation2 + $0x14] sm:$0xf]
    %v1586 = vld [vmem:[#allocation2 + $0x18] sm:$0xf]
    %v1587 = vld [vmem:[#allocation2 + $0x1c] sm:$0xf]
    %v1588 = vld [vmem:[#allocation2 + $0x20] sm:$0xf]
    %v1589 = vld [vmem:[#allocation2 + $0x24] sm:$0xf]
    %v1590 = vld [vmem:[#allocation2 + $0x28] sm:$0xf]
    %v1591 = vld [vmem:[#allocation2 + $0x2c] sm:$0xf]
    %v1592 = vld [vmem:[#allocation2 + $0x30] sm:$0xf]
    %v1593 = vld [vmem:[#allocation2 + $0x34] sm:$0xf]
    %v1594 = vld [vmem:[#allocation2 + $0x38] sm:$0xf]
    %v1595 = vld [vmem:[#allocation2 + $0x3c] sm:$0xf]
    %v1596 = vld [vmem:[#allocation2 + $0x40] sm:$0xf]
    %v1597 = vld [vmem:[#allocation2 + $0x44] sm:$0xf]
    %v1598 = vld [vmem:[#allocation2 + $0x48] sm:$0xf]
    %v1599 = vld [vmem:[#allocation2 + $0x4c] sm:$0xf]
    %v1600 = vld [vmem:[#allocation2 + $0x50] sm:$0xf]
    %v1601 = vld [vmem:[#allocation2 + $0x54] sm:$0xf]
    %v1602 = vld [vmem:[#allocation2 + $0x58] sm:$0xf]
    %v1603 = vld [vmem:[#allocation2 + $0x5c] sm:$0xf]
    %v1604 = vld [vmem:[#allocation2 + $0x60] sm:$0xf]
    %v1605 = vld [vmem:[#allocation2 + $0x64] sm:$0xf]
    %v1606 = vld [vmem:[#allocation2 + $0x68] sm:$0xf]
    %v1607 = vld [vmem:[#allocation2 + $0x6c] sm:$0xf]
    %v1608 = vld [vmem:[#allocation2 + $0x70] sm:$0xf]
    %v1609 = vld [vmem:[#allocation2 + $0x74] sm:$0xf]
    %v1610 = vld [vmem:[#allocation2 + $0x78] sm:$0xf]
    %v1611 = vld [vmem:[#allocation2 + $0x7c] sm:$0xf]
    %v1612 = vld [vmem:[#allocation2 + $0x80] sm:$0xf]
    %v1613 = vld [vmem:[#allocation2 + $0x84] sm:$0xf]
    %v1614 = vld [vmem:[#allocation2 + $0x88] sm:$0xf]
    %v1615 = vld [vmem:[#allocation2 + $0x8c] sm:$0xf]
    %v1616 = vld [vmem:[#allocation2 + $0x90] sm:$0xf]
    %v1617 = vld [vmem:[#allocation2 + $0x94] sm:$0xf]
    %v1618 = vld [vmem:[#allocation2 + $0x98] sm:$0xf]
    %v1619 = vld [vmem:[#allocation2 + $0x9c] sm:$0xf]
    %v1620 = vld [vmem:[#allocation2 + $0xa0] sm:$0xf]
    %v1621 = vld [vmem:[#allocation2 + $0xa4] sm:$0xf]
    %v1622 = vld [vmem:[#allocation2 + $0xa8] sm:$0xf]
    %v1623 = vld [vmem:[#allocation2 + $0xac] sm:$0xf]
    %v1624 = vld [vmem:[#allocation2 + $0xb0] sm:$0xf]
    %v1625 = vld [vmem:[#allocation2 + $0xb4] sm:$0xf]
    %v1626 = vld [vmem:[#allocation2 + $0xb8] sm:$0xf]
    %v1627 = vld [vmem:[#allocation2 + $0xbc] sm:$0xf]
    %v1628 = vld [vmem:[#allocation2 + $0xc0] sm:$0xf]
    %v1629 = vld [vmem:[#allocation2 + $0xc4] sm:$0xf]
    %v1630 = vld [vmem:[#allocation2 + $0xc8] sm:$0xf]
    %v1631 = vld [vmem:[#allocation2 + $0xcc] sm:$0xf]
    %v1632 = vld [vmem:[#allocation2 + $0xd0] sm:$0xf]
    %v1633 = vld [vmem:[#allocation2 + $0xd4] sm:$0xf]
    %v1634 = vld [vmem:[#allocation2 + $0xd8] sm:$0xf]
    %v1635 = vld [vmem:[#allocation2 + $0xdc] sm:$0xf]
    %v1636 = vld [vmem:[#allocation2 + $0xe0] sm:$0xf]
    %v1637 = vld [vmem:[#allocation2 + $0xe4] sm:$0xf]
    %v1638 = vld [vmem:[#allocation2 + $0xe8] sm:$0xf]
    %v1639 = vld [vmem:[#allocation2 + $0xec] sm:$0xf]
    %v1640 = vld [vmem:[#allocation2 + $0xf0] sm:$0xf]
    %v1641 = vld [vmem:[#allocation2 + $0xf4] sm:$0xf]
    %v1642 = vld [vmem:[#allocation2 + $0xf8] sm:$0xf]
    %v1643 = vld [vmem:[#allocation2 + $0xfc] sm:$0xf]
    %v1644 = vld [vmem:[#allocation2 + $0x100] sm:$0xf]
    %v1645 = vld [vmem:[#allocation2 + $0x104] sm:$0xf]
    %v1646 = vld [vmem:[#allocation2 + $0x108] sm:$0xf]
    %v1647 = vld [vmem:[#allocation2 + $0x10c] sm:$0xf]
    %v1648 = vld [vmem:[#allocation2 + $0x110] sm:$0xf]
    %v1649 = vld [vmem:[#allocation2 + $0x114] sm:$0xf]
    %v1650 = vld [vmem:[#allocation2 + $0x118] sm:$0xf]
    %v1651 = vld [vmem:[#allocation2 + $0x11c] sm:$0xf]
    %v1652 = vld [vmem:[#allocation2 + $0x120] sm:$0xf]
    %v1653 = vld [vmem:[#allocation2 + $0x124] sm:$0xf]
    %v1654 = vld [vmem:[#allocation2 + $0x128] sm:$0xf]
    %v1655 = vld [vmem:[#allocation2 + $0x12c] sm:$0xf]
    %v1656 = vld [vmem:[#allocation2 + $0x130] sm:$0xf]
    %v1657 = vld [vmem:[#allocation2 + $0x134] sm:$0xf]
    %v1658 = vld [vmem:[#allocation2 + $0x138] sm:$0xf]
    %v1659 = vld [vmem:[#allocation2 + $0x13c] sm:$0xf]
    %v1660 = vld [vmem:[#allocation2 + $0x140] sm:$0xf]
    %v1661 = vld [vmem:[#allocation2 + $0x144] sm:$0xf]
    %v1662 = vld [vmem:[#allocation2 + $0x148] sm:$0xf]
    %v1663 = vld [vmem:[#allocation2 + $0x14c] sm:$0xf]
    %v1664 = vld [vmem:[#allocation2 + $0x150] sm:$0xf]
    %v1665 = vld [vmem:[#allocation2 + $0x154] sm:$0xf]
    %v1666 = vld [vmem:[#allocation2 + $0x158] sm:$0xf]
    %v1667 = vld [vmem:[#allocation2 + $0x15c] sm:$0xf]
    %v1668 = vld [vmem:[#allocation2 + $0x160] sm:$0xf]
    %v1669 = vld [vmem:[#allocation2 + $0x164] sm:$0xf]
    %v1670 = vld [vmem:[#allocation2 + $0x168] sm:$0xf]
    %v1671 = vld [vmem:[#allocation2 + $0x16c] sm:$0xf]
    %v1672 = vld [vmem:[#allocation2 + $0x170] sm:$0xf]
    %v1673 = vld [vmem:[#allocation2 + $0x174] sm:$0xf]
    %v1674 = vld [vmem:[#allocation2 + $0x178] sm:$0xf]
    %v1675 = vld [vmem:[#allocation2 + $0x17c] sm:$0xf]
    %v1676 = vld [vmem:[#allocation2 + $0x180] sm:$0xf]
    %v1677 = vld [vmem:[#allocation2 + $0x184] sm:$0xf]
    %v1678 = vld [vmem:[#allocation2 + $0x188] sm:$0xf]
    %v1679 = vld [vmem:[#allocation2 + $0x18c] sm:$0xf]
    %v1680 = vld [vmem:[#allocation2 + $0x190] sm:$0xf]
    %v1681 = vld [vmem:[#allocation2 + $0x194] sm:$0xf]
    %v1682 = vld [vmem:[#allocation2 + $0x198] sm:$0xf]
    %v1683 = vld [vmem:[#allocation2 + $0x19c] sm:$0xf]
    %v1684 = vld [vmem:[#allocation2 + $0x1a0] sm:$0xf]
    %v1685 = vld [vmem:[#allocation2 + $0x1a4] sm:$0xf]
    %v1686 = vld [vmem:[#allocation2 + $0x1a8] sm:$0xf]
    %v1687 = vld [vmem:[#allocation2 + $0x1ac] sm:$0xf]
    %v1688 = vld [vmem:[#allocation2 + $0x1b0] sm:$0xf]
    %v1689 = vld [vmem:[#allocation2 + $0x1b4] sm:$0xf]
    %v1690 = vld [vmem:[#allocation2 + $0x1b8] sm:$0xf]
    %v1691 = vld [vmem:[#allocation2 + $0x1bc] sm:$0xf]
    %v1692 = vld [vmem:[#allocation2 + $0x1c0] sm:$0xf]
    %v1693 = vld [vmem:[#allocation2 + $0x1c4] sm:$0xf]
    %v1694 = vld [vmem:[#allocation2 + $0x1c8] sm:$0xf]
    %v1695 = vld [vmem:[#allocation2 + $0x1cc] sm:$0xf]
    %v1696 = vld [vmem:[#allocation2 + $0x1d0] sm:$0xf]
    %v1697 = vld [vmem:[#allocation2 + $0x1d4] sm:$0xf]
    %v1698 = vld [vmem:[#allocation2 + $0x1d8] sm:$0xf]
    %v1699 = vld [vmem:[#allocation2 + $0x1dc] sm:$0xf]
    %v1700 = vld [vmem:[#allocation2 + $0x1e0] sm:$0xf]
    %v1701 = vld [vmem:[#allocation2 + $0x1e4] sm:$0xf]
    %v1702 = vld [vmem:[#allocation2 + $0x1e8] sm:$0xf]
    %v1703 = vld [vmem:[#allocation2 + $0x1ec] sm:$0xf]
    %v1704 = vld [vmem:[#allocation2 + $0x1f0] sm:$0xf]
    %v1705 = vld [vmem:[#allocation2 + $0x1f4] sm:$0xf]
    %v1706 = vld [vmem:[#allocation2 + $0x1f8] sm:$0xf]
    %v1707 = vld [vmem:[#allocation2 + $0x1fc] sm:$0xf]
    %v1836 = vunpack.c.l.b16 %v1580
    %v1837 = vunpack.c.l.b16 %v1581
    %v1838 = vunpack.c.l.b16 %v1582
    %v1839 = vunpack.c.l.b16 %v1583
    %v1840 = vunpack.c.l.b16 %v1584
    %v1841 = vunpack.c.l.b16 %v1585
    %v1842 = vunpack.c.l.b16 %v1586
    %v1843 = vunpack.c.l.b16 %v1587
    %v1844 = vunpack.c.l.b16 %v1588
    %v1845 = vunpack.c.l.b16 %v1589
    %v1846 = vunpack.c.l.b16 %v1590
    %v1847 = vunpack.c.l.b16 %v1591
    %v1848 = vunpack.c.l.b16 %v1592
    %v1849 = vunpack.c.l.b16 %v1593
    %v1850 = vunpack.c.l.b16 %v1594
    %v1851 = vunpack.c.l.b16 %v1595
    %v1852 = vunpack.c.l.b16 %v1596
    %v1853 = vunpack.c.l.b16 %v1597
    %v1854 = vunpack.c.l.b16 %v1598
    %v1855 = vunpack.c.l.b16 %v1599
    %v1856 = vunpack.c.l.b16 %v1600
    %v1857 = vunpack.c.l.b16 %v1601
    %v1858 = vunpack.c.l.b16 %v1602
    %v1859 = vunpack.c.l.b16 %v1603
    %v1860 = vunpack.c.l.b16 %v1604
    %v1861 = vunpack.c.l.b16 %v1605
    %v1862 = vunpack.c.l.b16 %v1606
    %v1863 = vunpack.c.l.b16 %v1607
    %v1864 = vunpack.c.l.b16 %v1608
    %v1865 = vunpack.c.l.b16 %v1609
    %v1866 = vunpack.c.l.b16 %v1610
    %v1867 = vunpack.c.l.b16 %v1611
    %v1868 = vunpack.c.l.b16 %v1612
    %v1869 = vunpack.c.l.b16 %v1613
    %v1870 = vunpack.c.l.b16 %v1614
    %v1871 = vunpack.c.l.b16 %v1615
    %v1872 = vunpack.c.l.b16 %v1616
    %v1873 = vunpack.c.l.b16 %v1617
    %v1874 = vunpack.c.l.b16 %v1618
    %v1875 = vunpack.c.l.b16 %v1619
    %v1876 = vunpack.c.l.b16 %v1620
    %v1877 = vunpack.c.l.b16 %v1621
    %v1878 = vunpack.c.l.b16 %v1622
    %v1879 = vunpack.c.l.b16 %v1623
    %v1880 = vunpack.c.l.b16 %v1624
    %v1881 = vunpack.c.l.b16 %v1625
    %v1882 = vunpack.c.l.b16 %v1626
    %v1883 = vunpack.c.l.b16 %v1627
    %v1884 = vunpack.c.l.b16 %v1628
    %v1885 = vunpack.c.l.b16 %v1629
    %v1886 = vunpack.c.l.b16 %v1630
    %v1887 = vunpack.c.l.b16 %v1631
    %v1888 = vunpack.c.l.b16 %v1632
    %v1889 = vunpack.c.l.b16 %v1633
    %v1890 = vunpack.c.l.b16 %v1634
    %v1891 = vunpack.c.l.b16 %v1635
    %v1892 = vunpack.c.l.b16 %v1636
    %v1893 = vunpack.c.l.b16 %v1637
    %v1894 = vunpack.c.l.b16 %v1638
    %v1895 = vunpack.c.l.b16 %v1639
    %v1896 = vunpack.c.l.b16 %v1640
    %v1897 = vunpack.c.l.b16 %v1641
    %v1898 = vunpack.c.l.b16 %v1642
    %v1899 = vunpack.c.l.b16 %v1643
    %v1900 = vunpack.c.l.b16 %v1644
    %v1901 = vunpack.c.l.b16 %v1645
    %v1902 = vunpack.c.l.b16 %v1646
    %v1903 = vunpack.c.l.b16 %v1647
    %v1904 = vunpack.c.l.b16 %v1648
    %v1905 = vunpack.c.l.b16 %v1649
    %v1906 = vunpack.c.l.b16 %v1650
    %v1907 = vunpack.c.l.b16 %v1651
    %v1908 = vunpack.c.l.b16 %v1652
    %v1909 = vunpack.c.l.b16 %v1653
    %v1910 = vunpack.c.l.b16 %v1654
    %v1911 = vunpack.c.l.b16 %v1655
    %v1912 = vunpack.c.l.b16 %v1656
    %v1913 = vunpack.c.l.b16 %v1657
    %v1914 = vunpack.c.l.b16 %v1658
    %v1915 = vunpack.c.l.b16 %v1659
    %v1916 = vunpack.c.l.b16 %v1660
    %v1917 = vunpack.c.l.b16 %v1661
    %v1918 = vunpack.c.l.b16 %v1662
    %v1919 = vunpack.c.l.b16 %v1663
    %v1920 = vunpack.c.l.b16 %v1664
    %v1921 = vunpack.c.l.b16 %v1665
    %v1922 = vunpack.c.l.b16 %v1666
    %v1923 = vunpack.c.l.b16 %v1667
    %v1924 = vunpack.c.l.b16 %v1668
    %v1925 = vunpack.c.l.b16 %v1669
    %v1926 = vunpack.c.l.b16 %v1670
    %v1927 = vunpack.c.l.b16 %v1671
    %v1928 = vunpack.c.l.b16 %v1672
    %v1929 = vunpack.c.l.b16 %v1673
    %v1930 = vunpack.c.l.b16 %v1674
    %v1931 = vunpack.c.l.b16 %v1675
    %v1932 = vunpack.c.l.b16 %v1676
    %v1933 = vunpack.c.l.b16 %v1677
    %v1934 = vunpack.c.l.b16 %v1678
    %v1935 = vunpack.c.l.b16 %v1679
    %v1936 = vunpack.c.l.b16 %v1680
    %v1937 = vunpack.c.l.b16 %v1681
    %v1938 = vunpack.c.l.b16 %v1682
    %v1939 = vunpack.c.l.b16 %v1683
    %v1940 = vunpack.c.l.b16 %v1684
    %v1941 = vunpack.c.l.b16 %v1685
    %v1942 = vunpack.c.l.b16 %v1686
    %v1943 = vunpack.c.l.b16 %v1687
    %v1944 = vunpack.c.l.b16 %v1688
    %v1945 = vunpack.c.l.b16 %v1689
    %v1946 = vunpack.c.l.b16 %v1690
    %v1947 = vunpack.c.l.b16 %v1691
    %v1948 = vunpack.c.l.b16 %v1692
    %v1949 = vunpack.c.l.b16 %v1693
    %v1950 = vunpack.c.l.b16 %v1694
    %v1951 = vunpack.c.l.b16 %v1695
    %v1952 = vunpack.c.l.b16 %v1696
    %v1953 = vunpack.c.l.b16 %v1697
    %v1954 = vunpack.c.l.b16 %v1698
    %v1955 = vunpack.c.l.b16 %v1699
    %v1956 = vunpack.c.l.b16 %v1700
    %v1957 = vunpack.c.l.b16 %v1701
    %v1958 = vunpack.c.l.b16 %v1702
    %v1959 = vunpack.c.l.b16 %v1703
    %v1960 = vunpack.c.l.b16 %v1704
    %v1961 = vunpack.c.l.b16 %v1705
    %v1962 = vunpack.c.l.b16 %v1706
    %v1963 = vunpack.c.l.b16 %v1707
    %v1964 = vpack.c.b16 %v1837, %v1836
    %v1965 = vpack.c.b16 %v1839, %v1838
    %v1966 = vpack.c.b16 %v1841, %v1840
    %v1967 = vpack.c.b16 %v1843, %v1842
    %v1968 = vpack.c.b16 %v1845, %v1844
    %v1969 = vpack.c.b16 %v1847, %v1846
    %v1970 = vpack.c.b16 %v1849, %v1848
    %v1971 = vpack.c.b16 %v1851, %v1850
    %v1972 = vpack.c.b16 %v1853, %v1852
    %v1973 = vpack.c.b16 %v1855, %v1854
    %v1974 = vpack.c.b16 %v1857, %v1856
    %v1975 = vpack.c.b16 %v1859, %v1858
    %v1976 = vpack.c.b16 %v1861, %v1860
    %v1977 = vpack.c.b16 %v1863, %v1862
    %v1978 = vpack.c.b16 %v1865, %v1864
    %v1979 = vpack.c.b16 %v1867, %v1866
    %v1980 = vpack.c.b16 %v1869, %v1868
    %v1981 = vpack.c.b16 %v1871, %v1870
    %v1982 = vpack.c.b16 %v1873, %v1872
    %v1983 = vpack.c.b16 %v1875, %v1874
    %v1984 = vpack.c.b16 %v1877, %v1876
    %v1985 = vpack.c.b16 %v1879, %v1878
    %v1986 = vpack.c.b16 %v1881, %v1880
    %v1987 = vpack.c.b16 %v1883, %v1882
    %v1988 = vpack.c.b16 %v1885, %v1884
    %v1989 = vpack.c.b16 %v1887, %v1886
    %v1990 = vpack.c.b16 %v1889, %v1888
    %v1991 = vpack.c.b16 %v1891, %v1890
    %v1992 = vpack.c.b16 %v1893, %v1892
    %v1993 = vpack.c.b16 %v1895, %v1894
    %v1994 = vpack.c.b16 %v1897, %v1896
    %v1995 = vpack.c.b16 %v1899, %v1898
    %v1996 = vpack.c.b16 %v1901, %v1900
    %v1997 = vpack.c.b16 %v1903, %v1902
    %v1998 = vpack.c.b16 %v1905, %v1904
    %v1999 = vpack.c.b16 %v1907, %v1906
    %v2000 = vpack.c.b16 %v1909, %v1908
    %v2001 = vpack.c.b16 %v1911, %v1910
    %v2002 = vpack.c.b16 %v1913, %v1912
    %v2003 = vpack.c.b16 %v1915, %v1914
    %v2004 = vpack.c.b16 %v1917, %v1916
    %v2005 = vpack.c.b16 %v1919, %v1918
    %v2006 = vpack.c.b16 %v1921, %v1920
    %v2007 = vpack.c.b16 %v1923, %v1922
    %v2008 = vpack.c.b16 %v1925, %v1924
    %v2009 = vpack.c.b16 %v1927, %v1926
    %v2010 = vpack.c.b16 %v1929, %v1928
    %v2011 = vpack.c.b16 %v1931, %v1930
    %v2012 = vpack.c.b16 %v1933, %v1932
    %v2013 = vpack.c.b16 %v1935, %v1934
    %v2014 = vpack.c.b16 %v1937, %v1936
    %v2015 = vpack.c.b16 %v1939, %v1938
    %v2016 = vpack.c.b16 %v1941, %v1940
    %v2017 = vpack.c.b16 %v1943, %v1942
    %v2018 = vpack.c.b16 %v1945, %v1944
    %v2019 = vpack.c.b16 %v1947, %v1946
    %v2020 = vpack.c.b16 %v1949, %v1948
    %v2021 = vpack.c.b16 %v1951, %v1950
    %v2022 = vpack.c.b16 %v1953, %v1952
    %v2023 = vpack.c.b16 %v1955, %v1954
    %v2024 = vpack.c.b16 %v1957, %v1956
    %v2025 = vpack.c.b16 %v1959, %v1958
    %v2026 = vpack.c.b16 %v1961, %v1960
    %v2027 = vpack.c.b16 %v1963, %v1962
    %2092 = vmatprep.subr.bf16.mxu0 0
    %2093 = vmatpush1.bf16.msra.mxu0 %v1964
    %2094 = vmatprep.subr.bf16.mxu0 0
    %2095 = vmatpush1.bf16.msra.mxu0 %v1965
    %2096 = vmatprep.subr.bf16.mxu0 0
    %2097 = vmatpush1.bf16.msra.mxu0 %v1966
    %2098 = vmatprep.subr.bf16.mxu0 0
    %2099 = vmatpush1.bf16.msra.mxu0 %v1967
    %2100 = vmatprep.subr.bf16.mxu0 0
    %2101 = vmatpush1.bf16.msra.mxu0 %v1968
    %2102 = vmatprep.subr.bf16.mxu0 0
    %2103 = vmatpush1.bf16.msra.mxu0 %v1969
    %2104 = vmatprep.subr.bf16.mxu0 0
    %2105 = vmatpush1.bf16.msra.mxu0 %v1970
    %2106 = vmatprep.subr.bf16.mxu0 0
    %2107 = vmatpush1.bf16.msra.mxu0 %v1971
    %2108 = vmatprep.subr.bf16.mxu0 0
    %2109 = vmatpush1.bf16.msra.mxu0 %v1972
    %2110 = vmatprep.subr.bf16.mxu0 0
    %2111 = vmatpush1.bf16.msra.mxu0 %v1973
    %2112 = vmatprep.subr.bf16.mxu0 0
    %2113 = vmatpush1.bf16.msra.mxu0 %v1974
    %2114 = vmatprep.subr.bf16.mxu0 0
    %2115 = vmatpush1.bf16.msra.mxu0 %v1975
    %2116 = vmatprep.subr.bf16.mxu0 0
    %2117 = vmatpush1.bf16.msra.mxu0 %v1976
    %2118 = vmatprep.subr.bf16.mxu0 0
    %2119 = vmatpush1.bf16.msra.mxu0 %v1977
    %2120 = vmatprep.subr.bf16.mxu0 0
    %2121 = vmatpush1.bf16.msra.mxu0 %v1978
    %2122 = vmatprep.subr.bf16.mxu0 0
    %2123 = vmatpush1.bf16.msra.mxu0 %v1979
    %2124 = vmatprep.mubr.bf16.mxu0 %v1453
    %2125 = vmatmul.mubr.bf16.gmra.mrb[0].mxu0 %v1452
    %v2126 = vpop.f32.mrb[0].mxu0
    %v2127 = vadd.f32 0.0, %v2126
    %v2128 = vpop.f32.mrb[0].mxu0
    %v2129 = vpop.f32.mrb[0].mxu0
    %v2130 = vadd.f32 0.0, %v2129
    %v2131 = vpop.f32.mrb[0].mxu0
    %2132 = vmatprep.mubr.bf16.mxu0 %v1461
    %2133 = vmatmul.mubr.bf16.gmra.mrb[0].mxu0 %v1460
    %v2134 = vpop.f32.mrb[0].mxu0
    %v2135 = vadd.f32 0.0, %v2134
    %v2136 = vpop.f32.mrb[0].mxu0
    %v2137 = vpop.f32.mrb[0].mxu0
    %v2138 = vadd.f32 0.0, %v2137
    %v2139 = vpop.f32.mrb[0].mxu0
    %2140 = vmatprep.mubr.bf16.mxu0 %v1469
    %2141 = vmatmul.mubr.bf16.gmra.mrb[0].mxu0 %v1468
    %v2142 = vpop.f32.mrb[0].mxu0
    %v2143 = vadd.f32 0.0, %v2142
    %v2144 = vpop.f32.mrb[0].mxu0
    %v2145 = vpop.f32.mrb[0].mxu0
    %v2146 = vadd.f32 0.0, %v2145
    %v2147 = vpop.f32.mrb[0].mxu0
    %2148 = vmatprep.mubr.bf16.mxu0 %v1477
    %2149 = vmatmul.mubr.bf16.gmra.mrb[0].mxu0 %v1476
    %v2150 = vpop.f32.mrb[0].mxu0
    %v2151 = vadd.f32 0.0, %v2150
    %v2152 = vpop.f32.mrb[0].mxu0
    %v2153 = vpop.f32.mrb[0].mxu0
    %v2154 = vadd.f32 0.0, %v2153
    %v2155 = vpop.f32.mrb[0].mxu0
    %2156 = vmatprep.mubr.bf16.mxu0 %v1485
    %2157 = vmatmul.mubr.bf16.gmra.mrb[0].mxu0 %v1484
    %v2158 = vpop.f32.mrb[0].mxu0
    %v2159 = vadd.f32 0.0, %v2158
    %v2160 = vpop.f32.mrb[0].mxu0
    %v2161 = vpop.f32.mrb[0].mxu0
    %v2162 = vadd.f32 0.0, %v2161
    %v2163 = vpop.f32.mrb[0].mxu0
    %2164 = vmatprep.mubr.bf16.mxu0 %v1493
    %2165 = vmatmul.mubr.bf16.gmra.mrb[0].mxu0 %v1492
    %v2166 = vpop.f32.mrb[0].mxu0
    %v2167 = vadd.f32 0.0, %v2166
    %v2168 = vpop.f32.mrb[0].mxu0
    %v2169 = vpop.f32.mrb[0].mxu0
    %v2170 = vadd.f32 0.0, %v2169
    %v2171 = vpop.f32.mrb[0].mxu0
    %2172 = vmatprep.mubr.bf16.mxu0 %v1501
    %2173 = vmatmul.mubr.bf16.gmra.mrb[0].mxu0 %v1500
    %v2174 = vpop.f32.mrb[0].mxu0
    %v2175 = vadd.f32 0.0, %v2174
    %v2176 = vpop.f32.mrb[0].mxu0
    %v2177 = vpop.f32.mrb[0].mxu0
    %v2178 = vadd.f32 0.0, %v2177
    %v2179 = vpop.f32.mrb[0].mxu0
    %2180 = vmatprep.mubr.bf16.mxu0 %v1509
    %2181 = vmatmul.mubr.bf16.gmra.mrb[0].mxu0 %v1508
    %v2182 = vpop.f32.mrb[0].mxu0
    %v2183 = vadd.f32 0.0, %v2182
    %v2184 = vpop.f32.mrb[0].mxu0
    %v2185 = vpop.f32.mrb[0].mxu0
    %v2186 = vadd.f32 0.0, %v2185
    %v2187 = vpop.f32.mrb[0].mxu0
    %2188 = vmatprep.mubr.bf16.mxu0 %v1517
    %2189 = vmatmul.mubr.bf16.gmra.mrb[0].mxu0 %v1516
    %v2190 = vpop.f32.mrb[0].mxu0
    %v2191 = vadd.f32 0.0, %v2190
    %v2192 = vpop.f32.mrb[0].mxu0
    %v2193 = vpop.f32.mrb[0].mxu0
    %v2194 = vadd.f32 0.0, %v2193
    %v2195 = vpop.f32.mrb[0].mxu0
    %2196 = vmatprep.mubr.bf16.mxu0 %v1525
    %2197 = vmatmul.mubr.bf16.gmra.mrb[0].mxu0 %v1524
    %v2198 = vpop.f32.mrb[0].mxu0
    %v2199 = vadd.f32 0.0, %v2198
    %v2200 = vpop.f32.mrb[0].mxu0
    %v2201 = vpop.f32.mrb[0].mxu0
    %v2202 = vadd.f32 0.0, %v2201
    %v2203 = vpop.f32.mrb[0].mxu0
    %2204 = vmatprep.mubr.bf16.mxu0 %v1533
    %2205 = vmatmul.mubr.bf16.gmra.mrb[0].mxu0 %v1532
    %v2206 = vpop.f32.mrb[0].mxu0
    %v2207 = vadd.f32 0.0, %v2206
    %v2208 = vpop.f32.mrb[0].mxu0
    %v2209 = vpop.f32.mrb[0].mxu0
    %v2210 = vadd.f32 0.0, %v2209
    %v2211 = vpop.f32.mrb[0].mxu0
    %2212 = vmatprep.mubr.bf16.mxu0 %v1541
    %2213 = vmatmul.mubr.bf16.gmra.mrb[0].mxu0 %v1540
    %v2214 = vpop.f32.mrb[0].mxu0
    %v2215 = vadd.f32 0.0, %v2214
    %v2216 = vpop.f32.mrb[0].mxu0
    %v2217 = vpop.f32.mrb[0].mxu0
    %v2218 = vadd.f32 0.0, %v2217
    %v2219 = vpop.f32.mrb[0].mxu0
    %2220 = vmatprep.mubr.bf16.mxu0 %v1549
    %2221 = vmatmul.mubr.bf16.gmra.mrb[0].mxu0 %v1548
    %v2222 = vpop.f32.mrb[0].mxu0
    %v2223 = vadd.f32 0.0, %v2222
    %v2224 = vpop.f32.mrb[0].mxu0
    %v2225 = vpop.f32.mrb[0].mxu0
    %v2226 = vadd.f32 0.0, %v2225
    %v2227 = vpop.f32.mrb[0].mxu0
    %2228 = vmatprep.mubr.bf16.mxu0 %v1557
    %2229 = vmatmul.mubr.bf16.gmra.mrb[0].mxu0 %v1556
    %v2230 = vpop.f32.mrb[0].mxu0
    %v2231 = vadd.f32 0.0, %v2230
    %v2232 = vpop.f32.mrb[0].mxu0
    %v2233 = vpop.f32.mrb[0].mxu0
    %v2234 = vadd.f32 0.0, %v2233
    %v2235 = vpop.f32.mrb[0].mxu0
    %2236 = vmatprep.mubr.bf16.mxu0 %v1565
    %2237 = vmatmul.mubr.bf16.gmra.mrb[0].mxu0 %v1564
    %v2238 = vpop.f32.mrb[0].mxu0
    %v2239 = vadd.f32 0.0, %v2238
    %v2240 = vpop.f32.mrb[0].mxu0
    %v2241 = vpop.f32.mrb[0].mxu0
    %v2242 = vadd.f32 0.0, %v2241
    %v2243 = vpop.f32.mrb[0].mxu0
    %2244 = vmatprep.mubr.bf16.mxu0 %v1573
    %2245 = vmatmul.mubr.bf16.gmra.mrb[0].mxu0 %v1572
    %v2246 = vpop.f32.mrb[0].mxu0
    %v2247 = vadd.f32 0.0, %v2246
    %v2248 = vpop.f32.mrb[0].mxu0
    %v2249 = vpop.f32.mrb[0].mxu0
    %v2250 = vadd.f32 0.0, %v2249
    %v2251 = vpop.f32.mrb[0].mxu0
    %2252 = vdwg.mxu0
    %2253 = vmatprep.subr.bf16.mxu0 0
    %2254 = vmatpush1.bf16.msra.mxu0 %v1980
    %2255 = vmatprep.subr.bf16.mxu0 0
    %2256 = vmatpush1.bf16.msra.mxu0 %v1981
    %2257 = vmatprep.subr.bf16.mxu0 0
    %2258 = vmatpush1.bf16.msra.mxu0 %v1982
    %2259 = vmatprep.subr.bf16.mxu0 0
    %2260 = vmatpush1.bf16.msra.mxu0 %v1983
    %2261 = vmatprep.subr.bf16.mxu0 0
    %2262 = vmatpush1.bf16.msra.mxu0 %v1984
    %2263 = vmatprep.subr.bf16.mxu0 0
    %2264 = vmatpush1.bf16.msra.mxu0 %v1985
    %2265 = vmatprep.subr.bf16.mxu0 0
    %2266 = vmatpush1.bf16.msra.mxu0 %v1986
    %2267 = vmatprep.subr.bf16.mxu0 0
    %2268 = vmatpush1.bf16.msra.mxu0 %v1987
    %2269 = vmatprep.subr.bf16.mxu0 0
    %2270 = vmatpush1.bf16.msra.mxu0 %v1988
    %2271 = vmatprep.subr.bf16.mxu0 0
    %2272 = vmatpush1.bf16.msra.mxu0 %v1989
    %2273 = vmatprep.subr.bf16.mxu0 0
    %2274 = vmatpush1.bf16.msra.mxu0 %v1990
    %2275 = vmatprep.subr.bf16.mxu0 0
    %2276 = vmatpush1.bf16.msra.mxu0 %v1991
    %2277 = vmatprep.subr.bf16.mxu0 0
    %2278 = vmatpush1.bf16.msra.mxu0 %v1992
    %2279 = vmatprep.subr.bf16.mxu0 0
    %2280 = vmatpush1.bf16.msra.mxu0 %v1993
    %2281 = vmatprep.subr.bf16.mxu0 0
    %2282 = vmatpush1.bf16.msra.mxu0 %v1994
    %2283 = vmatprep.subr.bf16.mxu0 0
    %2284 = vmatpush1.bf16.msra.mxu0 %v1995
    %2285 = vmatprep.mubr.bf16.mxu0 %v1455
    %2286 = vmatmul.mubr.bf16.gmra.mrb[0].mxu0 %v1454
    %v2287 = vpop.f32.mrb[0].mxu0
    %v2288 = vadd.f32 %v2127, %v2287
    %v2289 = vpop.f32.mrb[0].mxu0
    %v2290 = vpop.f32.mrb[0].mxu0
    %v2291 = vadd.f32 %v2130, %v2290
    %v2292 = vpop.f32.mrb[0].mxu0
    %2293 = vmatprep.mubr.bf16.mxu0 %v1463
    %2294 = vmatmul.mubr.bf16.gmra.mrb[0].mxu0 %v1462
    %v2295 = vpop.f32.mrb[0].mxu0
    %v2296 = vadd.f32 %v2135, %v2295
    %v2297 = vpop.f32.mrb[0].mxu0
    %v2298 = vpop.f32.mrb[0].mxu0
    %v2299 = vadd.f32 %v2138, %v2298
    %v2300 = vpop.f32.mrb[0].mxu0
    %2301 = vmatprep.mubr.bf16.mxu0 %v1471
    %2302 = vmatmul.mubr.bf16.gmra.mrb[0].mxu0 %v1470
    %v2303 = vpop.f32.mrb[0].mxu0
    %v2304 = vadd.f32 %v2143, %v2303
    %v2305 = vpop.f32.mrb[0].mxu0
    %v2306 = vpop.f32.mrb[0].mxu0
    %v2307 = vadd.f32 %v2146, %v2306
    %v2308 = vpop.f32.mrb[0].mxu0
    %2309 = vmatprep.mubr.bf16.mxu0 %v1479
    %2310 = vmatmul.mubr.bf16.gmra.mrb[0].mxu0 %v1478
    %v2311 = vpop.f32.mrb[0].mxu0
    %v2312 = vadd.f32 %v2151, %v2311
    %v2313 = vpop.f32.mrb[0].mxu0
    %v2314 = vpop.f32.mrb[0].mxu0
    %v2315 = vadd.f32 %v2154, %v2314
    %v2316 = vpop.f32.mrb[0].mxu0
    %2317 = vmatprep.mubr.bf16.mxu0 %v1487
    %2318 = vmatmul.mubr.bf16.gmra.mrb[0].mxu0 %v1486
    %v2319 = vpop.f32.mrb[0].mxu0
    %v2320 = vadd.f32 %v2159, %v2319
    %v2321 = vpop.f32.mrb[0].mxu0
    %v2322 = vpop.f32.mrb[0].mxu0
    %v2323 = vadd.f32 %v2162, %v2322
    %v2324 = vpop.f32.mrb[0].mxu0
    %2325 = vmatprep.mubr.bf16.mxu0 %v1495
    %2326 = vmatmul.mubr.bf16.gmra.mrb[0].mxu0 %v1494
    %v2327 = vpop.f32.mrb[0].mxu0
    %v2328 = vadd.f32 %v2167, %v2327
    %v2329 = vpop.f32.mrb[0].mxu0
    %v2330 = vpop.f32.mrb[0].mxu0
    %v2331 = vadd.f32 %v2170, %v2330
    %v2332 = vpop.f32.mrb[0].mxu0
    %2333 = vmatprep.mubr.bf16.mxu0 %v1503
    %2334 = vmatmul.mubr.bf16.gmra.mrb[0].mxu0 %v1502
    %v2335 = vpop.f32.mrb[0].mxu0
    %v2336 = vadd.f32 %v2175, %v2335
    %v2337 = vpop.f32.mrb[0].mxu0
    %v2338 = vpop.f32.mrb[0].mxu0
    %v2339 = vadd.f32 %v2178, %v2338
    %v2340 = vpop.f32.mrb[0].mxu0
    %2341 = vmatprep.mubr.bf16.mxu0 %v1511
    %2342 = vmatmul.mubr.bf16.gmra.mrb[0].mxu0 %v1510
    %v2343 = vpop.f32.mrb[0].mxu0
    %v2344 = vadd.f32 %v2183, %v2343
    %v2345 = vpop.f32.mrb[0].mxu0
    %v2346 = vpop.f32.mrb[0].mxu0
    %v2347 = vadd.f32 %v2186, %v2346
    %v2348 = vpop.f32.mrb[0].mxu0
    %2349 = vmatprep.mubr.bf16.mxu0 %v1519
    %2350 = vmatmul.mubr.bf16.gmra.mrb[0].mxu0 %v1518
    %v2351 = vpop.f32.mrb[0].mxu0
    %v2352 = vadd.f32 %v2191, %v2351
    %v2353 = vpop.f32.mrb[0].mxu0
    %v2354 = vpop.f32.mrb[0].mxu0
    %v2355 = vadd.f32 %v2194, %v2354
    %v2356 = vpop.f32.mrb[0].mxu0
    %2357 = vmatprep.mubr.bf16.mxu0 %v1527
    %2358 = vmatmul.mubr.bf16.gmra.mrb[0].mxu0 %v1526
    %v2359 = vpop.f32.mrb[0].mxu0
    %v2360 = vadd.f32 %v2199, %v2359
    %v2361 = vpop.f32.mrb[0].mxu0
    %v2362 = vpop.f32.mrb[0].mxu0
    %v2363 = vadd.f32 %v2202, %v2362
    %v2364 = vpop.f32.mrb[0].mxu0
    %2365 = vmatprep.mubr.bf16.mxu0 %v1535
    %2366 = vmatmul.mubr.bf16.gmra.mrb[0].mxu0 %v1534
    %v2367 = vpop.f32.mrb[0].mxu0
    %v2368 = vadd.f32 %v2207, %v2367
    %v2369 = vpop.f32.mrb[0].mxu0
    %v2370 = vpop.f32.mrb[0].mxu0
    %v2371 = vadd.f32 %v2210, %v2370
    %v2372 = vpop.f32.mrb[0].mxu0
    %2373 = vmatprep.mubr.bf16.mxu0 %v1543
    %2374 = vmatmul.mubr.bf16.gmra.mrb[0].mxu0 %v1542
    %v2375 = vpop.f32.mrb[0].mxu0
    %v2376 = vadd.f32 %v2215, %v2375
    %v2377 = vpop.f32.mrb[0].mxu0
    %v2378 = vpop.f32.mrb[0].mxu0
    %v2379 = vadd.f32 %v2218, %v2378
    %v2380 = vpop.f32.mrb[0].mxu0
    %2381 = vmatprep.mubr.bf16.mxu0 %v1551
    %2382 = vmatmul.mubr.bf16.gmra.mrb[0].mxu0 %v1550
    %v2383 = vpop.f32.mrb[0].mxu0
    %v2384 = vadd.f32 %v2223, %v2383
    %v2385 = vpop.f32.mrb[0].mxu0
    %v2386 = vpop.f32.mrb[0].mxu0
    %v2387 = vadd.f32 %v2226, %v2386
    %v2388 = vpop.f32.mrb[0].mxu0
    %2389 = vmatprep.mubr.bf16.mxu0 %v1559
    %2390 = vmatmul.mubr.bf16.gmra.mrb[0].mxu0 %v1558
    %v2391 = vpop.f32.mrb[0].mxu0
    %v2392 = vadd.f32 %v2231, %v2391
    %v2393 = vpop.f32.mrb[0].mxu0
    %v2394 = vpop.f32.mrb[0].mxu0
    %v2395 = vadd.f32 %v2234, %v2394
    %v2396 = vpop.f32.mrb[0].mxu0
    %2397 = vmatprep.mubr.bf16.mxu0 %v1567
    %2398 = vmatmul.mubr.bf16.gmra.mrb[0].mxu0 %v1566
    %v2399 = vpop.f32.mrb[0].mxu0
    %v2400 = vadd.f32 %v2239, %v2399
    %v2401 = vpop.f32.mrb[0].mxu0
    %v2402 = vpop.f32.mrb[0].mxu0
    %v2403 = vadd.f32 %v2242, %v2402
    %v2404 = vpop.f32.mrb[0].mxu0
    %2405 = vmatprep.mubr.bf16.mxu0 %v1575
    %2406 = vmatmul.mubr.bf16.gmra.mrb[0].mxu0 %v1574
    %v2407 = vpop.f32.mrb[0].mxu0
    %v2408 = vadd.f32 %v2247, %v2407
    %v2409 = vpop.f32.mrb[0].mxu0
    %v2410 = vpop.f32.mrb[0].mxu0
    %v2411 = vadd.f32 %v2250, %v2410
    %v2412 = vpop.f32.mrb[0].mxu0
    %2413 = vdwg.mxu0
    %2414 = vmatprep.subr.bf16.mxu0 0
    %2415 = vmatpush1.bf16.msra.mxu0 %v1996
    %2416 = vmatprep.subr.bf16.mxu0 0
    %2417 = vmatpush1.bf16.msra.mxu0 %v1997
    %2418 = vmatprep.subr.bf16.mxu0 0
    %2419 = vmatpush1.bf16.msra.mxu0 %v1998
    %2420 = vmatprep.subr.bf16.mxu0 0
    %2421 = vmatpush1.bf16.msra.mxu0 %v1999
    %2422 = vmatprep.subr.bf16.mxu0 0
    %2423 = vmatpush1.bf16.msra.mxu0 %v2000
    %2424 = vmatprep.subr.bf16.mxu0 0
    %2425 = vmatpush1.bf16.msra.mxu0 %v2001
    %2426 = vmatprep.subr.bf16.mxu0 0
    %2427 = vmatpush1.bf16.msra.mxu0 %v2002
    %2428 = vmatprep.subr.bf16.mxu0 0
    %2429 = vmatpush1.bf16.msra.mxu0 %v2003
    %2430 = vmatprep.subr.bf16.mxu0 0
    %2431 = vmatpush1.bf16.msra.mxu0 %v2004
    %2432 = vmatprep.subr.bf16.mxu0 0
    %2433 = vmatpush1.bf16.msra.mxu0 %v2005
    %2434 = vmatprep.subr.bf16.mxu0 0
    %2435 = vmatpush1.bf16.msra.mxu0 %v2006
    %2436 = vmatprep.subr.bf16.mxu0 0
    %2437 = vmatpush1.bf16.msra.mxu0 %v2007
    %2438 = vmatprep.subr.bf16.mxu0 0
    %2439 = vmatpush1.bf16.msra.mxu0 %v2008
    %2440 = vmatprep.subr.bf16.mxu0 0
    %2441 = vmatpush1.bf16.msra.mxu0 %v2009
    %2442 = vmatprep.subr.bf16.mxu0 0
    %2443 = vmatpush1.bf16.msra.mxu0 %v2010
    %2444 = vmatprep.subr.bf16.mxu0 0
    %2445 = vmatpush1.bf16.msra.mxu0 %v2011
    %2446 = vmatprep.mubr.bf16.mxu0 %v1457
    %2447 = vmatmul.mubr.bf16.gmra.mrb[0].mxu0 %v1456
    %v2448 = vpop.f32.mrb[0].mxu0
    %v2449 = vadd.f32 %v2288, %v2448
    %v2450 = vpop.f32.mrb[0].mxu0
    %v2451 = vpop.f32.mrb[0].mxu0
    %v2452 = vadd.f32 %v2291, %v2451
    %v2453 = vpop.f32.mrb[0].mxu0
    %2454 = vmatprep.mubr.bf16.mxu0 %v1465
    %2455 = vmatmul.mubr.bf16.gmra.mrb[0].mxu0 %v1464
    %v2456 = vpop.f32.mrb[0].mxu0
    %v2457 = vadd.f32 %v2296, %v2456
    %v2458 = vpop.f32.mrb[0].mxu0
    %v2459 = vpop.f32.mrb[0].mxu0
    %v2460 = vadd.f32 %v2299, %v2459
    %v2461 = vpop.f32.mrb[0].mxu0
    %2462 = vmatprep.mubr.bf16.mxu0 %v1473
    %2463 = vmatmul.mubr.bf16.gmra.mrb[0].mxu0 %v1472
    %v2464 = vpop.f32.mrb[0].mxu0
    %v2465 = vadd.f32 %v2304, %v2464
    %v2466 = vpop.f32.mrb[0].mxu0
    %v2467 = vpop.f32.mrb[0].mxu0
    %v2468 = vadd.f32 %v2307, %v2467
    %v2469 = vpop.f32.mrb[0].mxu0
    %2470 = vmatprep.mubr.bf16.mxu0 %v1481
    %2471 = vmatmul.mubr.bf16.gmra.mrb[0].mxu0 %v1480
    %v2472 = vpop.f32.mrb[0].mxu0
    %v2473 = vadd.f32 %v2312, %v2472
    %v2474 = vpop.f32.mrb[0].mxu0
    %v2475 = vpop.f32.mrb[0].mxu0
    %v2476 = vadd.f32 %v2315, %v2475
    %v2477 = vpop.f32.mrb[0].mxu0
    %2478 = vmatprep.mubr.bf16.mxu0 %v1489
    %2479 = vmatmul.mubr.bf16.gmra.mrb[0].mxu0 %v1488
    %v2480 = vpop.f32.mrb[0].mxu0
    %v2481 = vadd.f32 %v2320, %v2480
    %v2482 = vpop.f32.mrb[0].mxu0
    %v2483 = vpop.f32.mrb[0].mxu0
    %v2484 = vadd.f32 %v2323, %v2483
    %v2485 = vpop.f32.mrb[0].mxu0
    %2486 = vmatprep.mubr.bf16.mxu0 %v1497
    %2487 = vmatmul.mubr.bf16.gmra.mrb[0].mxu0 %v1496
    %v2488 = vpop.f32.mrb[0].mxu0
    %v2489 = vadd.f32 %v2328, %v2488
    %v2490 = vpop.f32.mrb[0].mxu0
    %v2491 = vpop.f32.mrb[0].mxu0
    %v2492 = vadd.f32 %v2331, %v2491
    %v2493 = vpop.f32.mrb[0].mxu0
    %2494 = vmatprep.mubr.bf16.mxu0 %v1505
    %2495 = vmatmul.mubr.bf16.gmra.mrb[0].mxu0 %v1504
    %v2496 = vpop.f32.mrb[0].mxu0
    %v2497 = vadd.f32 %v2336, %v2496
    %v2498 = vpop.f32.mrb[0].mxu0
    %v2499 = vpop.f32.mrb[0].mxu0
    %v2500 = vadd.f32 %v2339, %v2499
    %v2501 = vpop.f32.mrb[0].mxu0
    %2502 = vmatprep.mubr.bf16.mxu0 %v1513
    %2503 = vmatmul.mubr.bf16.gmra.mrb[0].mxu0 %v1512
    %v2504 = vpop.f32.mrb[0].mxu0
    %v2505 = vadd.f32 %v2344, %v2504
    %v2506 = vpop.f32.mrb[0].mxu0
    %v2507 = vpop.f32.mrb[0].mxu0
    %v2508 = vadd.f32 %v2347, %v2507
    %v2509 = vpop.f32.mrb[0].mxu0
    %2510 = vmatprep.mubr.bf16.mxu0 %v1521
    %2511 = vmatmul.mubr.bf16.gmra.mrb[0].mxu0 %v1520
    %v2512 = vpop.f32.mrb[0].mxu0
    %v2513 = vadd.f32 %v2352, %v2512
    %v2514 = vpop.f32.mrb[0].mxu0
    %v2515 = vpop.f32.mrb[0].mxu0
    %v2516 = vadd.f32 %v2355, %v2515
    %v2517 = vpop.f32.mrb[0].mxu0
    %2518 = vmatprep.mubr.bf16.mxu0 %v1529
    %2519 = vmatmul.mubr.bf16.gmra.mrb[0].mxu0 %v1528
    %v2520 = vpop.f32.mrb[0].mxu0
    %v2521 = vadd.f32 %v2360, %v2520
    %v2522 = vpop.f32.mrb[0].mxu0
    %v2523 = vpop.f32.mrb[0].mxu0
    %v2524 = vadd.f32 %v2363, %v2523
    %v2525 = vpop.f32.mrb[0].mxu0
    %2526 = vmatprep.mubr.bf16.mxu0 %v1537
    %2527 = vmatmul.mubr.bf16.gmra.mrb[0].mxu0 %v1536
    %v2528 = vpop.f32.mrb[0].mxu0
    %v2529 = vadd.f32 %v2368, %v2528
    %v2530 = vpop.f32.mrb[0].mxu0
    %v2531 = vpop.f32.mrb[0].mxu0
    %v2532 = vadd.f32 %v2371, %v2531
    %v2533 = vpop.f32.mrb[0].mxu0
    %2534 = vmatprep.mubr.bf16.mxu0 %v1545
    %2535 = vmatmul.mubr.bf16.gmra.mrb[0].mxu0 %v1544
    %v2536 = vpop.f32.mrb[0].mxu0
    %v2537 = vadd.f32 %v2376, %v2536
    %v2538 = vpop.f32.mrb[0].mxu0
    %v2539 = vpop.f32.mrb[0].mxu0
    %v2540 = vadd.f32 %v2379, %v2539
    %v2541 = vpop.f32.mrb[0].mxu0
    %2542 = vmatprep.mubr.bf16.mxu0 %v1553
    %2543 = vmatmul.mubr.bf16.gmra.mrb[0].mxu0 %v1552
    %v2544 = vpop.f32.mrb[0].mxu0
    %v2545 = vadd.f32 %v2384, %v2544
    %v2546 = vpop.f32.mrb[0].mxu0
    %v2547 = vpop.f32.mrb[0].mxu0
    %v2548 = vadd.f32 %v2387, %v2547
    %v2549 = vpop.f32.mrb[0].mxu0
    %2550 = vmatprep.mubr.bf16.mxu0 %v1561
    %2551 = vmatmul.mubr.bf16.gmra.mrb[0].mxu0 %v1560
    %v2552 = vpop.f32.mrb[0].mxu0
    %v2553 = vadd.f32 %v2392, %v2552
    %v2554 = vpop.f32.mrb[0].mxu0
    %v2555 = vpop.f32.mrb[0].mxu0
    %v2556 = vadd.f32 %v2395, %v2555
    %v2557 = vpop.f32.mrb[0].mxu0
    %2558 = vmatprep.mubr.bf16.mxu0 %v1569
    %2559 = vmatmul.mubr.bf16.gmra.mrb[0].mxu0 %v1568
    %v2560 = vpop.f32.mrb[0].mxu0
    %v2561 = vadd.f32 %v2400, %v2560
    %v2562 = vpop.f32.mrb[0].mxu0
    %v2563 = vpop.f32.mrb[0].mxu0
    %v2564 = vadd.f32 %v2403, %v2563
    %v2565 = vpop.f32.mrb[0].mxu0
    %2566 = vmatprep.mubr.bf16.mxu0 %v1577
    %2567 = vmatmul.mubr.bf16.gmra.mrb[0].mxu0 %v1576
    %v2568 = vpop.f32.mrb[0].mxu0
    %v2569 = vadd.f32 %v2408, %v2568
    %v2570 = vpop.f32.mrb[0].mxu0
    %v2571 = vpop.f32.mrb[0].mxu0
    %v2572 = vadd.f32 %v2411, %v2571
    %v2573 = vpop.f32.mrb[0].mxu0
    %2574 = vdwg.mxu0
    %2575 = vmatprep.subr.bf16.mxu0 0
    %2576 = vmatpush1.bf16.msra.mxu0 %v2012
    %2577 = vmatprep.subr.bf16.mxu0 0
    %2578 = vmatpush1.bf16.msra.mxu0 %v2013
    %2579 = vmatprep.subr.bf16.mxu0 0
    %2580 = vmatpush1.bf16.msra.mxu0 %v2014
    %2581 = vmatprep.subr.bf16.mxu0 0
    %2582 = vmatpush1.bf16.msra.mxu0 %v2015
    %2583 = vmatprep.subr.bf16.mxu0 0
    %2584 = vmatpush1.bf16.msra.mxu0 %v2016
    %2585 = vmatprep.subr.bf16.mxu0 0
    %2586 = vmatpush1.bf16.msra.mxu0 %v2017
    %2587 = vmatprep.subr.bf16.mxu0 0
    %2588 = vmatpush1.bf16.msra.mxu0 %v2018
    %2589 = vmatprep.subr.bf16.mxu0 0
    %2590 = vmatpush1.bf16.msra.mxu0 %v2019
    %2591 = vmatprep.subr.bf16.mxu0 0
    %2592 = vmatpush1.bf16.msra.mxu0 %v2020
    %2593 = vmatprep.subr.bf16.mxu0 0
    %2594 = vmatpush1.bf16.msra.mxu0 %v2021
    %2595 = vmatprep.subr.bf16.mxu0 0
    %2596 = vmatpush1.bf16.msra.mxu0 %v2022
    %2597 = vmatprep.subr.bf16.mxu0 0
    %2598 = vmatpush1.bf16.msra.mxu0 %v2023
    %2599 = vmatprep.subr.bf16.mxu0 0
    %2600 = vmatpush1.bf16.msra.mxu0 %v2024
    %2601 = vmatprep.subr.bf16.mxu0 0
    %2602 = vmatpush1.bf16.msra.mxu0 %v2025
    %2603 = vmatprep.subr.bf16.mxu0 0
    %2604 = vmatpush1.bf16.msra.mxu0 %v2026
    %2605 = vmatprep.subr.bf16.mxu0 0
    %2606 = vmatpush1.bf16.msra.mxu0 %v2027
    %2607 = vmatprep.mubr.bf16.mxu0 %v1459
    %2608 = vmatmul.mubr.bf16.gmra.mrb[0].mxu0 %v1458
    %v2609 = vpop.f32.mrb[0].mxu0
    %v2610 = vadd.f32 %v2449, %v2609
    %v2611 = vpop.f32.mrb[0].mxu0
    %v2612 = vpop.f32.mrb[0].mxu0
    %v2613 = vadd.f32 %v2452, %v2612
    %v2614 = vpop.f32.mrb[0].mxu0
    %2615 = vmatprep.mubr.bf16.mxu0 %v1467
    %2616 = vmatmul.mubr.bf16.gmra.mrb[0].mxu0 %v1466
    %v2617 = vpop.f32.mrb[0].mxu0
    %v2618 = vadd.f32 %v2457, %v2617
    %v2619 = vpop.f32.mrb[0].mxu0
    %v2620 = vpop.f32.mrb[0].mxu0
    %v2621 = vadd.f32 %v2460, %v2620
    %v2622 = vpop.f32.mrb[0].mxu0
    %2623 = vmatprep.mubr.bf16.mxu0 %v1475
    %2624 = vmatmul.mubr.bf16.gmra.mrb[0].mxu0 %v1474
    %v2625 = vpop.f32.mrb[0].mxu0
    %v2626 = vadd.f32 %v2465, %v2625
    %v2627 = vpop.f32.mrb[0].mxu0
    %v2628 = vpop.f32.mrb[0].mxu0
    %v2629 = vadd.f32 %v2468, %v2628
    %v2630 = vpop.f32.mrb[0].mxu0
    %2631 = vmatprep.mubr.bf16.mxu0 %v1483
    %2632 = vmatmul.mubr.bf16.gmra.mrb[0].mxu0 %v1482
    %v2633 = vpop.f32.mrb[0].mxu0
    %v2634 = vadd.f32 %v2473, %v2633
    %v2635 = vpop.f32.mrb[0].mxu0
    %v2636 = vpop.f32.mrb[0].mxu0
    %v2637 = vadd.f32 %v2476, %v2636
    %v2638 = vpop.f32.mrb[0].mxu0
    %2639 = vmatprep.mubr.bf16.mxu0 %v1491
    %2640 = vmatmul.mubr.bf16.gmra.mrb[0].mxu0 %v1490
    %v2641 = vpop.f32.mrb[0].mxu0
    %v2642 = vadd.f32 %v2481, %v2641
    %v2643 = vpop.f32.mrb[0].mxu0
    %v2644 = vpop.f32.mrb[0].mxu0
    %v2645 = vadd.f32 %v2484, %v2644
    %v2646 = vpop.f32.mrb[0].mxu0
    %2647 = vmatprep.mubr.bf16.mxu0 %v1499
    %2648 = vmatmul.mubr.bf16.gmra.mrb[0].mxu0 %v1498
    %v2649 = vpop.f32.mrb[0].mxu0
    %v2650 = vadd.f32 %v2489, %v2649
    %v2651 = vpop.f32.mrb[0].mxu0
    %v2652 = vpop.f32.mrb[0].mxu0
    %v2653 = vadd.f32 %v2492, %v2652
    %v2654 = vpop.f32.mrb[0].mxu0
    %2655 = vmatprep.mubr.bf16.mxu0 %v1507
    %2656 = vmatmul.mubr.bf16.gmra.mrb[0].mxu0 %v1506
    %v2657 = vpop.f32.mrb[0].mxu0
    %v2658 = vadd.f32 %v2497, %v2657
    %v2659 = vpop.f32.mrb[0].mxu0
    %v2660 = vpop.f32.mrb[0].mxu0
    %v2661 = vadd.f32 %v2500, %v2660
    %v2662 = vpop.f32.mrb[0].mxu0
    %2663 = vmatprep.mubr.bf16.mxu0 %v1515
    %2664 = vmatmul.mubr.bf16.gmra.mrb[0].mxu0 %v1514
    %v2665 = vpop.f32.mrb[0].mxu0
    %v2666 = vadd.f32 %v2505, %v2665
    %v2667 = vpop.f32.mrb[0].mxu0
    %v2668 = vpop.f32.mrb[0].mxu0
    %v2669 = vadd.f32 %v2508, %v2668
    %v2670 = vpop.f32.mrb[0].mxu0
    %2671 = vmatprep.mubr.bf16.mxu0 %v1523
    %2672 = vmatmul.mubr.bf16.gmra.mrb[0].mxu0 %v1522
    %v2673 = vpop.f32.mrb[0].mxu0
    %v2674 = vadd.f32 %v2513, %v2673
    %v2675 = vpop.f32.mrb[0].mxu0
    %v2676 = vpop.f32.mrb[0].mxu0
    %v2677 = vadd.f32 %v2516, %v2676
    %v2678 = vpop.f32.mrb[0].mxu0
    %2679 = vmatprep.mubr.bf16.mxu0 %v1531
    %2680 = vmatmul.mubr.bf16.gmra.mrb[0].mxu0 %v1530
    %v2681 = vpop.f32.mrb[0].mxu0
    %v2682 = vadd.f32 %v2521, %v2681
    %v2683 = vpop.f32.mrb[0].mxu0
    %v2684 = vpop.f32.mrb[0].mxu0
    %v2685 = vadd.f32 %v2524, %v2684
    %v2686 = vpop.f32.mrb[0].mxu0
    %2687 = vmatprep.mubr.bf16.mxu0 %v1539
    %2688 = vmatmul.mubr.bf16.gmra.mrb[0].mxu0 %v1538
    %v2689 = vpop.f32.mrb[0].mxu0
    %v2690 = vadd.f32 %v2529, %v2689
    %v2691 = vpop.f32.mrb[0].mxu0
    %v2692 = vpop.f32.mrb[0].mxu0
    %v2693 = vadd.f32 %v2532, %v2692
    %v2694 = vpop.f32.mrb[0].mxu0
    %2695 = vmatprep.mubr.bf16.mxu0 %v1547
    %2696 = vmatmul.mubr.bf16.gmra.mrb[0].mxu0 %v1546
    %v2697 = vpop.f32.mrb[0].mxu0
    %v2698 = vadd.f32 %v2537, %v2697
    %v2699 = vpop.f32.mrb[0].mxu0
    %v2700 = vpop.f32.mrb[0].mxu0
    %v2701 = vadd.f32 %v2540, %v2700
    %v2702 = vpop.f32.mrb[0].mxu0
    %2703 = vmatprep.mubr.bf16.mxu0 %v1555
    %2704 = vmatmul.mubr.bf16.gmra.mrb[0].mxu0 %v1554
    %v2705 = vpop.f32.mrb[0].mxu0
    %v2706 = vadd.f32 %v2545, %v2705
    %v2707 = vpop.f32.mrb[0].mxu0
    %v2708 = vpop.f32.mrb[0].mxu0
    %v2709 = vadd.f32 %v2548, %v2708
    %v2710 = vpop.f32.mrb[0].mxu0
    %2711 = vmatprep.mubr.bf16.mxu0 %v1563
    %2712 = vmatmul.mubr.bf16.gmra.mrb[0].mxu0 %v1562
    %v2713 = vpop.f32.mrb[0].mxu0
    %v2714 = vadd.f32 %v2553, %v2713
    %v2715 = vpop.f32.mrb[0].mxu0
    %v2716 = vpop.f32.mrb[0].mxu0
    %v2717 = vadd.f32 %v2556, %v2716
    %v2718 = vpop.f32.mrb[0].mxu0
    %2719 = vmatprep.mubr.bf16.mxu0 %v1571
    %2720 = vmatmul.mubr.bf16.gmra.mrb[0].mxu0 %v1570
    %v2721 = vpop.f32.mrb[0].mxu0
    %v2722 = vadd.f32 %v2561, %v2721
    %v2723 = vpop.f32.mrb[0].mxu0
    %v2724 = vpop.f32.mrb[0].mxu0
    %v2725 = vadd.f32 %v2564, %v2724
    %v2726 = vpop.f32.mrb[0].mxu0
    %2727 = vmatprep.mubr.bf16.mxu0 %v1579
    %2728 = vmatmul.mubr.bf16.gmra.mrb[0].mxu0 %v1578
    %v2729 = vpop.f32.mrb[0].mxu0
    %v2730 = vadd.f32 %v2569, %v2729
    %v2731 = vpop.f32.mrb[0].mxu0
    %v2732 = vpop.f32.mrb[0].mxu0
    %v2733 = vadd.f32 %v2572, %v2732
    %v2734 = vpop.f32.mrb[0].mxu0
    %2735 = vdwg.mxu0
    %v2744 = vunpack.c.l.b16 %v1444
    %v2745 = vunpack.c.l.b16 %v1445
    %v2746 = vunpack.c.l.b16 %v1446
    %v2747 = vunpack.c.l.b16 %v1447
    %v2748 = vunpack.c.l.b16 %v1448
    %v2749 = vunpack.c.l.b16 %v1449
    %v2750 = vunpack.c.l.b16 %v1450
    %v2751 = vunpack.c.l.b16 %v1451
    %v2752 = vpack.c.b16 %v2745, %v2744
    %v2753 = vpack.c.b16 %v2747, %v2746
    %v2754 = vpack.c.b16 %v2749, %v2748
    %v2755 = vpack.c.b16 %v2751, %v2750
    %v2761 = vsel %vm607, %v1428, 0
    %v2764 = vsel %vm607, %v1429, 0
    %v2767 = vsel %vm607, %v1430, 0
    %v2770 = vsel %vm607, %v1431, 0
    %v2773 = vsel %vm607, %v1432, 0
    %v2776 = vsel %vm607, %v1433, 0
    %v2779 = vsel %vm607, %v1434, 0
    %v2782 = vsel %vm607, %v1435, 0
    %v2785 = vsel %vm607, %v1436, 0
    %v2788 = vsel %vm607, %v1437, 0
    %v2791 = vsel %vm607, %v1438, 0
    %v2794 = vsel %vm607, %v1439, 0
    %v2797 = vsel %vm607, %v1440, 0
    %v2800 = vsel %vm607, %v1441, 0
    %v2803 = vsel %vm607, %v1442, 0
    %v2806 = vsel %vm607, %v1443, 0
    %2808 = vmatprep.subr.bf16.mxu0 0
    %2809 = vmatpush1.bf16.msra.mxu0 %v2752
    %2810 = vmatprep.subr.bf16.mxu0 0
    %2811 = vmatpush1.bf16.msra.mxu0 %v2753
    %2812 = vmatprep.subr.bf16.mxu0 0
    %2813 = vmatpush1.bf16.msra.mxu0 %v2754
    %2814 = vmatprep.subr.bf16.mxu0 0
    %2815 = vmatpush1.bf16.msra.mxu0 %v2755
    %2816 = vmatprep.subr.bf16.mxu0 0
    %2817 = vmatpush1.bf16.msra.mxu0 0
    %2818 = vmatprep.subr.bf16.mxu0 0
    %2819 = vmatpush1.bf16.msra.mxu0 0
    %2820 = vmatprep.subr.bf16.mxu0 0
    %2821 = vmatpush1.bf16.msra.mxu0 0
    %2822 = vmatprep.subr.bf16.mxu0 0
    %2823 = vmatpush1.bf16.msra.mxu0 0
    %2824 = vmatprep.subr.bf16.mxu0 0
    %2825 = vmatpush1.bf16.msra.mxu0 0
    %2826 = vmatprep.subr.bf16.mxu0 0
    %2827 = vmatpush1.bf16.msra.mxu0 0
    %2828 = vmatprep.subr.bf16.mxu0 0
    %2829 = vmatpush1.bf16.msra.mxu0 0
    %2830 = vmatprep.subr.bf16.mxu0 0
    %2831 = vmatpush1.bf16.msra.mxu0 0
    %2832 = vmatprep.subr.bf16.mxu0 0
    %2833 = vmatpush1.bf16.msra.mxu0 0
    %2834 = vmatprep.subr.bf16.mxu0 0
    %2835 = vmatpush1.bf16.msra.mxu0 0
    %2836 = vmatprep.subr.bf16.mxu0 0
    %2837 = vmatpush1.bf16.msra.mxu0 0
    %2838 = vmatprep.subr.bf16.mxu0 0
    %2839 = vmatpush1.bf16.msra.mxu0 0
    %2840 = vmatprep.mubr.bf16.mxu0 0
    %2841 = vmatmul.mubr.bf16.gmra.mrb[0].mxu0 %v2761
    %v2842 = vpop.f32.mrb[0].mxu0
    %v2843 = vadd.f32 %v2610, %v2842
    %v2844 = vpop.f32.mrb[0].mxu0
    %v2845 = vpop.f32.mrb[0].mxu0
    %v2846 = vadd.f32 %v2613, %v2845
    %v2847 = vpop.f32.mrb[0].mxu0
    %2848 = vmatprep.mubr.bf16.mxu0 0
    %2849 = vmatmul.mubr.bf16.gmra.mrb[0].mxu0 %v2764
    %v2850 = vpop.f32.mrb[0].mxu0
    %v2851 = vadd.f32 %v2618, %v2850
    %v2852 = vpop.f32.mrb[0].mxu0
    %v2853 = vpop.f32.mrb[0].mxu0
    %v2854 = vadd.f32 %v2621, %v2853
    %v2855 = vpop.f32.mrb[0].mxu0
    %2856 = vmatprep.mubr.bf16.mxu0 0
    %2857 = vmatmul.mubr.bf16.gmra.mrb[0].mxu0 %v2767
    %v2858 = vpop.f32.mrb[0].mxu0
    %v2859 = vadd.f32 %v2626, %v2858
    %v2860 = vpop.f32.mrb[0].mxu0
    %v2861 = vpop.f32.mrb[0].mxu0
    %v2862 = vadd.f32 %v2629, %v2861
    %v2863 = vpop.f32.mrb[0].mxu0
    %2864 = vmatprep.mubr.bf16.mxu0 0
    %2865 = vmatmul.mubr.bf16.gmra.mrb[0].mxu0 %v2770
    %v2866 = vpop.f32.mrb[0].mxu0
    %v2867 = vadd.f32 %v2634, %v2866
    %v2868 = vpop.f32.mrb[0].mxu0
    %v2869 = vpop.f32.mrb[0].mxu0
    %v2870 = vadd.f32 %v2637, %v2869
    %v2871 = vpop.f32.mrb[0].mxu0
    %2872 = vmatprep.mubr.bf16.mxu0 0
    %2873 = vmatmul.mubr.bf16.gmra.mrb[0].mxu0 %v2773
    %v2874 = vpop.f32.mrb[0].mxu0
    %v2875 = vadd.f32 %v2642, %v2874
    %v2876 = vpop.f32.mrb[0].mxu0
    %v2877 = vpop.f32.mrb[0].mxu0
    %v2878 = vadd.f32 %v2645, %v2877
    %v2879 = vpop.f32.mrb[0].mxu0
    %2880 = vmatprep.mubr.bf16.mxu0 0
    %2881 = vmatmul.mubr.bf16.gmra.mrb[0].mxu0 %v2776
    %v2882 = vpop.f32.mrb[0].mxu0
    %v2883 = vadd.f32 %v2650, %v2882
    %v2884 = vpop.f32.mrb[0].mxu0
    %v2885 = vpop.f32.mrb[0].mxu0
    %v2886 = vadd.f32 %v2653, %v2885
    %v2887 = vpop.f32.mrb[0].mxu0
    %2888 = vmatprep.mubr.bf16.mxu0 0
    %2889 = vmatmul.mubr.bf16.gmra.mrb[0].mxu0 %v2779
    %v2890 = vpop.f32.mrb[0].mxu0
    %v2891 = vadd.f32 %v2658, %v2890
    %v2892 = vpop.f32.mrb[0].mxu0
    %v2893 = vpop.f32.mrb[0].mxu0
    %v2894 = vadd.f32 %v2661, %v2893
    %v2895 = vpop.f32.mrb[0].mxu0
    %2896 = vmatprep.mubr.bf16.mxu0 0
    %2897 = vmatmul.mubr.bf16.gmra.mrb[0].mxu0 %v2782
    %v2898 = vpop.f32.mrb[0].mxu0
    %v2899 = vadd.f32 %v2666, %v2898
    %v2900 = vpop.f32.mrb[0].mxu0
    %v2901 = vpop.f32.mrb[0].mxu0
    %v2902 = vadd.f32 %v2669, %v2901
    %v2903 = vpop.f32.mrb[0].mxu0
    %2904 = vmatprep.mubr.bf16.mxu0 0
    %2905 = vmatmul.mubr.bf16.gmra.mrb[0].mxu0 %v2785
    %v2906 = vpop.f32.mrb[0].mxu0
    %v2907 = vadd.f32 %v2674, %v2906
    %v2908 = vpop.f32.mrb[0].mxu0
    %v2909 = vpop.f32.mrb[0].mxu0
    %v2910 = vadd.f32 %v2677, %v2909
    %v2911 = vpop.f32.mrb[0].mxu0
    %2912 = vmatprep.mubr.bf16.mxu0 0
    %2913 = vmatmul.mubr.bf16.gmra.mrb[0].mxu0 %v2788
    %v2914 = vpop.f32.mrb[0].mxu0
    %v2915 = vadd.f32 %v2682, %v2914
    %v2916 = vpop.f32.mrb[0].mxu0
    %v2917 = vpop.f32.mrb[0].mxu0
    %v2918 = vadd.f32 %v2685, %v2917
    %v2919 = vpop.f32.mrb[0].mxu0
    %2920 = vmatprep.mubr.bf16.mxu0 0
    %2921 = vmatmul.mubr.bf16.gmra.mrb[0].mxu0 %v2791
    %v2922 = vpop.f32.mrb[0].mxu0
    %v2923 = vadd.f32 %v2690, %v2922
    %v2924 = vpop.f32.mrb[0].mxu0
    %v2925 = vpop.f32.mrb[0].mxu0
    %v2926 = vadd.f32 %v2693, %v2925
    %v2927 = vpop.f32.mrb[0].mxu0
    %2928 = vmatprep.mubr.bf16.mxu0 0
    %2929 = vmatmul.mubr.bf16.gmra.mrb[0].mxu0 %v2794
    %v2930 = vpop.f32.mrb[0].mxu0
    %v2931 = vadd.f32 %v2698, %v2930
    %v2932 = vpop.f32.mrb[0].mxu0
    %v2933 = vpop.f32.mrb[0].mxu0
    %v2934 = vadd.f32 %v2701, %v2933
    %v2935 = vpop.f32.mrb[0].mxu0
    %2936 = vmatprep.mubr.bf16.mxu0 0
    %2937 = vmatmul.mubr.bf16.gmra.mrb[0].mxu0 %v2797
    %v2938 = vpop.f32.mrb[0].mxu0
    %v2939 = vadd.f32 %v2706, %v2938
    %v2940 = vpop.f32.mrb[0].mxu0
    %v2941 = vpop.f32.mrb[0].mxu0
    %v2942 = vadd.f32 %v2709, %v2941
    %v2943 = vpop.f32.mrb[0].mxu0
    %2944 = vmatprep.mubr.bf16.mxu0 0
    %2945 = vmatmul.mubr.bf16.gmra.mrb[0].mxu0 %v2800
    %v2946 = vpop.f32.mrb[0].mxu0
    %v2947 = vadd.f32 %v2714, %v2946
    %v2948 = vpop.f32.mrb[0].mxu0
    %v2949 = vpop.f32.mrb[0].mxu0
    %v2950 = vadd.f32 %v2717, %v2949
    %v2951 = vpop.f32.mrb[0].mxu0
    %2952 = vmatprep.mubr.bf16.mxu0 0
    %2953 = vmatmul.mubr.bf16.gmra.mrb[0].mxu0 %v2803
    %v2954 = vpop.f32.mrb[0].mxu0
    %v2955 = vadd.f32 %v2722, %v2954
    %v2956 = vpop.f32.mrb[0].mxu0
    %v2957 = vpop.f32.mrb[0].mxu0
    %v2958 = vadd.f32 %v2725, %v2957
    %v2959 = vpop.f32.mrb[0].mxu0
    %2960 = vmatprep.mubr.bf16.mxu0 0
    %2961 = vmatmul.mubr.bf16.gmra.mrb[0].mxu0 %v2806
    %v2962 = vpop.f32.mrb[0].mxu0
    %v2963 = vadd.f32 %v2730, %v2962
    %v2964 = vpop.f32.mrb[0].mxu0
    %v2965 = vpop.f32.mrb[0].mxu0
    %v2966 = vadd.f32 %v2733, %v2965
    %v2967 = vpop.f32.mrb[0].mxu0
    %2968 = vdwg.mxu0
    %v2969 = vld [vmem:[%s7] sm:$0x1]
    %v2971 = vlaneseq
    %v2972 = vshrl.u32 %v2971, 7
    %v2973 = vsub.s32 0, %v2972
    %v2974 = vrot.slane %v2969, %v2973
    %v2976 = vadd.f32 %v2843, %v2974
    %v2977 = vadd.f32 %v2846, %v2974
    %v2978 = vadd.f32 %v2851, %v2974
    %v2979 = vadd.f32 %v2854, %v2974
    %v2980 = vadd.f32 %v2859, %v2974
    %v2981 = vadd.f32 %v2862, %v2974
    %v2982 = vadd.f32 %v2867, %v2974
    %v2983 = vadd.f32 %v2870, %v2974
    %v2984 = vadd.f32 %v2875, %v2974
    %v2985 = vadd.f32 %v2878, %v2974
    %v2986 = vadd.f32 %v2883, %v2974
    %v2987 = vadd.f32 %v2886, %v2974
    %v2988 = vadd.f32 %v2891, %v2974
    %v2989 = vadd.f32 %v2894, %v2974
    %v2990 = vadd.f32 %v2899, %v2974
    %v2991 = vadd.f32 %v2902, %v2974
    %v2992 = vadd.f32 %v2907, %v2974
    %v2993 = vadd.f32 %v2910, %v2974
    %v2994 = vadd.f32 %v2915, %v2974
    %v2995 = vadd.f32 %v2918, %v2974
    %v2996 = vadd.f32 %v2923, %v2974
    %v2997 = vadd.f32 %v2926, %v2974
    %v2998 = vadd.f32 %v2931, %v2974
    %v2999 = vadd.f32 %v2934, %v2974
    %v3000 = vadd.f32 %v2939, %v2974
    %v3001 = vadd.f32 %v2942, %v2974
    %v3002 = vadd.f32 %v2947, %v2974
    %v3003 = vadd.f32 %v2950, %v2974
    %v3004 = vadd.f32 %v2955, %v2974
    %v3005 = vadd.f32 %v2958, %v2974
    %v3006 = vadd.f32 %v2963, %v2974
    %v3007 = vadd.f32 %v2966, %v2974
    %v3008 = vxor.u32 %v2976, 2147483648
    %v3009 = vxor.u32 %v2977, 2147483648
    %v3010 = vxor.u32 %v2978, 2147483648
    %v3011 = vxor.u32 %v2979, 2147483648
    %v3012 = vxor.u32 %v2980, 2147483648
    %v3013 = vxor.u32 %v2981, 2147483648
    %v3014 = vxor.u32 %v2982, 2147483648
    %v3015 = vxor.u32 %v2983, 2147483648
    %v3016 = vxor.u32 %v2984, 2147483648
    %v3017 = vxor.u32 %v2985, 2147483648
    %v3018 = vxor.u32 %v2986, 2147483648
    %v3019 = vxor.u32 %v2987, 2147483648
    %v3020 = vxor.u32 %v2988, 2147483648
    %v3021 = vxor.u32 %v2989, 2147483648
    %v3022 = vxor.u32 %v2990, 2147483648
    %v3023 = vxor.u32 %v2991, 2147483648
    %v3024 = vxor.u32 %v2992, 2147483648
    %v3025 = vxor.u32 %v2993, 2147483648
    %v3026 = vxor.u32 %v2994, 2147483648
    %v3027 = vxor.u32 %v2995, 2147483648
    %v3028 = vxor.u32 %v2996, 2147483648
    %v3029 = vxor.u32 %v2997, 2147483648
    %v3030 = vxor.u32 %v2998, 2147483648
    %v3031 = vxor.u32 %v2999, 2147483648
    %v3032 = vxor.u32 %v3000, 2147483648
    %v3033 = vxor.u32 %v3001, 2147483648
    %v3034 = vxor.u32 %v3002, 2147483648
    %v3035 = vxor.u32 %v3003, 2147483648
    %v3036 = vxor.u32 %v3004, 2147483648
    %v3037 = vxor.u32 %v3005, 2147483648
    %v3038 = vxor.u32 %v3006, 2147483648
    %v3039 = vxor.u32 %v3007, 2147483648
    %v3040 = vmul.f32 %v3008, 1.442695
    %v3041 = vpow.pop %v3040
    %v3042 = vmul.f32 %v3009, 1.442695
    %v3043 = vpow.pop %v3042
    %v3044 = vmul.f32 %v3010, 1.442695
    %v3045 = vpow.pop %v3044
    %v3046 = vmul.f32 %v3011, 1.442695
    %v3047 = vpow.pop %v3046
    %v3048 = vmul.f32 %v3012, 1.442695
    %v3049 = vpow.pop %v3048
    %v3050 = vmul.f32 %v3013, 1.442695
    %v3051 = vpow.pop %v3050
    %v3052 = vmul.f32 %v3014, 1.442695
    %v3053 = vpow.pop %v3052
    %v3054 = vmul.f32 %v3015, 1.442695
    %v3055 = vpow.pop %v3054
    %v3056 = vmul.f32 %v3016, 1.442695
    %v3057 = vpow.pop %v3056
    %v3058 = vmul.f32 %v3017, 1.442695
    %v3059 = vpow.pop %v3058
    %v3060 = vmul.f32 %v3018, 1.442695
    %v3061 = vpow.pop %v3060
    %v3062 = vmul.f32 %v3019, 1.442695
    %v3063 = vpow.pop %v3062
    %v3064 = vmul.f32 %v3020, 1.442695
    %v3065 = vpow.pop %v3064
    %v3066 = vmul.f32 %v3021, 1.442695
    %v3067 = vpow.pop %v3066
    %v3068 = vmul.f32 %v3022, 1.442695
    %v3069 = vpow.pop %v3068
    %v3070 = vmul.f32 %v3023, 1.442695
    %v3071 = vpow.pop %v3070
    %v3072 = vmul.f32 %v3024, 1.442695
    %v3073 = vpow.pop %v3072
    %v3074 = vmul.f32 %v3025, 1.442695
    %v3075 = vpow.pop %v3074
    %v3076 = vmul.f32 %v3026, 1.442695
    %v3077 = vpow.pop %v3076
    %v3078 = vmul.f32 %v3027, 1.442695
    %v3079 = vpow.pop %v3078
    %v3080 = vmul.f32 %v3028, 1.442695
    %v3081 = vpow.pop %v3080
    %v3082 = vmul.f32 %v3029, 1.442695
    %v3083 = vpow.pop %v3082
    %v3084 = vmul.f32 %v3030, 1.442695
    %v3085 = vpow.pop %v3084
    %v3086 = vmul.f32 %v3031, 1.442695
    %v3087 = vpow.pop %v3086
    %v3088 = vmul.f32 %v3032, 1.442695
    %v3089 = vpow.pop %v3088
    %v3090 = vmul.f32 %v3033, 1.442695
    %v3091 = vpow.pop %v3090
    %v3092 = vmul.f32 %v3034, 1.442695
    %v3093 = vpow.pop %v3092
    %v3094 = vmul.f32 %v3035, 1.442695
    %v3095 = vpow.pop %v3094
    %v3096 = vmul.f32 %v3036, 1.442695
    %v3097 = vpow.pop %v3096
    %v3098 = vmul.f32 %v3037, 1.442695
    %v3099 = vpow.pop %v3098
    %v3100 = vmul.f32 %v3038, 1.442695
    %v3101 = vpow.pop %v3100
    %v3102 = vmul.f32 %v3039, 1.442695
    %v3103 = vpow.pop %v3102
    %v3104 = vadd.f32 %v3041, 1.0
    %v3105 = vadd.f32 %v3043, 1.0
    %v3106 = vadd.f32 %v3045, 1.0
    %v3107 = vadd.f32 %v3047, 1.0
    %v3108 = vadd.f32 %v3049, 1.0
    %v3109 = vadd.f32 %v3051, 1.0
    %v3110 = vadd.f32 %v3053, 1.0
    %v3111 = vadd.f32 %v3055, 1.0
    %v3112 = vadd.f32 %v3057, 1.0
    %v3113 = vadd.f32 %v3059, 1.0
    %v3114 = vadd.f32 %v3061, 1.0
    %v3115 = vadd.f32 %v3063, 1.0
    %v3116 = vadd.f32 %v3065, 1.0
    %v3117 = vadd.f32 %v3067, 1.0
    %v3118 = vadd.f32 %v3069, 1.0
    %v3119 = vadd.f32 %v3071, 1.0
    %v3120 = vadd.f32 %v3073, 1.0
    %v3121 = vadd.f32 %v3075, 1.0
    %v3122 = vadd.f32 %v3077, 1.0
    %v3123 = vadd.f32 %v3079, 1.0
    %v3124 = vadd.f32 %v3081, 1.0
    %v3125 = vadd.f32 %v3083, 1.0
    %v3126 = vadd.f32 %v3085, 1.0
    %v3127 = vadd.f32 %v3087, 1.0
    %v3128 = vadd.f32 %v3089, 1.0
    %v3129 = vadd.f32 %v3091, 1.0
    %v3130 = vadd.f32 %v3093, 1.0
    %v3131 = vadd.f32 %v3095, 1.0
    %v3132 = vadd.f32 %v3097, 1.0
    %v3133 = vadd.f32 %v3099, 1.0
    %v3134 = vadd.f32 %v3101, 1.0
    %v3135 = vadd.f32 %v3103, 1.0
    %v3136 = vrcp.pop %v3104
    %v3137 = vmul.f32 1.0, %v3136
    %v3138 = vrcp.pop %v3105
    %v3139 = vmul.f32 1.0, %v3138
    %v3140 = vrcp.pop %v3106
    %v3141 = vmul.f32 1.0, %v3140
    %v3142 = vrcp.pop %v3107
    %v3143 = vmul.f32 1.0, %v3142
    %v3144 = vrcp.pop %v3108
    %v3145 = vmul.f32 1.0, %v3144
    %v3146 = vrcp.pop %v3109
    %v3147 = vmul.f32 1.0, %v3146
    %v3148 = vrcp.pop %v3110
    %v3149 = vmul.f32 1.0, %v3148
    %v3150 = vrcp.pop %v3111
    %v3151 = vmul.f32 1.0, %v3150
    %v3152 = vrcp.pop %v3112
    %v3153 = vmul.f32 1.0, %v3152
    %v3154 = vrcp.pop %v3113
    %v3155 = vmul.f32 1.0, %v3154
    %v3156 = vrcp.pop %v3114
    %v3157 = vmul.f32 1.0, %v3156
    %v3158 = vrcp.pop %v3115
    %v3159 = vmul.f32 1.0, %v3158
    %v3160 = vrcp.pop %v3116
    %v3161 = vmul.f32 1.0, %v3160
    %v3162 = vrcp.pop %v3117
    %v3163 = vmul.f32 1.0, %v3162
    %v3164 = vrcp.pop %v3118
    %v3165 = vmul.f32 1.0, %v3164
    %v3166 = vrcp.pop %v3119
    %v3167 = vmul.f32 1.0, %v3166
    %v3168 = vrcp.pop %v3120
    %v3169 = vmul.f32 1.0, %v3168
    %v3170 = vrcp.pop %v3121
    %v3171 = vmul.f32 1.0, %v3170
    %v3172 = vrcp.pop %v3122
    %v3173 = vmul.f32 1.0, %v3172
    %v3174 = vrcp.pop %v3123
    %v3175 = vmul.f32 1.0, %v3174
    %v3176 = vrcp.pop %v3124
    %v3177 = vmul.f32 1.0, %v3176
    %v3178 = vrcp.pop %v3125
    %v3179 = vmul.f32 1.0, %v3178
    %v3180 = vrcp.pop %v3126
    %v3181 = vmul.f32 1.0, %v3180
    %v3182 = vrcp.pop %v3127
    %v3183 = vmul.f32 1.0, %v3182
    %v3184 = vrcp.pop %v3128
    %v3185 = vmul.f32 1.0, %v3184
    %v3186 = vrcp.pop %v3129
    %v3187 = vmul.f32 1.0, %v3186
    %v3188 = vrcp.pop %v3130
    %v3189 = vmul.f32 1.0, %v3188
    %v3190 = vrcp.pop %v3131
    %v3191 = vmul.f32 1.0, %v3190
    %v3192 = vrcp.pop %v3132
    %v3193 = vmul.f32 1.0, %v3192
    %v3194 = vrcp.pop %v3133
    %v3195 = vmul.f32 1.0, %v3194
    %v3196 = vrcp.pop %v3134
    %v3197 = vmul.f32 1.0, %v3196
    %v3198 = vrcp.pop %v3135
    %v3199 = vmul.f32 1.0, %v3198
    %v3200 = vpack.c.bf16 %v3139, %v3137
    %v3201 = vpack.c.bf16 %v3143, %v3141
    %v3202 = vpack.c.bf16 %v3147, %v3145
    %v3203 = vpack.c.bf16 %v3151, %v3149
    %v3204 = vpack.c.bf16 %v3155, %v3153
    %v3205 = vpack.c.bf16 %v3159, %v3157
    %v3206 = vpack.c.bf16 %v3163, %v3161
    %v3207 = vpack.c.bf16 %v3167, %v3165
    %v3208 = vpack.c.bf16 %v3171, %v3169
    %v3209 = vpack.c.bf16 %v3175, %v3173
    %v3210 = vpack.c.bf16 %v3179, %v3177
    %v3211 = vpack.c.bf16 %v3183, %v3181
    %v3212 = vpack.c.bf16 %v3187, %v3185
    %v3213 = vpack.c.bf16 %v3191, %v3189
    %v3214 = vpack.c.bf16 %v3195, %v3193
    %v3215 = vpack.c.bf16 %v3199, %v3197
    %v3232 = vunpack.c.l.b16 %v3200
    %v3233 = vunpack.c.h.b16 %v3200
    %v3234 = vunpack.c.l.b16 %v3201
    %v3235 = vunpack.c.h.b16 %v3201
    %v3236 = vunpack.c.l.b16 %v3202
    %v3237 = vunpack.c.h.b16 %v3202
    %v3238 = vunpack.c.l.b16 %v3203
    %v3239 = vunpack.c.h.b16 %v3203
    %v3240 = vunpack.c.l.b16 %v3204
    %v3241 = vunpack.c.h.b16 %v3204
    %v3242 = vunpack.c.l.b16 %v3205
    %v3243 = vunpack.c.h.b16 %v3205
    %v3244 = vunpack.c.l.b16 %v3206
    %v3245 = vunpack.c.h.b16 %v3206
    %v3246 = vunpack.c.l.b16 %v3207
    %v3247 = vunpack.c.h.b16 %v3207
    %v3248 = vunpack.c.l.b16 %v3208
    %v3249 = vunpack.c.h.b16 %v3208
    %v3250 = vunpack.c.l.b16 %v3209
    %v3251 = vunpack.c.h.b16 %v3209
    %v3252 = vunpack.c.l.b16 %v3210
    %v3253 = vunpack.c.h.b16 %v3210
    %v3254 = vunpack.c.l.b16 %v3211
    %v3255 = vunpack.c.h.b16 %v3211
    %v3256 = vunpack.c.l.b16 %v3212
    %v3257 = vunpack.c.h.b16 %v3212
    %v3258 = vunpack.c.l.b16 %v3213
    %v3259 = vunpack.c.h.b16 %v3213
    %v3260 = vunpack.c.l.b16 %v3214
    %v3261 = vunpack.c.h.b16 %v3214
    %v3262 = vunpack.c.l.b16 %v3215
    %v3263 = vunpack.c.h.b16 %v3215
    %v3264 = vpack.c.b16 %v3232, %v3232
    %v3265 = vpack.c.b16 %v3233, %v3233
    %v3266 = vpack.c.b16 %v3234, %v3234
    %v3267 = vpack.c.b16 %v3235, %v3235
    %v3268 = vpack.c.b16 %v3236, %v3236
    %v3269 = vpack.c.b16 %v3237, %v3237
    %v3270 = vpack.c.b16 %v3238, %v3238
    %v3271 = vpack.c.b16 %v3239, %v3239
    %v3272 = vpack.c.b16 %v3240, %v3240
    %v3273 = vpack.c.b16 %v3241, %v3241
    %v3274 = vpack.c.b16 %v3242, %v3242
    %v3275 = vpack.c.b16 %v3243, %v3243
    %v3276 = vpack.c.b16 %v3244, %v3244
    %v3277 = vpack.c.b16 %v3245, %v3245
    %v3278 = vpack.c.b16 %v3246, %v3246
    %v3279 = vpack.c.b16 %v3247, %v3247
    %v3280 = vpack.c.b16 %v3248, %v3248
    %v3281 = vpack.c.b16 %v3249, %v3249
    %v3282 = vpack.c.b16 %v3250, %v3250
    %v3283 = vpack.c.b16 %v3251, %v3251
    %v3284 = vpack.c.b16 %v3252, %v3252
    %v3285 = vpack.c.b16 %v3253, %v3253
    %v3286 = vpack.c.b16 %v3254, %v3254
    %v3287 = vpack.c.b16 %v3255, %v3255
    %v3288 = vpack.c.b16 %v3256, %v3256
    %v3289 = vpack.c.b16 %v3257, %v3257
    %v3290 = vpack.c.b16 %v3258, %v3258
    %v3291 = vpack.c.b16 %v3259, %v3259
    %v3292 = vpack.c.b16 %v3260, %v3260
    %v3293 = vpack.c.b16 %v3261, %v3261
    %v3294 = vpack.c.b16 %v3262, %v3262
    %v3295 = vpack.c.b16 %v3263, %v3263
    %3328 = vst [vmem:[%s8] sm:$0xf] %v3264
    %3329 = vst [vmem:[%s8 + $0x4] sm:$0xf] %v3265
    %3330 = vst [vmem:[%s8 + $0x8] sm:$0xf] %v3266
    %3331 = vst [vmem:[%s8 + $0xc] sm:$0xf] %v3267
    %3332 = vst [vmem:[%s8 + $0x10] sm:$0xf] %v3268
    %3333 = vst [vmem:[%s8 + $0x14] sm:$0xf] %v3269
    %3334 = vst [vmem:[%s8 + $0x18] sm:$0xf] %v3270
    %3335 = vst [vmem:[%s8 + $0x1c] sm:$0xf] %v3271
    %3336 = vst [vmem:[%s8 + $0x20] sm:$0xf] %v3272
    %3337 = vst [vmem:[%s8 + $0x24] sm:$0xf] %v3273
    %3338 = vst [vmem:[%s8 + $0x28] sm:$0xf] %v3274
    %3339 = vst [vmem:[%s8 + $0x2c] sm:$0xf] %v3275
    %3340 = vst [vmem:[%s8 + $0x30] sm:$0xf] %v3276
    %3341 = vst [vmem:[%s8 + $0x34] sm:$0xf] %v3277
    %3342 = vst [vmem:[%s8 + $0x38] sm:$0xf] %v3278
    %3343 = vst [vmem:[%s8 + $0x3c] sm:$0xf] %v3279
    %3344 = vst [vmem:[%s8 + $0x40] sm:$0xf] %v3280
    %3345 = vst [vmem:[%s8 + $0x44] sm:$0xf] %v3281
    %3346 = vst [vmem:[%s8 + $0x48] sm:$0xf] %v3282
    %3347 = vst [vmem:[%s8 + $0x4c] sm:$0xf] %v3283
    %3348 = vst [vmem:[%s8 + $0x50] sm:$0xf] %v3284
    %3349 = vst [vmem:[%s8 + $0x54] sm:$0xf] %v3285
    %3350 = vst [vmem:[%s8 + $0x58] sm:$0xf] %v3286
    %3351 = vst [vmem:[%s8 + $0x5c] sm:$0xf] %v3287
    %3352 = vst [vmem:[%s8 + $0x60] sm:$0xf] %v3288
    %3353 = vst [vmem:[%s8 + $0x64] sm:$0xf] %v3289
    %3354 = vst [vmem:[%s8 + $0x68] sm:$0xf] %v3290
    %3355 = vst [vmem:[%s8 + $0x6c] sm:$0xf] %v3291
    %3356 = vst [vmem:[%s8 + $0x70] sm:$0xf] %v3292
    %3357 = vst [vmem:[%s8 + $0x74] sm:$0xf] %v3293
    %3358 = vst [vmem:[%s8 + $0x78] sm:$0xf] %v3294
    %3359 = vst [vmem:[%s8 + $0x7c] sm:$0xf] %v3295
    // Predicated region
    $region38: #{bls_forward.1} parent=1 // pred_check
      _
    $region39: #{bls_forward.1} parent=1 // pred_check_branch
      %3361 = sbr.rel (0) target = $region41
    $region40: #{bls_forward.1} parent=1 // pred_region
      _
    $region41: #{bls_forward.1} parent=1 // pred_fallthru
      _
    // Predicated region
    $region42: #{bls_forward.1} parent=1 // pred_check
      _
    $region43: #{bls_forward.1} parent=1 // pred_check_branch
      %3363 = sbr.rel (0) target = $region45
    $region44: #{bls_forward.1} parent=1 // pred_region
      _
    $region45: #{bls_forward.1} parent=1 // pred_fallthru
      _
    %3364 = vsyncpa [#allocation3], 1

</llo_original>
